<compile_context>
chip_gen: v5e
topology: v5e:2x2
jax: 0.10.0
libtpu: 0.0.40
codegen_flags: <defaults>
</compile_context>

<pallas_src>
import math

import jax
import jax.numpy as jnp
from jax.experimental import pallas as pl
from jax.experimental.pallas import tpu as pltpu

# ------------------------- config -------------------------
VOCAB = 100
HIDDEN = 48                    # divisible by 6 heads
N_HEADS = 6
HEAD_DIM = HIDDEN // N_HEADS   # 8
N_LAYERS = 2
INTERMEDIATE = 4 * HIDDEN      # 192
MAX_POS = 32
PAD_ID = 1
LN_EPS = 1e-12
BATCH = 2
SEQ = 8
BS = BATCH * SEQ               # tokens folded into sublanes
EMB_ROWS = VOCAB + MAX_POS + 1 # word | pos | token-type(0) rows of the fused table

INV_SQRT2 = 1.0 / math.sqrt(2.0)
ATTN_SCALE = 1.0 / math.sqrt(HEAD_DIM)

# packed-vector row layout (all rows padded to INTERMEDIATE lanes, slices start at 0)
R_BQKV, R_BO, R_BI, R_BO2, R_L1G, R_L1B, R_L2G, R_L2B = range(8)
EMB_G_ROW = N_LAYERS * 8
EMB_B_ROW = EMB_G_ROW + 1
VEC_ROWS = EMB_B_ROW + 1       # 18


# ------------------------- in-kernel helpers (f32) -------------------------
def _layernorm(x, g, b):
    mu = jnp.mean(x, axis=-1, keepdims=True)
    xc = x - mu
    var = jnp.mean(xc * xc, axis=-1, keepdims=True)
    return xc * jax.lax.rsqrt(var + LN_EPS) * g + b


def _gelu(x):
    # exact (erf-based) GELU, matching HF "gelu"
    return 0.5 * x * (1.0 + jax.lax.erf(x * INV_SQRT2))


# ------------------------- fused kernel (single step) -------------------------
def _fused_forward_kernel(ids_ref, amask_ref, embt_ref,
                          wqkv_ref, wo_ref, wi_ref, wo2_ref, vecs_ref,
                          out_ref):
    # ---- embeddings: one-hot (word + position + token-type) lookup as ONE matmul ----
    ids = ids_ref[...]                                   # (BS, 2) int32: [word_id, pos_id]
    wid = ids[:, 0:1]
    pid = ids[:, 1:2]
    col = jax.lax.broadcasted_iota(jnp.int32, (BS, EMB_ROWS), 1)
    onehot = ((col == wid)
              | (col == (VOCAB + pid))
              | (col == (VOCAB + MAX_POS))).astype(jnp.float32)     # (BS, 133)
    emb = jnp.dot(onehot, embt_ref[...], preferred_element_type=jnp.float32)  # (BS, H)

    eg = vecs_ref[EMB_G_ROW:EMB_G_ROW + 1, :HIDDEN]
    eb = vecs_ref[EMB_B_ROW:EMB_B_ROW + 1, :HIDDEN]
    h = _layernorm(emb, eg, eb)                          # (BS, H) f32

    # additive mask already contains key-padding AND cross-batch -inf blocks.
    # NOTE: a fully-masked query row would be -inf everywhere -> NaN softmax (same
    # behavior as the reference module at that margin); fine for the all-ones mask here.
    amask = amask_ref[...]                               # (BS, BS) f32

    for l in range(N_LAYERS):
        base = l * 8
        bqkv = vecs_ref[base + R_BQKV:base + R_BQKV + 1, :3 * HIDDEN]      # (1, 144)
        bo   = vecs_ref[base + R_BO:base + R_BO + 1, :HIDDEN]
        bi   = vecs_ref[base + R_BI:base + R_BI + 1, :INTERMEDIATE]
        bo2  = vecs_ref[base + R_BO2:base + R_BO2 + 1, :HIDDEN]
        l1g  = vecs_ref[base + R_L1G:base + R_L1G + 1, :HIDDEN]
        l1b  = vecs_ref[base + R_L1B:base + R_L1B + 1, :HIDDEN]
        l2g  = vecs_ref[base + R_L2G:base + R_L2G + 1, :HIDDEN]
        l2b  = vecs_ref[base + R_L2B:base + R_L2B + 1, :HIDDEN]

        # ---- fused QKV projection (ATTN_SCALE already folded into the Q third) ----
        qkv = jnp.dot(h.astype(jnp.bfloat16), wqkv_ref[l],
                      preferred_element_type=jnp.float32) + bqkv           # (BS, 3H)

        # ---- multi-head self-attention, both batch elems per matmul -------------
        ctx_heads = []
        for hd in range(N_HEADS):
            lo = hd * HEAD_DIM
            qh = qkv[:, lo:lo + HEAD_DIM].astype(jnp.bfloat16)             # (BS, d)
            kh = qkv[:, HIDDEN + lo:HIDDEN + lo + HEAD_DIM].astype(jnp.bfloat16)
            vh = qkv[:, 2 * HIDDEN + lo:2 * HIDDEN + lo + HEAD_DIM].astype(jnp.bfloat16)
            sc = jax.lax.dot_general(qh, kh, (((1,), (1,)), ((), ())),
                                     preferred_element_type=jnp.float32)  # (BS, BS)
            sc = sc + amask
            sc = sc - jnp.max(sc, axis=-1, keepdims=True)
            e = jnp.exp(sc)
            p = e * pl.reciprocal(jnp.sum(e, axis=-1, keepdims=True), approx=True)
            ctx_heads.append(jnp.dot(p.astype(jnp.bfloat16), vh,
                                     preferred_element_type=jnp.float32))  # (BS, d)
        ctx = jnp.concatenate(ctx_heads, axis=-1)                          # (BS, H)

        attn = jnp.dot(ctx.astype(jnp.bfloat16), wo_ref[l],
                       preferred_element_type=jnp.float32) + bo
        h1 = _layernorm(attn + h, l1g, l1b)

        # ---- feed-forward ----
        inter = jnp.dot(h1.astype(jnp.bfloat16), wi_ref[l],
                        preferred_element_type=jnp.float32) + bi
        inter = _gelu(inter)
        ffn = jnp.dot(inter.astype(jnp.bfloat16), wo2_ref[l],
                      preferred_element_type=jnp.float32) + bo2
        h = _layernorm(ffn + h1, l2g, l2b)

    # torch.mean(last_hidden_state, dim=1): rows [b*S:(b+1)*S] belong to batch b.
    pooled = [jnp.mean(h[b * SEQ:(b + 1) * SEQ, :], axis=0, keepdims=True)
              for b in range(BATCH)]
    out_ref[...] = jnp.concatenate(pooled, axis=0)       # (B, H), one clean store


# ------------------------- parameters -------------------------
def _pad_row(v, width=INTERMEDIATE):
    v = jnp.reshape(v, (-1,))
    return jnp.pad(v, (0, width - v.shape[0]))[None, :]


def init_params(key):
    keys = iter(jax.random.split(key, 64))

    def dense(shape):
        return 0.02 * jax.random.normal(next(keys), shape, jnp.float32)

    word_emb = dense((VOCAB, HIDDEN))
    pos_emb = dense((MAX_POS, HIDDEN))
    tok_emb = dense((1, HIDDEN))                 # type_vocab_size = 1
    emb_table = jnp.concatenate([word_emb, pos_emb, tok_emb], axis=0)   # (133, H)

    wqkv_l, wo_l, wi_l, wo2_l = [], [], [], []
    vec_rows = []
    for _ in range(N_LAYERS):
        wq = dense((HIDDEN, HIDDEN)); wk = dense((HIDDEN, HIDDEN)); wv = dense((HIDDEN, HIDDEN))
        bq = dense((HIDDEN,)); bk = dense((HIDDEN,)); bv = dense((HIDDEN,))
        # fold 1/sqrt(head_dim) into Q projection (weight + bias) on the f32 master
        wq = wq * ATTN_SCALE
        bq = bq * ATTN_SCALE
        wqkv_l.append(jnp.concatenate([wq, wk, wv], axis=1))            # (H, 3H)
        wo = dense((HIDDEN, HIDDEN)); bo = dense((HIDDEN,))
        wi = dense((HIDDEN, INTERMEDIATE)); bi = dense((INTERMEDIATE,))
        wo2 = dense((INTERMEDIATE, HIDDEN)); bo2 = dense((HIDDEN,))
        wo_l.append(wo); wi_l.append(wi); wo2_l.append(wo2)
        # packed per-layer small vectors (rows R_BQKV..R_L2B)
        vec_rows += [
            _pad_row(jnp.concatenate([bq, bk, bv])),
            _pad_row(bo),
            _pad_row(bi),
            _pad_row(bo2),
            _pad_row(jnp.ones((HIDDEN,), jnp.float32)),    # ln1 gamma
            _pad_row(jnp.zeros((HIDDEN,), jnp.float32)),   # ln1 beta
            _pad_row(jnp.ones((HIDDEN,), jnp.float32)),    # ln2 gamma
            _pad_row(jnp.zeros((HIDDEN,), jnp.float32)),   # ln2 beta
        ]
    # embedding LayerNorm rows
    vec_rows += [_pad_row(jnp.ones((HIDDEN,), jnp.float32)),
                 _pad_row(jnp.zeros((HIDDEN,), jnp.float32))]

    return {
        "emb_table": emb_table,                                  # f32 (133, H)
        "wqkv": jnp.stack(wqkv_l).astype(jnp.bfloat16),          # (L, H, 3H)
        "wo":   jnp.stack(wo_l).astype(jnp.bfloat16),            # (L, H, H)
        "wi":   jnp.stack(wi_l).astype(jnp.bfloat16),            # (L, H, I)
        "wo2":  jnp.stack(wo2_l).astype(jnp.bfloat16),           # (L, I, H)
        "vecs": jnp.concatenate(vec_rows, axis=0),               # f32 (18, I)
    }


# ------------------------- forward -------------------------
def cornbert_forward(params, input_ids, attention_mask):
    B, S = input_ids.shape
    bs = B * S

    # Roberta position ids: cumsum(mask)*mask + pad_id  (tiny int glue, stays in XLA)
    tok_mask = (input_ids != PAD_ID).astype(jnp.int32)
    position_ids = jnp.cumsum(tok_mask, axis=1) * tok_mask + PAD_ID
    ids = jnp.stack([input_ids.reshape(bs), position_ids.reshape(bs)],
                    axis=1).astype(jnp.int32)                            # (BS, 2)

    # Additive mask: HF-style key padding + cross-batch -inf blocks (batch folded
    # into the token/sublane axis).
    neg = jnp.float32(jnp.finfo(jnp.float32).min)
    key_pad = ((1.0 - attention_mask.astype(jnp.float32)) * neg).reshape(1, bs)
    grp = jnp.arange(bs, dtype=jnp.int32) // S
    cross = grp[:, None] != grp[None, :]
    amask = jnp.where(cross, neg, jnp.broadcast_to(key_pad, (bs, bs)))   # (BS, BS)

    inputs = (ids, amask, params["emb_table"],
              params["wqkv"], params["wo"], params["wi"], params["wo2"],
              params["vecs"])

    def full_spec(a):
        nd = a.ndim
        return pl.BlockSpec(a.shape, lambda i, _nd=nd: (0,) * _nd)

    flops = (2 * bs * EMB_ROWS * HIDDEN
             + N_LAYERS * (2 * bs * (HIDDEN * 3 * HIDDEN + HIDDEN * HIDDEN
                                     + 2 * HIDDEN * INTERMEDIATE)
                           + N_HEADS * 2 * (2 * bs * bs * HEAD_DIM)))
    transcendentals = (N_LAYERS * (N_HEADS * bs * bs + bs * INTERMEDIATE)
                       + (2 * N_LAYERS + 1) * bs)
    bytes_accessed = (sum(int(a.size) * a.dtype.itemsize for a in inputs)
                      + B * HIDDEN * 4)

    return pl.pallas_call(
        _fused_forward_kernel,
        out_shape=jax.ShapeDtypeStruct((B, HIDDEN), jnp.float32),
        grid=(1,),
        in_specs=[full_spec(a) for a in inputs],
        out_specs=pl.BlockSpec((B, HIDDEN), lambda i: (0, 0)),
        compiler_params=pltpu.CompilerParams(dimension_semantics=("arbitrary",)),
        cost_estimate=pl.CostEstimate(flops=flops,
                                      transcendentals=transcendentals,
                                      bytes_accessed=bytes_accessed),
    )(*inputs)


# ------------------------- main -------------------------
if __name__ == "__main__":
    key = jax.random.PRNGKey(0)
    pkey, dkey = jax.random.split(key)
    params = init_params(pkey)

    # x = {"input_ids": ..., "attention_mask": ...}
    input_ids = jax.random.randint(dkey, (BATCH, SEQ), 2, VOCAB, dtype=jnp.int32)
    attention_mask = jnp.ones((BATCH, SEQ), jnp.float32)

    fwd = jax.jit(cornbert_forward)
    out = jax.block_until_ready(fwd(params, input_ids, attention_mask))
    assert out.shape == (BATCH, HIDDEN) and out.dtype == jnp.float32
    assert bool(jnp.all(jnp.isfinite(out)))
    print("KERNEL_OK")
</pallas_src>

<mosaic_0001>
module attributes {stable_mosaic.version = 11 : i64} {
  func.func @_fused_forward_kernel(%arg0: i32, %arg1: memref<16x2xi32, #tpu.memory_space<vmem>>, %arg2: memref<16x16xf32, #tpu.memory_space<vmem>>, %arg3: memref<133x48xf32, #tpu.memory_space<vmem>>, %arg4: memref<2x48x144xbf16, #tpu.memory_space<vmem>>, %arg5: memref<2x48x48xbf16, #tpu.memory_space<vmem>>, %arg6: memref<2x48x192xbf16, #tpu.memory_space<vmem>>, %arg7: memref<2x192x48xbf16, #tpu.memory_space<vmem>>, %arg8: memref<18x192xf32, #tpu.memory_space<vmem>>, %arg9: memref<2x48xf32, #tpu.memory_space<vmem>>) attributes {dimension_semantics = [#tpu.dimension_semantics<arbitrary>], iteration_bounds = array<i64: 1>, scalar_prefetch = 0 : i64, scratch_operands = 0 : i64, tpu.core_type = #tpu.core_type<tc>, window_params = [{pipeline_mode = #tpu.pipeline_mode<synchronous>, transform_indices = @transform_0, window_bounds = array<i64: 16, 2>}, {pipeline_mode = #tpu.pipeline_mode<synchronous>, transform_indices = @transform_1, window_bounds = array<i64: 16, 16>}, {pipeline_mode = #tpu.pipeline_mode<synchronous>, transform_indices = @transform_2, window_bounds = array<i64: 133, 48>}, {pipeline_mode = #tpu.pipeline_mode<synchronous>, transform_indices = @transform_3, window_bounds = array<i64: 2, 48, 144>}, {pipeline_mode = #tpu.pipeline_mode<synchronous>, transform_indices = @transform_4, window_bounds = array<i64: 2, 48, 48>}, {pipeline_mode = #tpu.pipeline_mode<synchronous>, transform_indices = @transform_5, window_bounds = array<i64: 2, 48, 192>}, {pipeline_mode = #tpu.pipeline_mode<synchronous>, transform_indices = @transform_6, window_bounds = array<i64: 2, 192, 48>}, {pipeline_mode = #tpu.pipeline_mode<synchronous>, transform_indices = @transform_7, window_bounds = array<i64: 18, 192>}, {pipeline_mode = #tpu.pipeline_mode<synchronous>, transform_indices = @transform_8, window_bounds = array<i64: 2, 48>}]} {
    %c0 = arith.constant 0 : index
    %c0_0 = arith.constant 0 : index
    %0 = vector.load %arg1[%c0, %c0_0] : memref<16x2xi32, #tpu.memory_space<vmem>>, vector<16x2xi32>
    %1 = vector.extract_strided_slice %0 {offsets = [0, 0], sizes = [16, 1], strides = [1, 1]} : vector<16x2xi32> to vector<16x1xi32>
    %2 = vector.extract_strided_slice %0 {offsets = [0, 1], sizes = [16, 1], strides = [1, 1]} : vector<16x2xi32> to vector<16x1xi32>
    %3 = tpu.iota {dimensions = array<i32: 1>} : vector<16x133xi32>
    %4 = vector.broadcast %1 : vector<16x1xi32> to vector<16x133xi32>
    %5 = arith.cmpi eq, %3, %4 : vector<16x133xi32>
    %c100_i32 = arith.constant 100 : i32
    %6 = vector.broadcast %c100_i32 : i32 to vector<16x1xi32>
    %7 = arith.addi %6, %2 : vector<16x1xi32>
    %8 = vector.broadcast %7 : vector<16x1xi32> to vector<16x133xi32>
    %9 = arith.cmpi eq, %3, %8 : vector<16x133xi32>
    %10 = arith.ori %5, %9 : vector<16x133xi1>
    %c132_i32 = arith.constant 132 : i32
    %11 = vector.broadcast %c132_i32 : i32 to vector<16x133xi32>
    %12 = arith.cmpi eq, %3, %11 : vector<16x133xi32>
    %13 = arith.ori %10, %12 : vector<16x133xi1>
    %14 = arith.extui %13 : vector<16x133xi1> to vector<16x133xi32>
    %15 = arith.sitofp %14 : vector<16x133xi32> to vector<16x133xf32>
    %c0_1 = arith.constant 0 : index
    %c0_2 = arith.constant 0 : index
    %16 = vector.load %arg3[%c0_1, %c0_2] : memref<133x48xf32, #tpu.memory_space<vmem>>, vector<133x48xf32>
    %cst = arith.constant dense<0.000000e+00> : vector<16x48xf32>
    %17 = tpu.matmul %15, %16, %cst {dimension_numbers = #tpu.dot_dimension_numbers<[1], [0], [0], [1], [0, 0, 1, 1], [], []>} : vector<16x133xf32>, vector<133x48xf32>, vector<16x48xf32> -> vector<16x48xf32>
    %c16 = arith.constant 16 : index
    %c0_3 = arith.constant 0 : index
    %18 = vector.load %arg8[%c16, %c0_3] : memref<18x192xf32, #tpu.memory_space<vmem>>, vector<1x48xf32>
    %c17 = arith.constant 17 : index
    %c0_4 = arith.constant 0 : index
    %19 = vector.load %arg8[%c17, %c0_4] : memref<18x192xf32, #tpu.memory_space<vmem>>, vector<1x48xf32>
    %cst_5 = arith.constant dense<0.000000e+00> : vector<16xf32>
    %20 = vector.multi_reduction <add>, %17, %cst_5 [1] : vector<16x48xf32> to vector<16xf32>
    %21 = vector.shape_cast %20 : vector<16xf32> to vector<16x1xf32>
    %cst_6 = arith.constant 4.800000e+01 : f32
    %22 = vector.broadcast %cst_6 : f32 to vector<16x1xf32>
    %23 = arith.divf %21, %22 : vector<16x1xf32>
    %24 = vector.broadcast %23 : vector<16x1xf32> to vector<16x48xf32>
    %25 = arith.subf %17, %24 : vector<16x48xf32>
    %26 = arith.mulf %25, %25 : vector<16x48xf32>
    %cst_7 = arith.constant dense<0.000000e+00> : vector<16xf32>
    %27 = vector.multi_reduction <add>, %26, %cst_7 [1] : vector<16x48xf32> to vector<16xf32>
    %28 = vector.shape_cast %27 : vector<16xf32> to vector<16x1xf32>
    %cst_8 = arith.constant 4.800000e+01 : f32
    %29 = vector.broadcast %cst_8 : f32 to vector<16x1xf32>
    %30 = arith.divf %28, %29 : vector<16x1xf32>
    %cst_9 = arith.constant 9.99999996E-13 : f32
    %31 = vector.broadcast %cst_9 : f32 to vector<16x1xf32>
    %32 = arith.addf %30, %31 : vector<16x1xf32>
    %33 = math.rsqrt %32 : vector<16x1xf32>
    %34 = vector.broadcast %33 : vector<16x1xf32> to vector<16x48xf32>
    %35 = arith.mulf %25, %34 : vector<16x48xf32>
    %36 = vector.broadcast %18 : vector<1x48xf32> to vector<16x48xf32>
    %37 = arith.mulf %35, %36 : vector<16x48xf32>
    %38 = vector.broadcast %19 : vector<1x48xf32> to vector<16x48xf32>
    %39 = arith.addf %37, %38 : vector<16x48xf32>
    %c0_10 = arith.constant 0 : index
    %c0_11 = arith.constant 0 : index
    %40 = vector.load %arg2[%c0_10, %c0_11] : memref<16x16xf32, #tpu.memory_space<vmem>>, vector<16x16xf32>
    %c0_12 = arith.constant 0 : index
    %c0_13 = arith.constant 0 : index
    %41 = vector.load %arg8[%c0_12, %c0_13] : memref<18x192xf32, #tpu.memory_space<vmem>>, vector<1x144xf32>
    %c1 = arith.constant 1 : index
    %c0_14 = arith.constant 0 : index
    %42 = vector.load %arg8[%c1, %c0_14] : memref<18x192xf32, #tpu.memory_space<vmem>>, vector<1x48xf32>
    %c2 = arith.constant 2 : index
    %c0_15 = arith.constant 0 : index
    %43 = vector.load %arg8[%c2, %c0_15] : memref<18x192xf32, #tpu.memory_space<vmem>>, vector<1x192xf32>
    %c3 = arith.constant 3 : index
    %c0_16 = arith.constant 0 : index
    %44 = vector.load %arg8[%c3, %c0_16] : memref<18x192xf32, #tpu.memory_space<vmem>>, vector<1x48xf32>
    %c4 = arith.constant 4 : index
    %c0_17 = arith.constant 0 : index
    %45 = vector.load %arg8[%c4, %c0_17] : memref<18x192xf32, #tpu.memory_space<vmem>>, vector<1x48xf32>
    %c5 = arith.constant 5 : index
    %c0_18 = arith.constant 0 : index
    %46 = vector.load %arg8[%c5, %c0_18] : memref<18x192xf32, #tpu.memory_space<vmem>>, vector<1x48xf32>
    %c6 = arith.constant 6 : index
    %c0_19 = arith.constant 0 : index
    %47 = vector.load %arg8[%c6, %c0_19] : memref<18x192xf32, #tpu.memory_space<vmem>>, vector<1x48xf32>
    %c7 = arith.constant 7 : index
    %c0_20 = arith.constant 0 : index
    %48 = vector.load %arg8[%c7, %c0_20] : memref<18x192xf32, #tpu.memory_space<vmem>>, vector<1x48xf32>
    %49 = arith.truncf %39 : vector<16x48xf32> to vector<16x48xbf16>
    %c0_21 = arith.constant 0 : index
    %c0_22 = arith.constant 0 : index
    %c0_23 = arith.constant 0 : index
    %50 = vector.load %arg4[%c0_21, %c0_22, %c0_23] : memref<2x48x144xbf16, #tpu.memory_space<vmem>>, vector<1x48x144xbf16>
    %51 = vector.shape_cast %50 : vector<1x48x144xbf16> to vector<48x144xbf16>
    %cst_24 = arith.constant dense<0.000000e+00> : vector<16x144xf32>
    %52 = tpu.matmul %49, %51, %cst_24 {dimension_numbers = #tpu.dot_dimension_numbers<[1], [0], [0], [1], [0, 0, 1, 1], [], []>} : vector<16x48xbf16>, vector<48x144xbf16>, vector<16x144xf32> -> vector<16x144xf32>
    %53 = vector.broadcast %41 : vector<1x144xf32> to vector<16x144xf32>
    %54 = arith.addf %52, %53 : vector<16x144xf32>
    %55 = vector.extract_strided_slice %54 {offsets = [0, 0], sizes = [16, 8], strides = [1, 1]} : vector<16x144xf32> to vector<16x8xf32>
    %56 = arith.truncf %55 : vector<16x8xf32> to vector<16x8xbf16>
    %57 = vector.extract_strided_slice %54 {offsets = [0, 48], sizes = [16, 8], strides = [1, 1]} : vector<16x144xf32> to vector<16x8xf32>
    %58 = arith.truncf %57 : vector<16x8xf32> to vector<16x8xbf16>
    %59 = vector.extract_strided_slice %54 {offsets = [0, 96], sizes = [16, 8], strides = [1, 1]} : vector<16x144xf32> to vector<16x8xf32>
    %60 = arith.truncf %59 : vector<16x8xf32> to vector<16x8xbf16>
    %cst_25 = arith.constant dense<0.000000e+00> : vector<16x16xf32>
    %61 = tpu.matmul %56, %58, %cst_25 {dimension_numbers = #tpu.dot_dimension_numbers<[1], [1], [0], [0], [0, 0, 1, 0], [], []>} : vector<16x8xbf16>, vector<16x8xbf16>, vector<16x16xf32> -> vector<16x16xf32>
    %62 = arith.addf %61, %40 : vector<16x16xf32>
    %cst_26 = arith.constant dense<0xFF800000> : vector<16xf32>
    %63 = vector.multi_reduction <maximumf>, %62, %cst_26 [1] : vector<16x16xf32> to vector<16xf32>
    %64 = vector.shape_cast %63 : vector<16xf32> to vector<16x1xf32>
    %65 = vector.broadcast %64 : vector<16x1xf32> to vector<16x16xf32>
    %66 = arith.subf %62, %65 : vector<16x16xf32>
    %67 = math.exp %66 : vector<16x16xf32>
    %cst_27 = arith.constant dense<0.000000e+00> : vector<16xf32>
    %68 = vector.multi_reduction <add>, %67, %cst_27 [1] : vector<16x16xf32> to vector<16xf32>
    %69 = vector.shape_cast %68 : vector<16xf32> to vector<16x1xf32>
    %70 = tpu.reciprocal %69 {approx = true} : vector<16x1xf32> -> vector<16x1xf32>
    %71 = vector.broadcast %70 : vector<16x1xf32> to vector<16x16xf32>
    %72 = arith.mulf %67, %71 : vector<16x16xf32>
    %73 = arith.truncf %72 : vector<16x16xf32> to vector<16x16xbf16>
    %cst_28 = arith.constant dense<0.000000e+00> : vector<16x8xf32>
    %74 = tpu.matmul %73, %60, %cst_28 {dimension_numbers = #tpu.dot_dimension_numbers<[1], [0], [0], [1], [0, 0, 1, 1], [], []>} : vector<16x16xbf16>, vector<16x8xbf16>, vector<16x8xf32> -> vector<16x8xf32>
    %75 = vector.extract_strided_slice %54 {offsets = [0, 8], sizes = [16, 8], strides = [1, 1]} : vector<16x144xf32> to vector<16x8xf32>
    %76 = arith.truncf %75 : vector<16x8xf32> to vector<16x8xbf16>
    %77 = vector.extract_strided_slice %54 {offsets = [0, 56], sizes = [16, 8], strides = [1, 1]} : vector<16x144xf32> to vector<16x8xf32>
    %78 = arith.truncf %77 : vector<16x8xf32> to vector<16x8xbf16>
    %79 = vector.extract_strided_slice %54 {offsets = [0, 104], sizes = [16, 8], strides = [1, 1]} : vector<16x144xf32> to vector<16x8xf32>
    %80 = arith.truncf %79 : vector<16x8xf32> to vector<16x8xbf16>
    %cst_29 = arith.constant dense<0.000000e+00> : vector<16x16xf32>
    %81 = tpu.matmul %76, %78, %cst_29 {dimension_numbers = #tpu.dot_dimension_numbers<[1], [1], [0], [0], [0, 0, 1, 0], [], []>} : vector<16x8xbf16>, vector<16x8xbf16>, vector<16x16xf32> -> vector<16x16xf32>
    %82 = arith.addf %81, %40 : vector<16x16xf32>
    %cst_30 = arith.constant dense<0xFF800000> : vector<16xf32>
    %83 = vector.multi_reduction <maximumf>, %82, %cst_30 [1] : vector<16x16xf32> to vector<16xf32>
    %84 = vector.shape_cast %83 : vector<16xf32> to vector<16x1xf32>
    %85 = vector.broadcast %84 : vector<16x1xf32> to vector<16x16xf32>
    %86 = arith.subf %82, %85 : vector<16x16xf32>
    %87 = math.exp %86 : vector<16x16xf32>
    %cst_31 = arith.constant dense<0.000000e+00> : vector<16xf32>
    %88 = vector.multi_reduction <add>, %87, %cst_31 [1] : vector<16x16xf32> to vector<16xf32>
    %89 = vector.shape_cast %88 : vector<16xf32> to vector<16x1xf32>
    %90 = tpu.reciprocal %89 {approx = true} : vector<16x1xf32> -> vector<16x1xf32>
    %91 = vector.broadcast %90 : vector<16x1xf32> to vector<16x16xf32>
    %92 = arith.mulf %87, %91 : vector<16x16xf32>
    %93 = arith.truncf %92 : vector<16x16xf32> to vector<16x16xbf16>
    %cst_32 = arith.constant dense<0.000000e+00> : vector<16x8xf32>
    %94 = tpu.matmul %93, %80, %cst_32 {dimension_numbers = #tpu.dot_dimension_numbers<[1], [0], [0], [1], [0, 0, 1, 1], [], []>} : vector<16x16xbf16>, vector<16x8xbf16>, vector<16x8xf32> -> vector<16x8xf32>
    %95 = vector.extract_strided_slice %54 {offsets = [0, 16], sizes = [16, 8], strides = [1, 1]} : vector<16x144xf32> to vector<16x8xf32>
    %96 = arith.truncf %95 : vector<16x8xf32> to vector<16x8xbf16>
    %97 = vector.extract_strided_slice %54 {offsets = [0, 64], sizes = [16, 8], strides = [1, 1]} : vector<16x144xf32> to vector<16x8xf32>
    %98 = arith.truncf %97 : vector<16x8xf32> to vector<16x8xbf16>
    %99 = vector.extract_strided_slice %54 {offsets = [0, 112], sizes = [16, 8], strides = [1, 1]} : vector<16x144xf32> to vector<16x8xf32>
    %100 = arith.truncf %99 : vector<16x8xf32> to vector<16x8xbf16>
    %cst_33 = arith.constant dense<0.000000e+00> : vector<16x16xf32>
    %101 = tpu.matmul %96, %98, %cst_33 {dimension_numbers = #tpu.dot_dimension_numbers<[1], [1], [0], [0], [0, 0, 1, 0], [], []>} : vector<16x8xbf16>, vector<16x8xbf16>, vector<16x16xf32> -> vector<16x16xf32>
    %102 = arith.addf %101, %40 : vector<16x16xf32>
    %cst_34 = arith.constant dense<0xFF800000> : vector<16xf32>
    %103 = vector.multi_reduction <maximumf>, %102, %cst_34 [1] : vector<16x16xf32> to vector<16xf32>
    %104 = vector.shape_cast %103 : vector<16xf32> to vector<16x1xf32>
    %105 = vector.broadcast %104 : vector<16x1xf32> to vector<16x16xf32>
    %106 = arith.subf %102, %105 : vector<16x16xf32>
    %107 = math.exp %106 : vector<16x16xf32>
    %cst_35 = arith.constant dense<0.000000e+00> : vector<16xf32>
    %108 = vector.multi_reduction <add>, %107, %cst_35 [1] : vector<16x16xf32> to vector<16xf32>
    %109 = vector.shape_cast %108 : vector<16xf32> to vector<16x1xf32>
    %110 = tpu.reciprocal %109 {approx = true} : vector<16x1xf32> -> vector<16x1xf32>
    %111 = vector.broadcast %110 : vector<16x1xf32> to vector<16x16xf32>
    %112 = arith.mulf %107, %111 : vector<16x16xf32>
    %113 = arith.truncf %112 : vector<16x16xf32> to vector<16x16xbf16>
    %cst_36 = arith.constant dense<0.000000e+00> : vector<16x8xf32>
    %114 = tpu.matmul %113, %100, %cst_36 {dimension_numbers = #tpu.dot_dimension_numbers<[1], [0], [0], [1], [0, 0, 1, 1], [], []>} : vector<16x16xbf16>, vector<16x8xbf16>, vector<16x8xf32> -> vector<16x8xf32>
    %115 = vector.extract_strided_slice %54 {offsets = [0, 24], sizes = [16, 8], strides = [1, 1]} : vector<16x144xf32> to vector<16x8xf32>
    %116 = arith.truncf %115 : vector<16x8xf32> to vector<16x8xbf16>
    %117 = vector.extract_strided_slice %54 {offsets = [0, 72], sizes = [16, 8], strides = [1, 1]} : vector<16x144xf32> to vector<16x8xf32>
    %118 = arith.truncf %117 : vector<16x8xf32> to vector<16x8xbf16>
    %119 = vector.extract_strided_slice %54 {offsets = [0, 120], sizes = [16, 8], strides = [1, 1]} : vector<16x144xf32> to vector<16x8xf32>
    %120 = arith.truncf %119 : vector<16x8xf32> to vector<16x8xbf16>
    %cst_37 = arith.constant dense<0.000000e+00> : vector<16x16xf32>
    %121 = tpu.matmul %116, %118, %cst_37 {dimension_numbers = #tpu.dot_dimension_numbers<[1], [1], [0], [0], [0, 0, 1, 0], [], []>} : vector<16x8xbf16>, vector<16x8xbf16>, vector<16x16xf32> -> vector<16x16xf32>
    %122 = arith.addf %121, %40 : vector<16x16xf32>
    %cst_38 = arith.constant dense<0xFF800000> : vector<16xf32>
    %123 = vector.multi_reduction <maximumf>, %122, %cst_38 [1] : vector<16x16xf32> to vector<16xf32>
    %124 = vector.shape_cast %123 : vector<16xf32> to vector<16x1xf32>
    %125 = vector.broadcast %124 : vector<16x1xf32> to vector<16x16xf32>
    %126 = arith.subf %122, %125 : vector<16x16xf32>
    %127 = math.exp %126 : vector<16x16xf32>
    %cst_39 = arith.constant dense<0.000000e+00> : vector<16xf32>
    %128 = vector.multi_reduction <add>, %127, %cst_39 [1] : vector<16x16xf32> to vector<16xf32>
    %129 = vector.shape_cast %128 : vector<16xf32> to vector<16x1xf32>
    %130 = tpu.reciprocal %129 {approx = true} : vector<16x1xf32> -> vector<16x1xf32>
    %131 = vector.broadcast %130 : vector<16x1xf32> to vector<16x16xf32>
    %132 = arith.mulf %127, %131 : vector<16x16xf32>
    %133 = arith.truncf %132 : vector<16x16xf32> to vector<16x16xbf16>
    %cst_40 = arith.constant dense<0.000000e+00> : vector<16x8xf32>
    %134 = tpu.matmul %133, %120, %cst_40 {dimension_numbers = #tpu.dot_dimension_numbers<[1], [0], [0], [1], [0, 0, 1, 1], [], []>} : vector<16x16xbf16>, vector<16x8xbf16>, vector<16x8xf32> -> vector<16x8xf32>
    %135 = vector.extract_strided_slice %54 {offsets = [0, 32], sizes = [16, 8], strides = [1, 1]} : vector<16x144xf32> to vector<16x8xf32>
    %136 = arith.truncf %135 : vector<16x8xf32> to vector<16x8xbf16>
    %137 = vector.extract_strided_slice %54 {offsets = [0, 80], sizes = [16, 8], strides = [1, 1]} : vector<16x144xf32> to vector<16x8xf32>
    %138 = arith.truncf %137 : vector<16x8xf32> to vector<16x8xbf16>
    %139 = vector.extract_strided_slice %54 {offsets = [0, 128], sizes = [16, 8], strides = [1, 1]} : vector<16x144xf32> to vector<16x8xf32>
    %140 = arith.truncf %139 : vector<16x8xf32> to vector<16x8xbf16>
    %cst_41 = arith.constant dense<0.000000e+00> : vector<16x16xf32>
    %141 = tpu.matmul %136, %138, %cst_41 {dimension_numbers = #tpu.dot_dimension_numbers<[1], [1], [0], [0], [0, 0, 1, 0], [], []>} : vector<16x8xbf16>, vector<16x8xbf16>, vector<16x16xf32> -> vector<16x16xf32>
    %142 = arith.addf %141, %40 : vector<16x16xf32>
    %cst_42 = arith.constant dense<0xFF800000> : vector<16xf32>
    %143 = vector.multi_reduction <maximumf>, %142, %cst_42 [1] : vector<16x16xf32> to vector<16xf32>
    %144 = vector.shape_cast %143 : vector<16xf32> to vector<16x1xf32>
    %145 = vector.broadcast %144 : vector<16x1xf32> to vector<16x16xf32>
    %146 = arith.subf %142, %145 : vector<16x16xf32>
    %147 = math.exp %146 : vector<16x16xf32>
    %cst_43 = arith.constant dense<0.000000e+00> : vector<16xf32>
    %148 = vector.multi_reduction <add>, %147, %cst_43 [1] : vector<16x16xf32> to vector<16xf32>
    %149 = vector.shape_cast %148 : vector<16xf32> to vector<16x1xf32>
    %150 = tpu.reciprocal %149 {approx = true} : vector<16x1xf32> -> vector<16x1xf32>
    %151 = vector.broadcast %150 : vector<16x1xf32> to vector<16x16xf32>
    %152 = arith.mulf %147, %151 : vector<16x16xf32>
    %153 = arith.truncf %152 : vector<16x16xf32> to vector<16x16xbf16>
    %cst_44 = arith.constant dense<0.000000e+00> : vector<16x8xf32>
    %154 = tpu.matmul %153, %140, %cst_44 {dimension_numbers = #tpu.dot_dimension_numbers<[1], [0], [0], [1], [0, 0, 1, 1], [], []>} : vector<16x16xbf16>, vector<16x8xbf16>, vector<16x8xf32> -> vector<16x8xf32>
    %155 = vector.extract_strided_slice %54 {offsets = [0, 40], sizes = [16, 8], strides = [1, 1]} : vector<16x144xf32> to vector<16x8xf32>
    %156 = arith.truncf %155 : vector<16x8xf32> to vector<16x8xbf16>
    %157 = vector.extract_strided_slice %54 {offsets = [0, 88], sizes = [16, 8], strides = [1, 1]} : vector<16x144xf32> to vector<16x8xf32>
    %158 = arith.truncf %157 : vector<16x8xf32> to vector<16x8xbf16>
    %159 = vector.extract_strided_slice %54 {offsets = [0, 136], sizes = [16, 8], strides = [1, 1]} : vector<16x144xf32> to vector<16x8xf32>
    %160 = arith.truncf %159 : vector<16x8xf32> to vector<16x8xbf16>
    %cst_45 = arith.constant dense<0.000000e+00> : vector<16x16xf32>
    %161 = tpu.matmul %156, %158, %cst_45 {dimension_numbers = #tpu.dot_dimension_numbers<[1], [1], [0], [0], [0, 0, 1, 0], [], []>} : vector<16x8xbf16>, vector<16x8xbf16>, vector<16x16xf32> -> vector<16x16xf32>
    %162 = arith.addf %161, %40 : vector<16x16xf32>
    %cst_46 = arith.constant dense<0xFF800000> : vector<16xf32>
    %163 = vector.multi_reduction <maximumf>, %162, %cst_46 [1] : vector<16x16xf32> to vector<16xf32>
    %164 = vector.shape_cast %163 : vector<16xf32> to vector<16x1xf32>
    %165 = vector.broadcast %164 : vector<16x1xf32> to vector<16x16xf32>
    %166 = arith.subf %162, %165 : vector<16x16xf32>
    %167 = math.exp %166 : vector<16x16xf32>
    %cst_47 = arith.constant dense<0.000000e+00> : vector<16xf32>
    %168 = vector.multi_reduction <add>, %167, %cst_47 [1] : vector<16x16xf32> to vector<16xf32>
    %169 = vector.shape_cast %168 : vector<16xf32> to vector<16x1xf32>
    %170 = tpu.reciprocal %169 {approx = true} : vector<16x1xf32> -> vector<16x1xf32>
    %171 = vector.broadcast %170 : vector<16x1xf32> to vector<16x16xf32>
    %172 = arith.mulf %167, %171 : vector<16x16xf32>
    %173 = arith.truncf %172 : vector<16x16xf32> to vector<16x16xbf16>
    %cst_48 = arith.constant dense<0.000000e+00> : vector<16x8xf32>
    %174 = tpu.matmul %173, %160, %cst_48 {dimension_numbers = #tpu.dot_dimension_numbers<[1], [0], [0], [1], [0, 0, 1, 1], [], []>} : vector<16x16xbf16>, vector<16x8xbf16>, vector<16x8xf32> -> vector<16x8xf32>
    %175 = tpu.concatenate %74, %94, %114, %134, %154, %174 in 1 : vector<16x8xf32>, vector<16x8xf32>, vector<16x8xf32>, vector<16x8xf32>, vector<16x8xf32>, vector<16x8xf32> -> vector<16x48xf32>
    %176 = arith.truncf %175 : vector<16x48xf32> to vector<16x48xbf16>
    %c0_49 = arith.constant 0 : index
    %c0_50 = arith.constant 0 : index
    %c0_51 = arith.constant 0 : index
    %177 = vector.load %arg5[%c0_49, %c0_50, %c0_51] : memref<2x48x48xbf16, #tpu.memory_space<vmem>>, vector<1x48x48xbf16>
    %178 = vector.shape_cast %177 : vector<1x48x48xbf16> to vector<48x48xbf16>
    %cst_52 = arith.constant dense<0.000000e+00> : vector<16x48xf32>
    %179 = tpu.matmul %176, %178, %cst_52 {dimension_numbers = #tpu.dot_dimension_numbers<[1], [0], [0], [1], [0, 0, 1, 1], [], []>} : vector<16x48xbf16>, vector<48x48xbf16>, vector<16x48xf32> -> vector<16x48xf32>
    %180 = vector.broadcast %42 : vector<1x48xf32> to vector<16x48xf32>
    %181 = arith.addf %179, %180 : vector<16x48xf32>
    %182 = arith.addf %181, %39 : vector<16x48xf32>
    %cst_53 = arith.constant dense<0.000000e+00> : vector<16xf32>
    %183 = vector.multi_reduction <add>, %182, %cst_53 [1] : vector<16x48xf32> to vector<16xf32>
    %184 = vector.shape_cast %183 : vector<16xf32> to vector<16x1xf32>
    %cst_54 = arith.constant 4.800000e+01 : f32
    %185 = vector.broadcast %cst_54 : f32 to vector<16x1xf32>
    %186 = arith.divf %184, %185 : vector<16x1xf32>
    %187 = vector.broadcast %186 : vector<16x1xf32> to vector<16x48xf32>
    %188 = arith.subf %182, %187 : vector<16x48xf32>
    %189 = arith.mulf %188, %188 : vector<16x48xf32>
    %cst_55 = arith.constant dense<0.000000e+00> : vector<16xf32>
    %190 = vector.multi_reduction <add>, %189, %cst_55 [1] : vector<16x48xf32> to vector<16xf32>
    %191 = vector.shape_cast %190 : vector<16xf32> to vector<16x1xf32>
    %cst_56 = arith.constant 4.800000e+01 : f32
    %192 = vector.broadcast %cst_56 : f32 to vector<16x1xf32>
    %193 = arith.divf %191, %192 : vector<16x1xf32>
    %cst_57 = arith.constant 9.99999996E-13 : f32
    %194 = vector.broadcast %cst_57 : f32 to vector<16x1xf32>
    %195 = arith.addf %193, %194 : vector<16x1xf32>
    %196 = math.rsqrt %195 : vector<16x1xf32>
    %197 = vector.broadcast %196 : vector<16x1xf32> to vector<16x48xf32>
    %198 = arith.mulf %188, %197 : vector<16x48xf32>
    %199 = vector.broadcast %45 : vector<1x48xf32> to vector<16x48xf32>
    %200 = arith.mulf %198, %199 : vector<16x48xf32>
    %201 = vector.broadcast %46 : vector<1x48xf32> to vector<16x48xf32>
    %202 = arith.addf %200, %201 : vector<16x48xf32>
    %203 = arith.truncf %202 : vector<16x48xf32> to vector<16x48xbf16>
    %c0_58 = arith.constant 0 : index
    %c0_59 = arith.constant 0 : index
    %c0_60 = arith.constant 0 : index
    %204 = vector.load %arg6[%c0_58, %c0_59, %c0_60] : memref<2x48x192xbf16, #tpu.memory_space<vmem>>, vector<1x48x192xbf16>
    %205 = vector.shape_cast %204 : vector<1x48x192xbf16> to vector<48x192xbf16>
    %cst_61 = arith.constant dense<0.000000e+00> : vector<16x192xf32>
    %206 = tpu.matmul %203, %205, %cst_61 {dimension_numbers = #tpu.dot_dimension_numbers<[1], [0], [0], [1], [0, 0, 1, 1], [], []>} : vector<16x48xbf16>, vector<48x192xbf16>, vector<16x192xf32> -> vector<16x192xf32>
    %207 = vector.broadcast %43 : vector<1x192xf32> to vector<16x192xf32>
    %208 = arith.addf %206, %207 : vector<16x192xf32>
    %cst_62 = arith.constant 5.000000e-01 : f32
    %209 = vector.broadcast %cst_62 : f32 to vector<16x192xf32>
    %210 = arith.mulf %209, %208 : vector<16x192xf32>
    %cst_63 = arith.constant 0.707106769 : f32
    %211 = vector.broadcast %cst_63 : f32 to vector<16x192xf32>
    %212 = arith.mulf %208, %211 : vector<16x192xf32>
    %213 = math.erf %212 : vector<16x192xf32>
    %cst_64 = arith.constant 1.000000e+00 : f32
    %214 = vector.broadcast %cst_64 : f32 to vector<16x192xf32>
    %215 = arith.addf %214, %213 : vector<16x192xf32>
    %216 = arith.mulf %210, %215 : vector<16x192xf32>
    %217 = arith.truncf %216 : vector<16x192xf32> to vector<16x192xbf16>
    %c0_65 = arith.constant 0 : index
    %c0_66 = arith.constant 0 : index
    %c0_67 = arith.constant 0 : index
    %218 = vector.load %arg7[%c0_65, %c0_66, %c0_67] : memref<2x192x48xbf16, #tpu.memory_space<vmem>>, vector<1x192x48xbf16>
    %219 = vector.shape_cast %218 : vector<1x192x48xbf16> to vector<192x48xbf16>
    %cst_68 = arith.constant dense<0.000000e+00> : vector<16x48xf32>
    %220 = tpu.matmul %217, %219, %cst_68 {dimension_numbers = #tpu.dot_dimension_numbers<[1], [0], [0], [1], [0, 0, 1, 1], [], []>} : vector<16x192xbf16>, vector<192x48xbf16>, vector<16x48xf32> -> vector<16x48xf32>
    %221 = vector.broadcast %44 : vector<1x48xf32> to vector<16x48xf32>
    %222 = arith.addf %220, %221 : vector<16x48xf32>
    %223 = arith.addf %222, %202 : vector<16x48xf32>
    %cst_69 = arith.constant dense<0.000000e+00> : vector<16xf32>
    %224 = vector.multi_reduction <add>, %223, %cst_69 [1] : vector<16x48xf32> to vector<16xf32>
    %225 = vector.shape_cast %224 : vector<16xf32> to vector<16x1xf32>
    %cst_70 = arith.constant 4.800000e+01 : f32
    %226 = vector.broadcast %cst_70 : f32 to vector<16x1xf32>
    %227 = arith.divf %225, %226 : vector<16x1xf32>
    %228 = vector.broadcast %227 : vector<16x1xf32> to vector<16x48xf32>
    %229 = arith.subf %223, %228 : vector<16x48xf32>
    %230 = arith.mulf %229, %229 : vector<16x48xf32>
    %cst_71 = arith.constant dense<0.000000e+00> : vector<16xf32>
    %231 = vector.multi_reduction <add>, %230, %cst_71 [1] : vector<16x48xf32> to vector<16xf32>
    %232 = vector.shape_cast %231 : vector<16xf32> to vector<16x1xf32>
    %cst_72 = arith.constant 4.800000e+01 : f32
    %233 = vector.broadcast %cst_72 : f32 to vector<16x1xf32>
    %234 = arith.divf %232, %233 : vector<16x1xf32>
    %cst_73 = arith.constant 9.99999996E-13 : f32
    %235 = vector.broadcast %cst_73 : f32 to vector<16x1xf32>
    %236 = arith.addf %234, %235 : vector<16x1xf32>
    %237 = math.rsqrt %236 : vector<16x1xf32>
    %238 = vector.broadcast %237 : vector<16x1xf32> to vector<16x48xf32>
    %239 = arith.mulf %229, %238 : vector<16x48xf32>
    %240 = vector.broadcast %47 : vector<1x48xf32> to vector<16x48xf32>
    %241 = arith.mulf %239, %240 : vector<16x48xf32>
    %242 = vector.broadcast %48 : vector<1x48xf32> to vector<16x48xf32>
    %243 = arith.addf %241, %242 : vector<16x48xf32>
    %c8 = arith.constant 8 : index
    %c0_74 = arith.constant 0 : index
    %244 = vector.load %arg8[%c8, %c0_74] : memref<18x192xf32, #tpu.memory_space<vmem>>, vector<1x144xf32>
    %c9 = arith.constant 9 : index
    %c0_75 = arith.constant 0 : index
    %245 = vector.load %arg8[%c9, %c0_75] : memref<18x192xf32, #tpu.memory_space<vmem>>, vector<1x48xf32>
    %c10 = arith.constant 10 : index
    %c0_76 = arith.constant 0 : index
    %246 = vector.load %arg8[%c10, %c0_76] : memref<18x192xf32, #tpu.memory_space<vmem>>, vector<1x192xf32>
    %c11 = arith.constant 11 : index
    %c0_77 = arith.constant 0 : index
    %247 = vector.load %arg8[%c11, %c0_77] : memref<18x192xf32, #tpu.memory_space<vmem>>, vector<1x48xf32>
    %c12 = arith.constant 12 : index
    %c0_78 = arith.constant 0 : index
    %248 = vector.load %arg8[%c12, %c0_78] : memref<18x192xf32, #tpu.memory_space<vmem>>, vector<1x48xf32>
    %c13 = arith.constant 13 : index
    %c0_79 = arith.constant 0 : index
    %249 = vector.load %arg8[%c13, %c0_79] : memref<18x192xf32, #tpu.memory_space<vmem>>, vector<1x48xf32>
    %c14 = arith.constant 14 : index
    %c0_80 = arith.constant 0 : index
    %250 = vector.load %arg8[%c14, %c0_80] : memref<18x192xf32, #tpu.memory_space<vmem>>, vector<1x48xf32>
    %c15 = arith.constant 15 : index
    %c0_81 = arith.constant 0 : index
    %251 = vector.load %arg8[%c15, %c0_81] : memref<18x192xf32, #tpu.memory_space<vmem>>, vector<1x48xf32>
    %252 = arith.truncf %243 : vector<16x48xf32> to vector<16x48xbf16>
    %c1_82 = arith.constant 1 : index
    %c0_83 = arith.constant 0 : index
    %c0_84 = arith.constant 0 : index
    %253 = vector.load %arg4[%c1_82, %c0_83, %c0_84] : memref<2x48x144xbf16, #tpu.memory_space<vmem>>, vector<1x48x144xbf16>
    %254 = vector.shape_cast %253 : vector<1x48x144xbf16> to vector<48x144xbf16>
    %cst_85 = arith.constant dense<0.000000e+00> : vector<16x144xf32>
    %255 = tpu.matmul %252, %254, %cst_85 {dimension_numbers = #tpu.dot_dimension_numbers<[1], [0], [0], [1], [0, 0, 1, 1], [], []>} : vector<16x48xbf16>, vector<48x144xbf16>, vector<16x144xf32> -> vector<16x144xf32>
    %256 = vector.broadcast %244 : vector<1x144xf32> to vector<16x144xf32>
    %257 = arith.addf %255, %256 : vector<16x144xf32>
    %258 = vector.extract_strided_slice %257 {offsets = [0, 0], sizes = [16, 8], strides = [1, 1]} : vector<16x144xf32> to vector<16x8xf32>
    %259 = arith.truncf %258 : vector<16x8xf32> to vector<16x8xbf16>
    %260 = vector.extract_strided_slice %257 {offsets = [0, 48], sizes = [16, 8], strides = [1, 1]} : vector<16x144xf32> to vector<16x8xf32>
    %261 = arith.truncf %260 : vector<16x8xf32> to vector<16x8xbf16>
    %262 = vector.extract_strided_slice %257 {offsets = [0, 96], sizes = [16, 8], strides = [1, 1]} : vector<16x144xf32> to vector<16x8xf32>
    %263 = arith.truncf %262 : vector<16x8xf32> to vector<16x8xbf16>
    %cst_86 = arith.constant dense<0.000000e+00> : vector<16x16xf32>
    %264 = tpu.matmul %259, %261, %cst_86 {dimension_numbers = #tpu.dot_dimension_numbers<[1], [1], [0], [0], [0, 0, 1, 0], [], []>} : vector<16x8xbf16>, vector<16x8xbf16>, vector<16x16xf32> -> vector<16x16xf32>
    %265 = arith.addf %264, %40 : vector<16x16xf32>
    %cst_87 = arith.constant dense<0xFF800000> : vector<16xf32>
    %266 = vector.multi_reduction <maximumf>, %265, %cst_87 [1] : vector<16x16xf32> to vector<16xf32>
    %267 = vector.shape_cast %266 : vector<16xf32> to vector<16x1xf32>
    %268 = vector.broadcast %267 : vector<16x1xf32> to vector<16x16xf32>
    %269 = arith.subf %265, %268 : vector<16x16xf32>
    %270 = math.exp %269 : vector<16x16xf32>
    %cst_88 = arith.constant dense<0.000000e+00> : vector<16xf32>
    %271 = vector.multi_reduction <add>, %270, %cst_88 [1] : vector<16x16xf32> to vector<16xf32>
    %272 = vector.shape_cast %271 : vector<16xf32> to vector<16x1xf32>
    %273 = tpu.reciprocal %272 {approx = true} : vector<16x1xf32> -> vector<16x1xf32>
    %274 = vector.broadcast %273 : vector<16x1xf32> to vector<16x16xf32>
    %275 = arith.mulf %270, %274 : vector<16x16xf32>
    %276 = arith.truncf %275 : vector<16x16xf32> to vector<16x16xbf16>
    %cst_89 = arith.constant dense<0.000000e+00> : vector<16x8xf32>
    %277 = tpu.matmul %276, %263, %cst_89 {dimension_numbers = #tpu.dot_dimension_numbers<[1], [0], [0], [1], [0, 0, 1, 1], [], []>} : vector<16x16xbf16>, vector<16x8xbf16>, vector<16x8xf32> -> vector<16x8xf32>
    %278 = vector.extract_strided_slice %257 {offsets = [0, 8], sizes = [16, 8], strides = [1, 1]} : vector<16x144xf32> to vector<16x8xf32>
    %279 = arith.truncf %278 : vector<16x8xf32> to vector<16x8xbf16>
    %280 = vector.extract_strided_slice %257 {offsets = [0, 56], sizes = [16, 8], strides = [1, 1]} : vector<16x144xf32> to vector<16x8xf32>
    %281 = arith.truncf %280 : vector<16x8xf32> to vector<16x8xbf16>
    %282 = vector.extract_strided_slice %257 {offsets = [0, 104], sizes = [16, 8], strides = [1, 1]} : vector<16x144xf32> to vector<16x8xf32>
    %283 = arith.truncf %282 : vector<16x8xf32> to vector<16x8xbf16>
    %cst_90 = arith.constant dense<0.000000e+00> : vector<16x16xf32>
    %284 = tpu.matmul %279, %281, %cst_90 {dimension_numbers = #tpu.dot_dimension_numbers<[1], [1], [0], [0], [0, 0, 1, 0], [], []>} : vector<16x8xbf16>, vector<16x8xbf16>, vector<16x16xf32> -> vector<16x16xf32>
    %285 = arith.addf %284, %40 : vector<16x16xf32>
    %cst_91 = arith.constant dense<0xFF800000> : vector<16xf32>
    %286 = vector.multi_reduction <maximumf>, %285, %cst_91 [1] : vector<16x16xf32> to vector<16xf32>
    %287 = vector.shape_cast %286 : vector<16xf32> to vector<16x1xf32>
    %288 = vector.broadcast %287 : vector<16x1xf32> to vector<16x16xf32>
    %289 = arith.subf %285, %288 : vector<16x16xf32>
    %290 = math.exp %289 : vector<16x16xf32>
    %cst_92 = arith.constant dense<0.000000e+00> : vector<16xf32>
    %291 = vector.multi_reduction <add>, %290, %cst_92 [1] : vector<16x16xf32> to vector<16xf32>
    %292 = vector.shape_cast %291 : vector<16xf32> to vector<16x1xf32>
    %293 = tpu.reciprocal %292 {approx = true} : vector<16x1xf32> -> vector<16x1xf32>
    %294 = vector.broadcast %293 : vector<16x1xf32> to vector<16x16xf32>
    %295 = arith.mulf %290, %294 : vector<16x16xf32>
    %296 = arith.truncf %295 : vector<16x16xf32> to vector<16x16xbf16>
    %cst_93 = arith.constant dense<0.000000e+00> : vector<16x8xf32>
    %297 = tpu.matmul %296, %283, %cst_93 {dimension_numbers = #tpu.dot_dimension_numbers<[1], [0], [0], [1], [0, 0, 1, 1], [], []>} : vector<16x16xbf16>, vector<16x8xbf16>, vector<16x8xf32> -> vector<16x8xf32>
    %298 = vector.extract_strided_slice %257 {offsets = [0, 16], sizes = [16, 8], strides = [1, 1]} : vector<16x144xf32> to vector<16x8xf32>
    %299 = arith.truncf %298 : vector<16x8xf32> to vector<16x8xbf16>
    %300 = vector.extract_strided_slice %257 {offsets = [0, 64], sizes = [16, 8], strides = [1, 1]} : vector<16x144xf32> to vector<16x8xf32>
    %301 = arith.truncf %300 : vector<16x8xf32> to vector<16x8xbf16>
    %302 = vector.extract_strided_slice %257 {offsets = [0, 112], sizes = [16, 8], strides = [1, 1]} : vector<16x144xf32> to vector<16x8xf32>
    %303 = arith.truncf %302 : vector<16x8xf32> to vector<16x8xbf16>
    %cst_94 = arith.constant dense<0.000000e+00> : vector<16x16xf32>
    %304 = tpu.matmul %299, %301, %cst_94 {dimension_numbers = #tpu.dot_dimension_numbers<[1], [1], [0], [0], [0, 0, 1, 0], [], []>} : vector<16x8xbf16>, vector<16x8xbf16>, vector<16x16xf32> -> vector<16x16xf32>
    %305 = arith.addf %304, %40 : vector<16x16xf32>
    %cst_95 = arith.constant dense<0xFF800000> : vector<16xf32>
    %306 = vector.multi_reduction <maximumf>, %305, %cst_95 [1] : vector<16x16xf32> to vector<16xf32>
    %307 = vector.shape_cast %306 : vector<16xf32> to vector<16x1xf32>
    %308 = vector.broadcast %307 : vector<16x1xf32> to vector<16x16xf32>
    %309 = arith.subf %305, %308 : vector<16x16xf32>
    %310 = math.exp %309 : vector<16x16xf32>
    %cst_96 = arith.constant dense<0.000000e+00> : vector<16xf32>
    %311 = vector.multi_reduction <add>, %310, %cst_96 [1] : vector<16x16xf32> to vector<16xf32>
    %312 = vector.shape_cast %311 : vector<16xf32> to vector<16x1xf32>
    %313 = tpu.reciprocal %312 {approx = true} : vector<16x1xf32> -> vector<16x1xf32>
    %314 = vector.broadcast %313 : vector<16x1xf32> to vector<16x16xf32>
    %315 = arith.mulf %310, %314 : vector<16x16xf32>
    %316 = arith.truncf %315 : vector<16x16xf32> to vector<16x16xbf16>
    %cst_97 = arith.constant dense<0.000000e+00> : vector<16x8xf32>
    %317 = tpu.matmul %316, %303, %cst_97 {dimension_numbers = #tpu.dot_dimension_numbers<[1], [0], [0], [1], [0, 0, 1, 1], [], []>} : vector<16x16xbf16>, vector<16x8xbf16>, vector<16x8xf32> -> vector<16x8xf32>
    %318 = vector.extract_strided_slice %257 {offsets = [0, 24], sizes = [16, 8], strides = [1, 1]} : vector<16x144xf32> to vector<16x8xf32>
    %319 = arith.truncf %318 : vector<16x8xf32> to vector<16x8xbf16>
    %320 = vector.extract_strided_slice %257 {offsets = [0, 72], sizes = [16, 8], strides = [1, 1]} : vector<16x144xf32> to vector<16x8xf32>
    %321 = arith.truncf %320 : vector<16x8xf32> to vector<16x8xbf16>
    %322 = vector.extract_strided_slice %257 {offsets = [0, 120], sizes = [16, 8], strides = [1, 1]} : vector<16x144xf32> to vector<16x8xf32>
    %323 = arith.truncf %322 : vector<16x8xf32> to vector<16x8xbf16>
    %cst_98 = arith.constant dense<0.000000e+00> : vector<16x16xf32>
    %324 = tpu.matmul %319, %321, %cst_98 {dimension_numbers = #tpu.dot_dimension_numbers<[1], [1], [0], [0], [0, 0, 1, 0], [], []>} : vector<16x8xbf16>, vector<16x8xbf16>, vector<16x16xf32> -> vector<16x16xf32>
    %325 = arith.addf %324, %40 : vector<16x16xf32>
    %cst_99 = arith.constant dense<0xFF800000> : vector<16xf32>
    %326 = vector.multi_reduction <maximumf>, %325, %cst_99 [1] : vector<16x16xf32> to vector<16xf32>
    %327 = vector.shape_cast %326 : vector<16xf32> to vector<16x1xf32>
    %328 = vector.broadcast %327 : vector<16x1xf32> to vector<16x16xf32>
    %329 = arith.subf %325, %328 : vector<16x16xf32>
    %330 = math.exp %329 : vector<16x16xf32>
    %cst_100 = arith.constant dense<0.000000e+00> : vector<16xf32>
    %331 = vector.multi_reduction <add>, %330, %cst_100 [1] : vector<16x16xf32> to vector<16xf32>
    %332 = vector.shape_cast %331 : vector<16xf32> to vector<16x1xf32>
    %333 = tpu.reciprocal %332 {approx = true} : vector<16x1xf32> -> vector<16x1xf32>
    %334 = vector.broadcast %333 : vector<16x1xf32> to vector<16x16xf32>
    %335 = arith.mulf %330, %334 : vector<16x16xf32>
    %336 = arith.truncf %335 : vector<16x16xf32> to vector<16x16xbf16>
    %cst_101 = arith.constant dense<0.000000e+00> : vector<16x8xf32>
    %337 = tpu.matmul %336, %323, %cst_101 {dimension_numbers = #tpu.dot_dimension_numbers<[1], [0], [0], [1], [0, 0, 1, 1], [], []>} : vector<16x16xbf16>, vector<16x8xbf16>, vector<16x8xf32> -> vector<16x8xf32>
    %338 = vector.extract_strided_slice %257 {offsets = [0, 32], sizes = [16, 8], strides = [1, 1]} : vector<16x144xf32> to vector<16x8xf32>
    %339 = arith.truncf %338 : vector<16x8xf32> to vector<16x8xbf16>
    %340 = vector.extract_strided_slice %257 {offsets = [0, 80], sizes = [16, 8], strides = [1, 1]} : vector<16x144xf32> to vector<16x8xf32>
    %341 = arith.truncf %340 : vector<16x8xf32> to vector<16x8xbf16>
    %342 = vector.extract_strided_slice %257 {offsets = [0, 128], sizes = [16, 8], strides = [1, 1]} : vector<16x144xf32> to vector<16x8xf32>
    %343 = arith.truncf %342 : vector<16x8xf32> to vector<16x8xbf16>
    %cst_102 = arith.constant dense<0.000000e+00> : vector<16x16xf32>
    %344 = tpu.matmul %339, %341, %cst_102 {dimension_numbers = #tpu.dot_dimension_numbers<[1], [1], [0], [0], [0, 0, 1, 0], [], []>} : vector<16x8xbf16>, vector<16x8xbf16>, vector<16x16xf32> -> vector<16x16xf32>
    %345 = arith.addf %344, %40 : vector<16x16xf32>
    %cst_103 = arith.constant dense<0xFF800000> : vector<16xf32>
    %346 = vector.multi_reduction <maximumf>, %345, %cst_103 [1] : vector<16x16xf32> to vector<16xf32>
    %347 = vector.shape_cast %346 : vector<16xf32> to vector<16x1xf32>
    %348 = vector.broadcast %347 : vector<16x1xf32> to vector<16x16xf32>
    %349 = arith.subf %345, %348 : vector<16x16xf32>
    %350 = math.exp %349 : vector<16x16xf32>
    %cst_104 = arith.constant dense<0.000000e+00> : vector<16xf32>
    %351 = vector.multi_reduction <add>, %350, %cst_104 [1] : vector<16x16xf32> to vector<16xf32>
    %352 = vector.shape_cast %351 : vector<16xf32> to vector<16x1xf32>
    %353 = tpu.reciprocal %352 {approx = true} : vector<16x1xf32> -> vector<16x1xf32>
    %354 = vector.broadcast %353 : vector<16x1xf32> to vector<16x16xf32>
    %355 = arith.mulf %350, %354 : vector<16x16xf32>
    %356 = arith.truncf %355 : vector<16x16xf32> to vector<16x16xbf16>
    %cst_105 = arith.constant dense<0.000000e+00> : vector<16x8xf32>
    %357 = tpu.matmul %356, %343, %cst_105 {dimension_numbers = #tpu.dot_dimension_numbers<[1], [0], [0], [1], [0, 0, 1, 1], [], []>} : vector<16x16xbf16>, vector<16x8xbf16>, vector<16x8xf32> -> vector<16x8xf32>
    %358 = vector.extract_strided_slice %257 {offsets = [0, 40], sizes = [16, 8], strides = [1, 1]} : vector<16x144xf32> to vector<16x8xf32>
    %359 = arith.truncf %358 : vector<16x8xf32> to vector<16x8xbf16>
    %360 = vector.extract_strided_slice %257 {offsets = [0, 88], sizes = [16, 8], strides = [1, 1]} : vector<16x144xf32> to vector<16x8xf32>
    %361 = arith.truncf %360 : vector<16x8xf32> to vector<16x8xbf16>
    %362 = vector.extract_strided_slice %257 {offsets = [0, 136], sizes = [16, 8], strides = [1, 1]} : vector<16x144xf32> to vector<16x8xf32>
    %363 = arith.truncf %362 : vector<16x8xf32> to vector<16x8xbf16>
    %cst_106 = arith.constant dense<0.000000e+00> : vector<16x16xf32>
    %364 = tpu.matmul %359, %361, %cst_106 {dimension_numbers = #tpu.dot_dimension_numbers<[1], [1], [0], [0], [0, 0, 1, 0], [], []>} : vector<16x8xbf16>, vector<16x8xbf16>, vector<16x16xf32> -> vector<16x16xf32>
    %365 = arith.addf %364, %40 : vector<16x16xf32>
    %cst_107 = arith.constant dense<0xFF800000> : vector<16xf32>
    %366 = vector.multi_reduction <maximumf>, %365, %cst_107 [1] : vector<16x16xf32> to vector<16xf32>
    %367 = vector.shape_cast %366 : vector<16xf32> to vector<16x1xf32>
    %368 = vector.broadcast %367 : vector<16x1xf32> to vector<16x16xf32>
    %369 = arith.subf %365, %368 : vector<16x16xf32>
    %370 = math.exp %369 : vector<16x16xf32>
    %cst_108 = arith.constant dense<0.000000e+00> : vector<16xf32>
    %371 = vector.multi_reduction <add>, %370, %cst_108 [1] : vector<16x16xf32> to vector<16xf32>
    %372 = vector.shape_cast %371 : vector<16xf32> to vector<16x1xf32>
    %373 = tpu.reciprocal %372 {approx = true} : vector<16x1xf32> -> vector<16x1xf32>
    %374 = vector.broadcast %373 : vector<16x1xf32> to vector<16x16xf32>
    %375 = arith.mulf %370, %374 : vector<16x16xf32>
    %376 = arith.truncf %375 : vector<16x16xf32> to vector<16x16xbf16>
    %cst_109 = arith.constant dense<0.000000e+00> : vector<16x8xf32>
    %377 = tpu.matmul %376, %363, %cst_109 {dimension_numbers = #tpu.dot_dimension_numbers<[1], [0], [0], [1], [0, 0, 1, 1], [], []>} : vector<16x16xbf16>, vector<16x8xbf16>, vector<16x8xf32> -> vector<16x8xf32>
    %378 = tpu.concatenate %277, %297, %317, %337, %357, %377 in 1 : vector<16x8xf32>, vector<16x8xf32>, vector<16x8xf32>, vector<16x8xf32>, vector<16x8xf32>, vector<16x8xf32> -> vector<16x48xf32>
    %379 = arith.truncf %378 : vector<16x48xf32> to vector<16x48xbf16>
    %c1_110 = arith.constant 1 : index
    %c0_111 = arith.constant 0 : index
    %c0_112 = arith.constant 0 : index
    %380 = vector.load %arg5[%c1_110, %c0_111, %c0_112] : memref<2x48x48xbf16, #tpu.memory_space<vmem>>, vector<1x48x48xbf16>
    %381 = vector.shape_cast %380 : vector<1x48x48xbf16> to vector<48x48xbf16>
    %cst_113 = arith.constant dense<0.000000e+00> : vector<16x48xf32>
    %382 = tpu.matmul %379, %381, %cst_113 {dimension_numbers = #tpu.dot_dimension_numbers<[1], [0], [0], [1], [0, 0, 1, 1], [], []>} : vector<16x48xbf16>, vector<48x48xbf16>, vector<16x48xf32> -> vector<16x48xf32>
    %383 = vector.broadcast %245 : vector<1x48xf32> to vector<16x48xf32>
    %384 = arith.addf %382, %383 : vector<16x48xf32>
    %385 = arith.addf %384, %243 : vector<16x48xf32>
    %cst_114 = arith.constant dense<0.000000e+00> : vector<16xf32>
    %386 = vector.multi_reduction <add>, %385, %cst_114 [1] : vector<16x48xf32> to vector<16xf32>
    %387 = vector.shape_cast %386 : vector<16xf32> to vector<16x1xf32>
    %cst_115 = arith.constant 4.800000e+01 : f32
    %388 = vector.broadcast %cst_115 : f32 to vector<16x1xf32>
    %389 = arith.divf %387, %388 : vector<16x1xf32>
    %390 = vector.broadcast %389 : vector<16x1xf32> to vector<16x48xf32>
    %391 = arith.subf %385, %390 : vector<16x48xf32>
    %392 = arith.mulf %391, %391 : vector<16x48xf32>
    %cst_116 = arith.constant dense<0.000000e+00> : vector<16xf32>
    %393 = vector.multi_reduction <add>, %392, %cst_116 [1] : vector<16x48xf32> to vector<16xf32>
    %394 = vector.shape_cast %393 : vector<16xf32> to vector<16x1xf32>
    %cst_117 = arith.constant 4.800000e+01 : f32
    %395 = vector.broadcast %cst_117 : f32 to vector<16x1xf32>
    %396 = arith.divf %394, %395 : vector<16x1xf32>
    %cst_118 = arith.constant 9.99999996E-13 : f32
    %397 = vector.broadcast %cst_118 : f32 to vector<16x1xf32>
    %398 = arith.addf %396, %397 : vector<16x1xf32>
    %399 = math.rsqrt %398 : vector<16x1xf32>
    %400 = vector.broadcast %399 : vector<16x1xf32> to vector<16x48xf32>
    %401 = arith.mulf %391, %400 : vector<16x48xf32>
    %402 = vector.broadcast %248 : vector<1x48xf32> to vector<16x48xf32>
    %403 = arith.mulf %401, %402 : vector<16x48xf32>
    %404 = vector.broadcast %249 : vector<1x48xf32> to vector<16x48xf32>
    %405 = arith.addf %403, %404 : vector<16x48xf32>
    %406 = arith.truncf %405 : vector<16x48xf32> to vector<16x48xbf16>
    %c1_119 = arith.constant 1 : index
    %c0_120 = arith.constant 0 : index
    %c0_121 = arith.constant 0 : index
    %407 = vector.load %arg6[%c1_119, %c0_120, %c0_121] : memref<2x48x192xbf16, #tpu.memory_space<vmem>>, vector<1x48x192xbf16>
    %408 = vector.shape_cast %407 : vector<1x48x192xbf16> to vector<48x192xbf16>
    %cst_122 = arith.constant dense<0.000000e+00> : vector<16x192xf32>
    %409 = tpu.matmul %406, %408, %cst_122 {dimension_numbers = #tpu.dot_dimension_numbers<[1], [0], [0], [1], [0, 0, 1, 1], [], []>} : vector<16x48xbf16>, vector<48x192xbf16>, vector<16x192xf32> -> vector<16x192xf32>
    %410 = vector.broadcast %246 : vector<1x192xf32> to vector<16x192xf32>
    %411 = arith.addf %409, %410 : vector<16x192xf32>
    %cst_123 = arith.constant 5.000000e-01 : f32
    %412 = vector.broadcast %cst_123 : f32 to vector<16x192xf32>
    %413 = arith.mulf %412, %411 : vector<16x192xf32>
    %cst_124 = arith.constant 0.707106769 : f32
    %414 = vector.broadcast %cst_124 : f32 to vector<16x192xf32>
    %415 = arith.mulf %411, %414 : vector<16x192xf32>
    %416 = math.erf %415 : vector<16x192xf32>
    %cst_125 = arith.constant 1.000000e+00 : f32
    %417 = vector.broadcast %cst_125 : f32 to vector<16x192xf32>
    %418 = arith.addf %417, %416 : vector<16x192xf32>
    %419 = arith.mulf %413, %418 : vector<16x192xf32>
    %420 = arith.truncf %419 : vector<16x192xf32> to vector<16x192xbf16>
    %c1_126 = arith.constant 1 : index
    %c0_127 = arith.constant 0 : index
    %c0_128 = arith.constant 0 : index
    %421 = vector.load %arg7[%c1_126, %c0_127, %c0_128] : memref<2x192x48xbf16, #tpu.memory_space<vmem>>, vector<1x192x48xbf16>
    %422 = vector.shape_cast %421 : vector<1x192x48xbf16> to vector<192x48xbf16>
    %cst_129 = arith.constant dense<0.000000e+00> : vector<16x48xf32>
    %423 = tpu.matmul %420, %422, %cst_129 {dimension_numbers = #tpu.dot_dimension_numbers<[1], [0], [0], [1], [0, 0, 1, 1], [], []>} : vector<16x192xbf16>, vector<192x48xbf16>, vector<16x48xf32> -> vector<16x48xf32>
    %424 = vector.broadcast %247 : vector<1x48xf32> to vector<16x48xf32>
    %425 = arith.addf %423, %424 : vector<16x48xf32>
    %426 = arith.addf %425, %405 : vector<16x48xf32>
    %cst_130 = arith.constant dense<0.000000e+00> : vector<16xf32>
    %427 = vector.multi_reduction <add>, %426, %cst_130 [1] : vector<16x48xf32> to vector<16xf32>
    %428 = vector.shape_cast %427 : vector<16xf32> to vector<16x1xf32>
    %cst_131 = arith.constant 4.800000e+01 : f32
    %429 = vector.broadcast %cst_131 : f32 to vector<16x1xf32>
    %430 = arith.divf %428, %429 : vector<16x1xf32>
    %431 = vector.broadcast %430 : vector<16x1xf32> to vector<16x48xf32>
    %432 = arith.subf %426, %431 : vector<16x48xf32>
    %433 = arith.mulf %432, %432 : vector<16x48xf32>
    %cst_132 = arith.constant dense<0.000000e+00> : vector<16xf32>
    %434 = vector.multi_reduction <add>, %433, %cst_132 [1] : vector<16x48xf32> to vector<16xf32>
    %435 = vector.shape_cast %434 : vector<16xf32> to vector<16x1xf32>
    %cst_133 = arith.constant 4.800000e+01 : f32
    %436 = vector.broadcast %cst_133 : f32 to vector<16x1xf32>
    %437 = arith.divf %435, %436 : vector<16x1xf32>
    %cst_134 = arith.constant 9.99999996E-13 : f32
    %438 = vector.broadcast %cst_134 : f32 to vector<16x1xf32>
    %439 = arith.addf %437, %438 : vector<16x1xf32>
    %440 = math.rsqrt %439 : vector<16x1xf32>
    %441 = vector.broadcast %440 : vector<16x1xf32> to vector<16x48xf32>
    %442 = arith.mulf %432, %441 : vector<16x48xf32>
    %443 = vector.broadcast %250 : vector<1x48xf32> to vector<16x48xf32>
    %444 = arith.mulf %442, %443 : vector<16x48xf32>
    %445 = vector.broadcast %251 : vector<1x48xf32> to vector<16x48xf32>
    %446 = arith.addf %444, %445 : vector<16x48xf32>
    %447 = vector.extract_strided_slice %446 {offsets = [0, 0], sizes = [8, 48], strides = [1, 1]} : vector<16x48xf32> to vector<8x48xf32>
    %cst_135 = arith.constant dense<0.000000e+00> : vector<48xf32>
    %448 = vector.multi_reduction <add>, %447, %cst_135 [0] : vector<8x48xf32> to vector<48xf32>
    %449 = vector.shape_cast %448 : vector<48xf32> to vector<1x48xf32>
    %cst_136 = arith.constant 8.000000e+00 : f32
    %450 = vector.broadcast %cst_136 : f32 to vector<1x48xf32>
    %451 = arith.divf %449, %450 : vector<1x48xf32>
    %452 = vector.extract_strided_slice %446 {offsets = [8, 0], sizes = [8, 48], strides = [1, 1]} : vector<16x48xf32> to vector<8x48xf32>
    %cst_137 = arith.constant dense<0.000000e+00> : vector<48xf32>
    %453 = vector.multi_reduction <add>, %452, %cst_137 [0] : vector<8x48xf32> to vector<48xf32>
    %454 = vector.shape_cast %453 : vector<48xf32> to vector<1x48xf32>
    %cst_138 = arith.constant 8.000000e+00 : f32
    %455 = vector.broadcast %cst_138 : f32 to vector<1x48xf32>
    %456 = arith.divf %454, %455 : vector<1x48xf32>
    %457 = tpu.concatenate %451, %456 in 0 : vector<1x48xf32>, vector<1x48xf32> -> vector<2x48xf32>
    %c0_139 = arith.constant 0 : index
    %c0_140 = arith.constant 0 : index
    %458 = vector.load %arg9[%c0_139, %c0_140] : memref<2x48xf32, #tpu.memory_space<vmem>>, vector<2x48xf32>
    tpu.vector_store %arg9[%c0_139, %c0_140], %457 {strides = array<i32>} : memref<2x48xf32, #tpu.memory_space<vmem>>, vector<2x48xf32>,
    return
  }
  func.func @transform_0(%arg0: i32) -> (i32, i32) {
    %c0_i32 = arith.constant 0 : i32
    %c0_i32_0 = arith.constant 0 : i32
    %c0_i32_1 = arith.constant 0 : i32
    return %c0_i32, %c0_i32_0 : i32, i32
  }
  func.func @transform_1(%arg0: i32) -> (i32, i32) {
    %c0_i32 = arith.constant 0 : i32
    %c0_i32_0 = arith.constant 0 : i32
    %c0_i32_1 = arith.constant 0 : i32
    return %c0_i32, %c0_i32_0 : i32, i32
  }
  func.func @transform_2(%arg0: i32) -> (i32, i32) {
    %c0_i32 = arith.constant 0 : i32
    %c0_i32_0 = arith.constant 0 : i32
    %c0_i32_1 = arith.constant 0 : i32
    return %c0_i32, %c0_i32_0 : i32, i32
  }
  func.func @transform_3(%arg0: i32) -> (i32, i32, i32) {
    %c0_i32 = arith.constant 0 : i32
    %c0_i32_0 = arith.constant 0 : i32
    %c0_i32_1 = arith.constant 0 : i32
    %c0_i32_2 = arith.constant 0 : i32
    return %c0_i32, %c0_i32_0, %c0_i32_1 : i32, i32, i32
  }
  func.func @transform_4(%arg0: i32) -> (i32, i32, i32) {
    %c0_i32 = arith.constant 0 : i32
    %c0_i32_0 = arith.constant 0 : i32
    %c0_i32_1 = arith.constant 0 : i32
    %c0_i32_2 = arith.constant 0 : i32
    return %c0_i32, %c0_i32_0, %c0_i32_1 : i32, i32, i32
  }
  func.func @transform_5(%arg0: i32) -> (i32, i32, i32) {
    %c0_i32 = arith.constant 0 : i32
    %c0_i32_0 = arith.constant 0 : i32
    %c0_i32_1 = arith.constant 0 : i32
    %c0_i32_2 = arith.constant 0 : i32
    return %c0_i32, %c0_i32_0, %c0_i32_1 : i32, i32, i32
  }
  func.func @transform_6(%arg0: i32) -> (i32, i32, i32) {
    %c0_i32 = arith.constant 0 : i32
    %c0_i32_0 = arith.constant 0 : i32
    %c0_i32_1 = arith.constant 0 : i32
    %c0_i32_2 = arith.constant 0 : i32
    return %c0_i32, %c0_i32_0, %c0_i32_1 : i32, i32, i32
  }
  func.func @transform_7(%arg0: i32) -> (i32, i32) {
    %c0_i32 = arith.constant 0 : i32
    %c0_i32_0 = arith.constant 0 : i32
    %c0_i32_1 = arith.constant 0 : i32
    return %c0_i32, %c0_i32_0 : i32, i32
  }
  func.func @transform_8(%arg0: i32) -> (i32, i32) {
    %c0_i32 = arith.constant 0 : i32
    %c0_i32_0 = arith.constant 0 : i32
    %c0_i32_1 = arith.constant 0 : i32
    return %c0_i32, %c0_i32_0 : i32, i32
  }
}

</mosaic_0001>

<llo_original>
// kernel: cornbert_forward.1
$region0: #{cornbert_forward.1}
  #allocation0 [shape = 'u32[]', space=smem, size = 0x4, offset = 0x4, fixed_abs, tag = 'smem constant byte address 0x4 - core index']
  #allocation1 [shape = 'u32[72,128]{1,0:T(1,128)}', space=vmem, size = 0x9000, scoped, tag = 'internal scratch']
  %s0 = inlined_call_operand.vmem [shape: s32[16,2], index: 0, kind: input, shape index: {}]
  %s1 = inlined_call_operand.vmem [shape: f32[16,16], index: 1, kind: input, shape index: {}]
  %s2 = inlined_call_operand.vmem [shape: f32[133,48], index: 2, kind: input, shape index: {}]
  %s3 = inlined_call_operand.vmem [shape: bf16[2,48,144], index: 3, kind: input, shape index: {}]
  %s4 = inlined_call_operand.vmem [shape: bf16[2,48,48], index: 4, kind: input, shape index: {}]
  %s5 = inlined_call_operand.vmem [shape: bf16[2,48,192], index: 5, kind: input, shape index: {}]
  %s6 = inlined_call_operand.vmem [shape: bf16[2,192,48], index: 6, kind: input, shape index: {}]
  %s7 = inlined_call_operand.vmem [shape: f32[18,192], index: 7, kind: input, shape index: {}]
  %s8 = inlined_call_operand.hbm [shape: f32[2,48], index: 8, kind: output, shape index: {}]
  %s9 = sld [smem:[#allocation0]]
  $region42: #{cornbert_forward.1} parent=0
    _
  %s11 = ssub.s32 1, %s9
  %s12 = scalar_select 0, %s11, %s9
  $region1: #{cornbert_forward.1} parent=0
    #allocation2 [shape = 'u8[1024]{0}', space=vmem, size = 0x400, scoped, tag = 'output window, operand 0, single buffered']
    #allocation3 [shape = 's32[1]{0}', space=sflag, size = 0x4, scoped, tag = 'scoped memory for cornbert_forward.1']
    %13 = vsyncpa [#allocation3], 0
    // Predicated region
    $region2: #{cornbert_forward.1} parent=1 // pred_check
      _
    $region3: #{cornbert_forward.1} parent=1 // pred_check_branch
      %15 = sbr.rel (0) target = $region5
    $region4: #{cornbert_forward.1} parent=1 // pred_region
      _
    $region5: #{cornbert_forward.1} parent=1 // pred_fallthru
      _
    // Predicated region
    $region6: #{cornbert_forward.1} parent=1 // pred_check
      _
    $region7: #{cornbert_forward.1} parent=1 // pred_check_branch
      %17 = sbr.rel (0) target = $region9
    $region8: #{cornbert_forward.1} parent=1 // pred_region
      _
    $region9: #{cornbert_forward.1} parent=1 // pred_fallthru
      _
    // Predicated region
    $region10: #{cornbert_forward.1} parent=1 // pred_check
      _
    $region11: #{cornbert_forward.1} parent=1 // pred_check_branch
      %19 = sbr.rel (0) target = $region13
    $region12: #{cornbert_forward.1} parent=1 // pred_region
      _
    $region13: #{cornbert_forward.1} parent=1 // pred_fallthru
      _
    // Predicated region
    $region14: #{cornbert_forward.1} parent=1 // pred_check
      _
    $region15: #{cornbert_forward.1} parent=1 // pred_check_branch
      %21 = sbr.rel (0) target = $region17
    $region16: #{cornbert_forward.1} parent=1 // pred_region
      _
    $region17: #{cornbert_forward.1} parent=1 // pred_fallthru
      _
    // Predicated region
    $region18: #{cornbert_forward.1} parent=1 // pred_check
      _
    $region19: #{cornbert_forward.1} parent=1 // pred_check_branch
      %23 = sbr.rel (0) target = $region21
    $region20: #{cornbert_forward.1} parent=1 // pred_region
      _
    $region21: #{cornbert_forward.1} parent=1 // pred_fallthru
      _
    // Predicated region
    $region22: #{cornbert_forward.1} parent=1 // pred_check
      _
    $region23: #{cornbert_forward.1} parent=1 // pred_check_branch
      %25 = sbr.rel (0) target = $region25
    $region24: #{cornbert_forward.1} parent=1 // pred_region
      _
    $region25: #{cornbert_forward.1} parent=1 // pred_fallthru
      _
    // Predicated region
    $region26: #{cornbert_forward.1} parent=1 // pred_check
      _
    $region27: #{cornbert_forward.1} parent=1 // pred_check_branch
      %27 = sbr.rel (0) target = $region29
    $region28: #{cornbert_forward.1} parent=1 // pred_region
      _
    $region29: #{cornbert_forward.1} parent=1 // pred_fallthru
      _
    // Predicated region
    $region30: #{cornbert_forward.1} parent=1 // pred_check
      _
    $region31: #{cornbert_forward.1} parent=1 // pred_check_branch
      %29 = sbr.rel (0) target = $region33
    $region32: #{cornbert_forward.1} parent=1 // pred_region
      _
    $region33: #{cornbert_forward.1} parent=1 // pred_fallthru
      _
    %v31 = vld [vmem:[%s0] sm:$0xff]
    %v32 = vld [vmem:[%s0 + $0x8] sm:$0xff]
    %v33 = vlaneseq
    %v34 = vand.u32 %v33, 127
    %v35 = vadd.s32 %v34, 128
    %36 = vset.pattern.permute.xlu0 0
    %37 = vperm.xlu0 %36, %v31
    %v38 = vpop.permute.xlu0 %37
    %39 = vset.pattern.permute.xlu0 0
    %40 = vperm.xlu0 %39, %v32
    %v41 = vpop.permute.xlu0 %40
    %vm42 = vcmp.eq.s32.totalorder %v34, %v38
    %vm43 = vcmp.eq.s32.totalorder %v35, %v38
    %vm44 = vcmp.eq.s32.totalorder %v34, %v41
    %vm45 = vcmp.eq.s32.totalorder %v35, %v41
    %v46 = vadd.s32 %v31, 100
    %v47 = vadd.s32 %v32, 100
    %48 = vset.pattern.permute.xlu0 1
    %49 = vperm.xlu0 %48, %v46
    %v50 = vpop.permute.xlu0 %49
    %51 = vset.pattern.permute.xlu0 1
    %52 = vperm.xlu0 %51, %v47
    %v53 = vpop.permute.xlu0 %52
    %vm54 = vcmp.eq.s32.totalorder %v34, %v50
    %vm55 = vcmp.eq.s32.totalorder %v35, %v50
    %vm56 = vcmp.eq.s32.totalorder %v34, %v53
    %vm57 = vcmp.eq.s32.totalorder %v35, %v53
    %vm58 = vmor %vm42, %vm54
    %vm59 = vmor %vm43, %vm55
    %vm60 = vmor %vm44, %vm56
    %vm61 = vmor %vm45, %vm57
    %vm62 = vcmp.eq.s32.totalorder %v34, 132
    %vm63 = vcmp.eq.s32.totalorder %v35, 132
    %vm64 = vmor %vm58, %vm62
    %vm65 = vmor %vm59, %vm63
    %vm66 = vmor %vm60, %vm62
    %vm67 = vmor %vm61, %vm63
    %v68 = vsel %vm64, 1, 0
    %v69 = vsel %vm65, 1, 0
    %v70 = vsel %vm66, 1, 0
    %v71 = vsel %vm67, 1, 0
    %v72 = vcvt.s32.f32 %v68
    %v73 = vcvt.s32.f32 %v69
    %v74 = vcvt.s32.f32 %v70
    %v75 = vcvt.s32.f32 %v71
    %v76 = vld [vmem:[%s2] sm:$0xff]
    %v77 = vld [vmem:[%s2 + $0x8] sm:$0xff]
    %v78 = vld [vmem:[%s2 + $0x10] sm:$0xff]
    %v79 = vld [vmem:[%s2 + $0x18] sm:$0xff]
    %v80 = vld [vmem:[%s2 + $0x20] sm:$0xff]
    %v81 = vld [vmem:[%s2 + $0x28] sm:$0xff]
    %v82 = vld [vmem:[%s2 + $0x30] sm:$0xff]
    %v83 = vld [vmem:[%s2 + $0x38] sm:$0xff]
    %v84 = vld [vmem:[%s2 + $0x40] sm:$0xff]
    %v85 = vld [vmem:[%s2 + $0x48] sm:$0xff]
    %v86 = vld [vmem:[%s2 + $0x50] sm:$0xff]
    %v87 = vld [vmem:[%s2 + $0x58] sm:$0xff]
    %v88 = vld [vmem:[%s2 + $0x60] sm:$0xff]
    %v89 = vld [vmem:[%s2 + $0x68] sm:$0xff]
    %v90 = vld [vmem:[%s2 + $0x70] sm:$0xff]
    %v91 = vld [vmem:[%s2 + $0x78] sm:$0xff]
    %v92 = vld [vmem:[%s2 + $0x80] sm:$0x1f]
    %vm93 = vcmask 39936
    %v95 = vsel %vm93, %v73, 0
    %v98 = vsel %vm93, %v75, 0
    %vm100 = vcmask 1044480
    %v102 = vsel %vm100, %v92, 0
    %104 = vmatpush.msra.mxu0 %v91
    %105 = vmatpush.msra.mxu0 %v90
    %106 = vmatpush.msra.mxu0 %v89
    %107 = vmatpush.msra.mxu0 %v88
    %108 = vmatpush.msra.mxu0 %v87
    %109 = vmatpush.msra.mxu0 %v86
    %110 = vmatpush.msra.mxu0 %v85
    %111 = vmatpush.msra.mxu0 %v84
    %112 = vmatpush.msra.mxu0 %v83
    %113 = vmatpush.msra.mxu0 %v82
    %114 = vmatpush.msra.mxu0 %v81
    %115 = vmatpush.msra.mxu0 %v80
    %116 = vmatpush.msra.mxu0 %v79
    %117 = vmatpush.msra.mxu0 %v78
    %118 = vmatpush.msra.mxu0 %v77
    %119 = vmatpush.msra.mxu0 %v76
    %120 = vmatmul.f32.gmra.mxu0 %v72
    %v121 = vpop.f32.mrf.mxu0
    %v122 = vadd.f32 0.0, %v121
    %123 = vmatmul.f32.gmra.mxu0 %v74
    %v124 = vpop.f32.mrf.mxu0
    %v125 = vadd.f32 0.0, %v124
    %126 = vdwg.mxu0
    %127 = vmatpush.msra.mxu0 0.0
    %128 = vmatpush.msra.mxu0 0.0
    %129 = vmatpush.msra.mxu0 0.0
    %130 = vmatpush.msra.mxu0 0.0
    %131 = vmatpush.msra.mxu0 0.0
    %132 = vmatpush.msra.mxu0 0.0
    %133 = vmatpush.msra.mxu0 0.0
    %134 = vmatpush.msra.mxu0 0.0
    %135 = vmatpush.msra.mxu0 0.0
    %136 = vmatpush.msra.mxu0 0.0
    %137 = vmatpush.msra.mxu0 0.0
    %138 = vmatpush.msra.mxu0 0.0
    %139 = vmatpush.msra.mxu0 0.0
    %140 = vmatpush.msra.mxu0 0.0
    %141 = vmatpush.msra.mxu0 0.0
    %142 = vmatpush.msra.mxu0 %v102
    %143 = vmatmul.f32.gmra.mxu0 %v95
    %v144 = vpop.f32.mrf.mxu0
    %v145 = vadd.f32 %v122, %v144
    %146 = vmatmul.f32.gmra.mxu0 %v98
    %v147 = vpop.f32.mrf.mxu0
    %v148 = vadd.f32 %v125, %v147
    %149 = vdwg.mxu0
    %v150 = vld [vmem:[%s7 + $0x20] ss:$0 sm:$0xff]
    %v151 = vld [vmem:[%s7 + $0x21] ss:$0 sm:$0xff]
    %vm152 = vcmask 392192
    %v153 = vsel %vm152, %v145, 0.0
    %154 = vadd.xlane.f32.xlu0 %v153
    %v155 = vpop.xlane.xlu0 %154
    %v156 = vsel %vm152, %v148, 0.0
    %157 = vadd.xlane.f32.xlu0 %v156
    %v158 = vpop.xlane.xlu0 %157
    %v159 = vrcp.pop 48.0
    %v160 = vmul.f32 48.0, %v159
    %v161 = vsub.f32 1.0, %v160
    %v162 = vmul.f32 %v159, %v161
    %v163 = vadd.f32 %v159, %v162
    %vm164 = vweird.f32 %v159
    %v165 = vsel %vm164, %v159, %v163
    %v166 = vmul.f32 %v155, %v165
    %v167 = vmul.f32 %v158, %v165
    %v168 = vsub.f32 %v145, %v166
    %v169 = vsub.f32 %v148, %v167
    %v170 = vmul.f32 %v168, %v168
    %v171 = vmul.f32 %v169, %v169
    %v172 = vsel %vm152, %v170, 0.0
    %173 = vadd.xlane.f32.xlu0 %v172
    %v174 = vpop.xlane.xlu0 %173
    %v175 = vsel %vm152, %v171, 0.0
    %176 = vadd.xlane.f32.xlu0 %v175
    %v177 = vpop.xlane.xlu0 %176
    %v178 = vmul.f32 %v174, %v165
    %v179 = vmul.f32 %v177, %v165
    %v180 = vadd.f32 %v178, 1e-12
    %v181 = vadd.f32 %v179, 1e-12
    %v182 = vrsqrt.pop %v180
    %v183 = vmul.f32 %v182, %v180
    %v184 = vmul.f32 %v183, %v182
    %v185 = vmul.f32 0.5, %v184
    %v186 = vsub.f32 1.5, %v185
    %v187 = vmul.f32 %v182, %v186
    %vm188 = vweird.f32 %v180
    %vm189 = vweird.f32 %v182
    %vm190 = vmor %vm188, %vm189
    %v191 = vsel %vm190, %v182, %v187
    %v192 = vrsqrt.pop %v181
    %v193 = vmul.f32 %v192, %v181
    %v194 = vmul.f32 %v193, %v192
    %v195 = vmul.f32 0.5, %v194
    %v196 = vsub.f32 1.5, %v195
    %v197 = vmul.f32 %v192, %v196
    %vm198 = vweird.f32 %v181
    %vm199 = vweird.f32 %v192
    %vm200 = vmor %vm198, %vm199
    %v201 = vsel %vm200, %v192, %v197
    %v202 = vmul.f32 %v168, %v191
    %v203 = vmul.f32 %v169, %v201
    %v204 = vmul.f32 %v202, %v150
    %v205 = vmul.f32 %v203, %v150
    %v206 = vadd.f32 %v204, %v151
    %v207 = vadd.f32 %v205, %v151
    %v208 = vld [vmem:[%s1] sm:$0xff]
    %v209 = vld [vmem:[%s1 + $0x8] sm:$0xff]
    %v210 = vld [vmem:[%s7] ss:$8 sm:$0x3]
    %v211 = vld [vmem:[%s7 + $0x1] ss:$0 sm:$0xff]
    %s212 = scalar_lea.vmem %s7, 2
    %v213 = vld [vmem:[%s212] ss:$8 sm:$0x3]
    %v214 = vld [vmem:[%s7 + $0x3] ss:$0 sm:$0xff]
    %v215 = vld [vmem:[%s7 + $0x4] ss:$0 sm:$0xff]
    %v216 = vld [vmem:[%s7 + $0x5] ss:$0 sm:$0xff]
    %v217 = vld [vmem:[%s7 + $0x6] ss:$0 sm:$0xff]
    %v218 = vld [vmem:[%s7 + $0x7] ss:$0 sm:$0xff]
    %v219 = vpack.c.bf16 %v207, %v206
    %v220 = vld [vmem:[%s3] sm:$0xff]
    %v221 = vld [vmem:[%s3 + $0x8] sm:$0xff]
    %v222 = vld [vmem:[%s3 + $0x10] sm:$0xff]
    %v223 = vld [vmem:[%s3 + $0x18] sm:$0xff]
    %v224 = vld [vmem:[%s3 + $0x20] sm:$0xff]
    %v225 = vld [vmem:[%s3 + $0x28] sm:$0xff]
    %v227 = vperm.slane %v210, 0
    %v228 = vperm.slane %v210, 1
    %v237 = vunpack.c.l.b16 %v220
    %v238 = vunpack.c.h.b16 %v220
    %v239 = vunpack.c.l.b16 %v221
    %v240 = vunpack.c.h.b16 %v221
    %v241 = vunpack.c.l.b16 %v222
    %v242 = vunpack.c.h.b16 %v222
    %v243 = vunpack.c.l.b16 %v223
    %v244 = vunpack.c.h.b16 %v223
    %v245 = vunpack.c.l.b16 %v224
    %v246 = vunpack.c.h.b16 %v224
    %v247 = vunpack.c.l.b16 %v225
    %v248 = vunpack.c.h.b16 %v225
    %v249 = vpack.c.b16 %v239, %v237
    %v250 = vpack.c.b16 %v240, %v238
    %v251 = vpack.c.b16 %v243, %v241
    %v252 = vpack.c.b16 %v244, %v242
    %v253 = vpack.c.b16 %v247, %v245
    %v254 = vpack.c.b16 %v248, %v246
    %v262 = vsel %vm152, %v219, 0
    %264 = vmatpush.bf16.msra.mxu0 0
    %265 = vmatpush.bf16.msra.mxu0 0
    %266 = vmatpush.bf16.msra.mxu0 0
    %267 = vmatpush.bf16.msra.mxu0 0
    %268 = vmatpush.bf16.msra.mxu0 0
    %269 = vmatpush.bf16.msra.mxu0 %v253
    %270 = vmatpush.bf16.msra.mxu0 %v251
    %271 = vmatpush.bf16.msra.mxu0 %v249
    %272 = vmatmul.bf16.gmra.mxu0 %v262
    %v273 = vpop.f32.mrf.mxu0
    %v274 = vadd.f32 %v227, %v273
    %v275 = vpop.f32.mrf.mxu0
    %v276 = vadd.f32 %v227, %v275
    %277 = vdwg.mxu0
    %278 = vmatpush.bf16.msra.mxu0 0
    %279 = vmatpush.bf16.msra.mxu0 0
    %280 = vmatpush.bf16.msra.mxu0 0
    %281 = vmatpush.bf16.msra.mxu0 0
    %282 = vmatpush.bf16.msra.mxu0 0
    %283 = vmatpush.bf16.msra.mxu0 %v254
    %284 = vmatpush.bf16.msra.mxu0 %v252
    %285 = vmatpush.bf16.msra.mxu0 %v250
    %286 = vmatmul.bf16.gmra.mxu0 %v262
    %v287 = vpop.f32.mrf.mxu0
    %v288 = vadd.f32 %v228, %v287
    %v289 = vpop.f32.mrf.mxu0
    %v290 = vadd.f32 %v228, %v289
    %291 = vdwg.mxu0
    %v292 = vpack.c.bf16 %v276, %v274
    %294 = vrot.lane.b32.xlu0 %v292, 80
    %v295 = vpop.permute.xlu0 %294
    %vm296 = vcmask 64512
    %v298 = vsel %vm296, %v292, 0
    %v301 = vsel %vm296, %v295, 0
    %303 = vmatpush.bf16.xpose.msra.mxu0 0
    %304 = vmatpush.bf16.xpose.msra.mxu0 0
    %305 = vmatpush.bf16.xpose.msra.mxu0 0
    %306 = vmatpush.bf16.xpose.msra.mxu0 0
    %307 = vmatpush.bf16.xpose.msra.mxu0 0
    %308 = vmatpush.bf16.xpose.msra.mxu0 0
    %309 = vmatpush.bf16.xpose.msra.mxu0 0
    %310 = vmatpush.bf16.xpose.msra.mxu0 %v301
    %311 = vmatmul.bf16.gmra.mxu0 %v298
    %v312 = vpop.f32.mrf.mxu0
    %v313 = vadd.f32 %v208, %v312
    %v314 = vpop.f32.mrf.mxu0
    %v315 = vadd.f32 %v209, %v314
    %316 = vdwg.mxu0
    %vm317 = vcmask 130048
    %v318 = vsel %vm317, %v313, -inf
    %319 = vmax.xlane.f32.xlu0 %v318
    %v320 = vpop.xlane.xlu0 %319
    %v321 = vsel %vm317, %v315, -inf
    %322 = vmax.xlane.f32.xlu0 %v321
    %v323 = vpop.xlane.xlu0 %322
    %v324 = vsub.f32 %v313, %v320
    %v325 = vsub.f32 %v315, %v323
    %v326 = vmul.f32 %v324, 1.442695
    %v327 = vpow.pop %v326
    %v328 = vmul.f32 %v325, 1.442695
    %v329 = vpow.pop %v328
    %v330 = vsel %vm317, %v327, 0.0
    %331 = vadd.xlane.f32.xlu0 %v330
    %v332 = vpop.xlane.xlu0 %331
    %v333 = vsel %vm317, %v329, 0.0
    %334 = vadd.xlane.f32.xlu0 %v333
    %v335 = vpop.xlane.xlu0 %334
    %v336 = vrcp.pop %v332
    %v337 = vrcp.pop %v335
    %v338 = vmul.f32 %v327, %v336
    %v339 = vmul.f32 %v329, %v337
    %v340 = vpack.c.bf16 %v339, %v338
    %341 = vrot.lane.b32.xlu0 %v292, 32
    %v342 = vpop.permute.xlu0 %341
    %v345 = vsel %vm317, %v340, 0
    %347 = vmatpush.bf16.msra.mxu0 0
    %348 = vmatpush.bf16.msra.mxu0 0
    %349 = vmatpush.bf16.msra.mxu0 0
    %350 = vmatpush.bf16.msra.mxu0 0
    %351 = vmatpush.bf16.msra.mxu0 0
    %352 = vmatpush.bf16.msra.mxu0 0
    %353 = vmatpush.bf16.msra.mxu0 0
    %354 = vmatpush.bf16.msra.mxu0 %v342
    %355 = vmatmul.bf16.gmra.mxu0 %v345
    %v356 = vpop.f32.mrf.mxu0
    %v357 = vadd.f32 0.0, %v356
    %v358 = vpop.f32.mrf.mxu0
    %v359 = vadd.f32 0.0, %v358
    %360 = vdwg.mxu0
    %361 = vrot.lane.b32.xlu0 %v292, 120
    %v362 = vpop.permute.xlu0 %361
    %363 = vrot.lane.b32.xlu0 %v292, 72
    %v364 = vpop.permute.xlu0 %363
    %v366 = vsel %vm296, %v362, 0
    %v369 = vsel %vm296, %v364, 0
    %371 = vmatpush.bf16.xpose.msra.mxu0 0
    %372 = vmatpush.bf16.xpose.msra.mxu0 0
    %373 = vmatpush.bf16.xpose.msra.mxu0 0
    %374 = vmatpush.bf16.xpose.msra.mxu0 0
    %375 = vmatpush.bf16.xpose.msra.mxu0 0
    %376 = vmatpush.bf16.xpose.msra.mxu0 0
    %377 = vmatpush.bf16.xpose.msra.mxu0 0
    %378 = vmatpush.bf16.xpose.msra.mxu0 %v369
    %379 = vmatmul.bf16.gmra.mxu0 %v366
    %v380 = vpop.f32.mrf.mxu0
    %v381 = vadd.f32 %v208, %v380
    %v382 = vpop.f32.mrf.mxu0
    %v383 = vadd.f32 %v209, %v382
    %384 = vdwg.mxu0
    %v385 = vsel %vm317, %v381, -inf
    %386 = vmax.xlane.f32.xlu0 %v385
    %v387 = vpop.xlane.xlu0 %386
    %v388 = vsel %vm317, %v383, -inf
    %389 = vmax.xlane.f32.xlu0 %v388
    %v390 = vpop.xlane.xlu0 %389
    %v391 = vsub.f32 %v381, %v387
    %v392 = vsub.f32 %v383, %v390
    %v393 = vmul.f32 %v391, 1.442695
    %v394 = vpow.pop %v393
    %v395 = vmul.f32 %v392, 1.442695
    %v396 = vpow.pop %v395
    %v397 = vsel %vm317, %v394, 0.0
    %398 = vadd.xlane.f32.xlu0 %v397
    %v399 = vpop.xlane.xlu0 %398
    %v400 = vsel %vm317, %v396, 0.0
    %401 = vadd.xlane.f32.xlu0 %v400
    %v402 = vpop.xlane.xlu0 %401
    %v403 = vrcp.pop %v399
    %v404 = vrcp.pop %v402
    %v405 = vmul.f32 %v394, %v403
    %v406 = vmul.f32 %v396, %v404
    %v407 = vpack.c.bf16 %v406, %v405
    %408 = vrot.lane.b32.xlu0 %v292, 24
    %v409 = vpop.permute.xlu0 %408
    %v412 = vsel %vm317, %v407, 0
    %414 = vmatpush.bf16.msra.mxu0 0
    %415 = vmatpush.bf16.msra.mxu0 0
    %416 = vmatpush.bf16.msra.mxu0 0
    %417 = vmatpush.bf16.msra.mxu0 0
    %418 = vmatpush.bf16.msra.mxu0 0
    %419 = vmatpush.bf16.msra.mxu0 0
    %420 = vmatpush.bf16.msra.mxu0 0
    %421 = vmatpush.bf16.msra.mxu0 %v409
    %422 = vmatmul.bf16.gmra.mxu0 %v412
    %v423 = vpop.f32.mrf.mxu0
    %v424 = vadd.f32 0.0, %v423
    %v425 = vpop.f32.mrf.mxu0
    %v426 = vadd.f32 0.0, %v425
    %427 = vdwg.mxu0
    %428 = vrot.lane.b32.xlu0 %v292, 112
    %v429 = vpop.permute.xlu0 %428
    %430 = vrot.lane.b32.xlu0 %v292, 64
    %v431 = vpop.permute.xlu0 %430
    %v433 = vsel %vm296, %v429, 0
    %v436 = vsel %vm296, %v431, 0
    %438 = vmatpush.bf16.xpose.msra.mxu0 0
    %439 = vmatpush.bf16.xpose.msra.mxu0 0
    %440 = vmatpush.bf16.xpose.msra.mxu0 0
    %441 = vmatpush.bf16.xpose.msra.mxu0 0
    %442 = vmatpush.bf16.xpose.msra.mxu0 0
    %443 = vmatpush.bf16.xpose.msra.mxu0 0
    %444 = vmatpush.bf16.xpose.msra.mxu0 0
    %445 = vmatpush.bf16.xpose.msra.mxu0 %v436
    %446 = vmatmul.bf16.gmra.mxu0 %v433
    %v447 = vpop.f32.mrf.mxu0
    %v448 = vadd.f32 %v208, %v447
    %v449 = vpop.f32.mrf.mxu0
    %v450 = vadd.f32 %v209, %v449
    %451 = vdwg.mxu0
    %v452 = vsel %vm317, %v448, -inf
    %453 = vmax.xlane.f32.xlu0 %v452
    %v454 = vpop.xlane.xlu0 %453
    %v455 = vsel %vm317, %v450, -inf
    %456 = vmax.xlane.f32.xlu0 %v455
    %v457 = vpop.xlane.xlu0 %456
    %v458 = vsub.f32 %v448, %v454
    %v459 = vsub.f32 %v450, %v457
    %v460 = vmul.f32 %v458, 1.442695
    %v461 = vpow.pop %v460
    %v462 = vmul.f32 %v459, 1.442695
    %v463 = vpow.pop %v462
    %v464 = vsel %vm317, %v461, 0.0
    %465 = vadd.xlane.f32.xlu0 %v464
    %v466 = vpop.xlane.xlu0 %465
    %v467 = vsel %vm317, %v463, 0.0
    %468 = vadd.xlane.f32.xlu0 %v467
    %v469 = vpop.xlane.xlu0 %468
    %v470 = vrcp.pop %v466
    %v471 = vrcp.pop %v469
    %v472 = vmul.f32 %v461, %v470
    %v473 = vmul.f32 %v463, %v471
    %v474 = vpack.c.bf16 %v473, %v472
    %475 = vrot.lane.b32.xlu0 %v292, 16
    %v476 = vpop.permute.xlu0 %475
    %v479 = vsel %vm317, %v474, 0
    %481 = vmatpush.bf16.msra.mxu0 0
    %482 = vmatpush.bf16.msra.mxu0 0
    %483 = vmatpush.bf16.msra.mxu0 0
    %484 = vmatpush.bf16.msra.mxu0 0
    %485 = vmatpush.bf16.msra.mxu0 0
    %486 = vmatpush.bf16.msra.mxu0 0
    %487 = vmatpush.bf16.msra.mxu0 0
    %488 = vmatpush.bf16.msra.mxu0 %v476
    %489 = vmatmul.bf16.gmra.mxu0 %v479
    %v490 = vpop.f32.mrf.mxu0
    %v491 = vadd.f32 0.0, %v490
    %v492 = vpop.f32.mrf.mxu0
    %v493 = vadd.f32 0.0, %v492
    %494 = vdwg.mxu0
    %495 = vrot.lane.b32.xlu0 %v292, 104
    %v496 = vpop.permute.xlu0 %495
    %497 = vrot.lane.b32.xlu0 %v292, 56
    %v498 = vpop.permute.xlu0 %497
    %v500 = vsel %vm296, %v496, 0
    %v503 = vsel %vm296, %v498, 0
    %505 = vmatpush.bf16.xpose.msra.mxu0 0
    %506 = vmatpush.bf16.xpose.msra.mxu0 0
    %507 = vmatpush.bf16.xpose.msra.mxu0 0
    %508 = vmatpush.bf16.xpose.msra.mxu0 0
    %509 = vmatpush.bf16.xpose.msra.mxu0 0
    %510 = vmatpush.bf16.xpose.msra.mxu0 0
    %511 = vmatpush.bf16.xpose.msra.mxu0 0
    %512 = vmatpush.bf16.xpose.msra.mxu0 %v503
    %513 = vmatmul.bf16.gmra.mxu0 %v500
    %v514 = vpop.f32.mrf.mxu0
    %v515 = vadd.f32 %v208, %v514
    %v516 = vpop.f32.mrf.mxu0
    %v517 = vadd.f32 %v209, %v516
    %518 = vdwg.mxu0
    %v519 = vsel %vm317, %v515, -inf
    %520 = vmax.xlane.f32.xlu0 %v519
    %v521 = vpop.xlane.xlu0 %520
    %v522 = vsel %vm317, %v517, -inf
    %523 = vmax.xlane.f32.xlu0 %v522
    %v524 = vpop.xlane.xlu0 %523
    %v525 = vsub.f32 %v515, %v521
    %v526 = vsub.f32 %v517, %v524
    %v527 = vmul.f32 %v525, 1.442695
    %v528 = vpow.pop %v527
    %v529 = vmul.f32 %v526, 1.442695
    %v530 = vpow.pop %v529
    %v531 = vsel %vm317, %v528, 0.0
    %532 = vadd.xlane.f32.xlu0 %v531
    %v533 = vpop.xlane.xlu0 %532
    %v534 = vsel %vm317, %v530, 0.0
    %535 = vadd.xlane.f32.xlu0 %v534
    %v536 = vpop.xlane.xlu0 %535
    %v537 = vrcp.pop %v533
    %v538 = vrcp.pop %v536
    %v539 = vmul.f32 %v528, %v537
    %v540 = vmul.f32 %v530, %v538
    %v541 = vpack.c.bf16 %v540, %v539
    %542 = vrot.lane.b32.xlu0 %v292, 8
    %v543 = vpop.permute.xlu0 %542
    %v546 = vsel %vm317, %v541, 0
    %548 = vmatpush.bf16.msra.mxu0 0
    %549 = vmatpush.bf16.msra.mxu0 0
    %550 = vmatpush.bf16.msra.mxu0 0
    %551 = vmatpush.bf16.msra.mxu0 0
    %552 = vmatpush.bf16.msra.mxu0 0
    %553 = vmatpush.bf16.msra.mxu0 0
    %554 = vmatpush.bf16.msra.mxu0 0
    %555 = vmatpush.bf16.msra.mxu0 %v543
    %556 = vmatmul.bf16.gmra.mxu0 %v546
    %v557 = vpop.f32.mrf.mxu0
    %v558 = vadd.f32 0.0, %v557
    %v559 = vpop.f32.mrf.mxu0
    %v560 = vadd.f32 0.0, %v559
    %561 = vdwg.mxu0
    %v562 = vpack.c.bf16 %v290, %v288
    %563 = vrot.lane.b32.xlu0 %v292, 96
    %v564 = vpop.permute.xlu0 %563
    %565 = vrot.lane.b32.xlu0 %v292, 48
    %v566 = vpop.permute.xlu0 %565
    %v568 = vsel %vm296, %v564, 0
    %v571 = vsel %vm296, %v566, 0
    %573 = vmatpush.bf16.xpose.msra.mxu0 0
    %574 = vmatpush.bf16.xpose.msra.mxu0 0
    %575 = vmatpush.bf16.xpose.msra.mxu0 0
    %576 = vmatpush.bf16.xpose.msra.mxu0 0
    %577 = vmatpush.bf16.xpose.msra.mxu0 0
    %578 = vmatpush.bf16.xpose.msra.mxu0 0
    %579 = vmatpush.bf16.xpose.msra.mxu0 0
    %580 = vmatpush.bf16.xpose.msra.mxu0 %v571
    %581 = vmatmul.bf16.gmra.mxu0 %v568
    %v582 = vpop.f32.mrf.mxu0
    %v583 = vadd.f32 %v208, %v582
    %v584 = vpop.f32.mrf.mxu0
    %v585 = vadd.f32 %v209, %v584
    %586 = vdwg.mxu0
    %v587 = vsel %vm317, %v583, -inf
    %588 = vmax.xlane.f32.xlu0 %v587
    %v589 = vpop.xlane.xlu0 %588
    %v590 = vsel %vm317, %v585, -inf
    %591 = vmax.xlane.f32.xlu0 %v590
    %v592 = vpop.xlane.xlu0 %591
    %v593 = vsub.f32 %v583, %v589
    %v594 = vsub.f32 %v585, %v592
    %v595 = vmul.f32 %v593, 1.442695
    %v596 = vpow.pop %v595
    %v597 = vmul.f32 %v594, 1.442695
    %v598 = vpow.pop %v597
    %v599 = vsel %vm317, %v596, 0.0
    %600 = vadd.xlane.f32.xlu0 %v599
    %v601 = vpop.xlane.xlu0 %600
    %v602 = vsel %vm317, %v598, 0.0
    %603 = vadd.xlane.f32.xlu0 %v602
    %v604 = vpop.xlane.xlu0 %603
    %v605 = vrcp.pop %v601
    %v606 = vrcp.pop %v604
    %v607 = vmul.f32 %v596, %v605
    %v608 = vmul.f32 %v598, %v606
    %v609 = vpack.c.bf16 %v608, %v607
    %v611 = vsel %vm317, %v609, 0
    %613 = vmatpush.bf16.msra.mxu0 0
    %614 = vmatpush.bf16.msra.mxu0 0
    %615 = vmatpush.bf16.msra.mxu0 0
    %616 = vmatpush.bf16.msra.mxu0 0
    %617 = vmatpush.bf16.msra.mxu0 0
    %618 = vmatpush.bf16.msra.mxu0 0
    %619 = vmatpush.bf16.msra.mxu0 0
    %620 = vmatpush.bf16.msra.mxu0 %v562
    %621 = vmatmul.bf16.gmra.mxu0 %v611
    %v622 = vpop.f32.mrf.mxu0
    %v623 = vadd.f32 0.0, %v622
    %v624 = vpop.f32.mrf.mxu0
    %v625 = vadd.f32 0.0, %v624
    %626 = vdwg.mxu0
    %627 = vrot.lane.b32.xlu0 %v292, 88
    %v628 = vpop.permute.xlu0 %627
    %629 = vrot.lane.b32.xlu0 %v292, 40
    %v630 = vpop.permute.xlu0 %629
    %v632 = vsel %vm296, %v628, 0
    %v635 = vsel %vm296, %v630, 0
    %637 = vmatpush.bf16.xpose.msra.mxu0 0
    %638 = vmatpush.bf16.xpose.msra.mxu0 0
    %639 = vmatpush.bf16.xpose.msra.mxu0 0
    %640 = vmatpush.bf16.xpose.msra.mxu0 0
    %641 = vmatpush.bf16.xpose.msra.mxu0 0
    %642 = vmatpush.bf16.xpose.msra.mxu0 0
    %643 = vmatpush.bf16.xpose.msra.mxu0 0
    %644 = vmatpush.bf16.xpose.msra.mxu0 %v635
    %645 = vmatmul.bf16.gmra.mxu0 %v632
    %v646 = vpop.f32.mrf.mxu0
    %v647 = vadd.f32 %v208, %v646
    %v648 = vpop.f32.mrf.mxu0
    %v649 = vadd.f32 %v209, %v648
    %650 = vdwg.mxu0
    %v651 = vsel %vm317, %v647, -inf
    %652 = vmax.xlane.f32.xlu0 %v651
    %v653 = vpop.xlane.xlu0 %652
    %v654 = vsel %vm317, %v649, -inf
    %655 = vmax.xlane.f32.xlu0 %v654
    %v656 = vpop.xlane.xlu0 %655
    %v657 = vsub.f32 %v647, %v653
    %v658 = vsub.f32 %v649, %v656
    %v659 = vmul.f32 %v657, 1.442695
    %v660 = vpow.pop %v659
    %v661 = vmul.f32 %v658, 1.442695
    %v662 = vpow.pop %v661
    %v663 = vsel %vm317, %v660, 0.0
    %664 = vadd.xlane.f32.xlu0 %v663
    %v665 = vpop.xlane.xlu0 %664
    %v666 = vsel %vm317, %v662, 0.0
    %667 = vadd.xlane.f32.xlu0 %v666
    %v668 = vpop.xlane.xlu0 %667
    %v669 = vrcp.pop %v665
    %v670 = vrcp.pop %v668
    %v671 = vmul.f32 %v660, %v669
    %v672 = vmul.f32 %v662, %v670
    %v673 = vpack.c.bf16 %v672, %v671
    %675 = vrot.lane.b32.xlu0 %v562, 120
    %v676 = vpop.permute.xlu0 %675
    %v679 = vsel %vm317, %v673, 0
    %681 = vmatpush.bf16.msra.mxu0 0
    %682 = vmatpush.bf16.msra.mxu0 0
    %683 = vmatpush.bf16.msra.mxu0 0
    %684 = vmatpush.bf16.msra.mxu0 0
    %685 = vmatpush.bf16.msra.mxu0 0
    %686 = vmatpush.bf16.msra.mxu0 0
    %687 = vmatpush.bf16.msra.mxu0 0
    %688 = vmatpush.bf16.msra.mxu0 %v676
    %689 = vmatmul.bf16.gmra.mxu0 %v679
    %v690 = vpop.f32.mrf.mxu0
    %v691 = vadd.f32 0.0, %v690
    %v692 = vpop.f32.mrf.mxu0
    %v693 = vadd.f32 0.0, %v692
    %694 = vdwg.mxu0
    %697 = vrot.lane.b32.xlu0 %v424, 8
    %v698 = vpop.permute.xlu0 %697
    %699 = vrot.lane.b32.xlu0 %v426, 8
    %v700 = vpop.permute.xlu0 %699
    %705 = vrot.lane.b32.xlu0 %v491, 16
    %v706 = vpop.permute.xlu0 %705
    %707 = vrot.lane.b32.xlu0 %v493, 16
    %v708 = vpop.permute.xlu0 %707
    %713 = vrot.lane.b32.xlu0 %v558, 24
    %v714 = vpop.permute.xlu0 %713
    %715 = vrot.lane.b32.xlu0 %v560, 24
    %v716 = vpop.permute.xlu0 %715
    %721 = vrot.lane.b32.xlu0 %v623, 32
    %v722 = vpop.permute.xlu0 %721
    %723 = vrot.lane.b32.xlu0 %v625, 32
    %v724 = vpop.permute.xlu0 %723
    %729 = vrot.lane.b32.xlu0 %v691, 40
    %v730 = vpop.permute.xlu0 %729
    %731 = vrot.lane.b32.xlu0 %v693, 40
    %v732 = vpop.permute.xlu0 %731
    %v735 = vsel %vm296, %v357, %v698
    %v736 = vsel %vm296, %v359, %v700
    %v737 = vsel %vm317, %v735, %v706
    %v738 = vsel %vm317, %v736, %v708
    %vm739 = vcmask 195584
    %v740 = vsel %vm739, %v737, %v714
    %v741 = vsel %vm739, %v738, %v716
    %vm742 = vcmask 261120
    %v743 = vsel %vm742, %v740, %v722
    %v744 = vsel %vm742, %v741, %v724
    %vm745 = vcmask 326656
    %v746 = vsel %vm745, %v743, %v730
    %v747 = vsel %vm745, %v744, %v732
    %v748 = vpack.c.bf16 %v747, %v746
    %v749 = vld [vmem:[%s4] sm:$0xf]
    %v750 = vld [vmem:[%s4 + $0x4] sm:$0xf]
    %v751 = vld [vmem:[%s4 + $0x8] sm:$0xf]
    %v752 = vld [vmem:[%s4 + $0xc] sm:$0xf]
    %v753 = vld [vmem:[%s4 + $0x10] sm:$0xf]
    %v754 = vld [vmem:[%s4 + $0x14] sm:$0xf]
    %v761 = vunpack.c.l.b16 %v749
    %v762 = vunpack.c.l.b16 %v750
    %v763 = vunpack.c.l.b16 %v751
    %v764 = vunpack.c.l.b16 %v752
    %v765 = vunpack.c.l.b16 %v753
    %v766 = vunpack.c.l.b16 %v754
    %v767 = vpack.c.b16 %v762, %v761
    %v768 = vpack.c.b16 %v764, %v763
    %v769 = vpack.c.b16 %v766, %v765
    %v774 = vsel %vm152, %v748, 0
    %776 = vmatpush.bf16.msra.mxu0 0
    %777 = vmatpush.bf16.msra.mxu0 0
    %778 = vmatpush.bf16.msra.mxu0 0
    %779 = vmatpush.bf16.msra.mxu0 0
    %780 = vmatpush.bf16.msra.mxu0 0
    %781 = vmatpush.bf16.msra.mxu0 %v769
    %782 = vmatpush.bf16.msra.mxu0 %v768
    %783 = vmatpush.bf16.msra.mxu0 %v767
    %784 = vmatmul.bf16.gmra.mxu0 %v774
    %v785 = vpop.f32.mrf.mxu0
    %v786 = vadd.f32 %v211, %v785
    %v787 = vpop.f32.mrf.mxu0
    %v788 = vadd.f32 %v211, %v787
    %789 = vdwg.mxu0
    %v790 = vadd.f32 %v786, %v206
    %v791 = vadd.f32 %v788, %v207
    %v792 = vsel %vm152, %v790, 0.0
    %793 = vadd.xlane.f32.xlu0 %v792
    %v794 = vpop.xlane.xlu0 %793
    %v795 = vsel %vm152, %v791, 0.0
    %796 = vadd.xlane.f32.xlu0 %v795
    %v797 = vpop.xlane.xlu0 %796
    %v798 = vmul.f32 %v794, %v165
    %v799 = vmul.f32 %v797, %v165
    %v800 = vsub.f32 %v790, %v798
    %v801 = vsub.f32 %v791, %v799
    %v802 = vmul.f32 %v800, %v800
    %v803 = vmul.f32 %v801, %v801
    %v804 = vsel %vm152, %v802, 0.0
    %805 = vadd.xlane.f32.xlu0 %v804
    %v806 = vpop.xlane.xlu0 %805
    %v807 = vsel %vm152, %v803, 0.0
    %808 = vadd.xlane.f32.xlu0 %v807
    %v809 = vpop.xlane.xlu0 %808
    %v810 = vmul.f32 %v806, %v165
    %v811 = vmul.f32 %v809, %v165
    %v812 = vadd.f32 %v810, 1e-12
    %v813 = vadd.f32 %v811, 1e-12
    %v814 = vrsqrt.pop %v812
    %v815 = vmul.f32 %v814, %v812
    %v816 = vmul.f32 %v815, %v814
    %v817 = vmul.f32 0.5, %v816
    %v818 = vsub.f32 1.5, %v817
    %v819 = vmul.f32 %v814, %v818
    %vm820 = vweird.f32 %v812
    %vm821 = vweird.f32 %v814
    %vm822 = vmor %vm820, %vm821
    %v823 = vsel %vm822, %v814, %v819
    %v824 = vrsqrt.pop %v813
    %v825 = vmul.f32 %v824, %v813
    %v826 = vmul.f32 %v825, %v824
    %v827 = vmul.f32 0.5, %v826
    %v828 = vsub.f32 1.5, %v827
    %v829 = vmul.f32 %v824, %v828
    %vm830 = vweird.f32 %v813
    %vm831 = vweird.f32 %v824
    %vm832 = vmor %vm830, %vm831
    %v833 = vsel %vm832, %v824, %v829
    %v834 = vmul.f32 %v800, %v823
    %v835 = vmul.f32 %v801, %v833
    %v836 = vmul.f32 %v834, %v215
    %v837 = vmul.f32 %v835, %v215
    %v838 = vadd.f32 %v836, %v216
    %v839 = vadd.f32 %v837, %v216
    %v840 = vpack.c.bf16 %v839, %v838
    %v841 = vld [vmem:[%s5] sm:$0xff]
    %v842 = vld [vmem:[%s5 + $0x8] sm:$0xff]
    %v843 = vld [vmem:[%s5 + $0x10] sm:$0xff]
    %v844 = vld [vmem:[%s5 + $0x18] sm:$0xff]
    %v845 = vld [vmem:[%s5 + $0x20] sm:$0xff]
    %v846 = vld [vmem:[%s5 + $0x28] sm:$0xff]
    %v848 = vperm.slane %v213, 0
    %v849 = vperm.slane %v213, 1
    %v858 = vunpack.c.l.b16 %v841
    %v859 = vunpack.c.h.b16 %v841
    %v860 = vunpack.c.l.b16 %v842
    %v861 = vunpack.c.h.b16 %v842
    %v862 = vunpack.c.l.b16 %v843
    %v863 = vunpack.c.h.b16 %v843
    %v864 = vunpack.c.l.b16 %v844
    %v865 = vunpack.c.h.b16 %v844
    %v866 = vunpack.c.l.b16 %v845
    %v867 = vunpack.c.h.b16 %v845
    %v868 = vunpack.c.l.b16 %v846
    %v869 = vunpack.c.h.b16 %v846
    %v870 = vpack.c.b16 %v860, %v858
    %v871 = vpack.c.b16 %v861, %v859
    %v872 = vpack.c.b16 %v864, %v862
    %v873 = vpack.c.b16 %v865, %v863
    %v874 = vpack.c.b16 %v868, %v866
    %v875 = vpack.c.b16 %v869, %v867
    %v883 = vsel %vm152, %v840, 0
    %885 = vmatpush.bf16.msra.mxu0 0
    %886 = vmatpush.bf16.msra.mxu0 0
    %887 = vmatpush.bf16.msra.mxu0 0
    %888 = vmatpush.bf16.msra.mxu0 0
    %889 = vmatpush.bf16.msra.mxu0 0
    %890 = vmatpush.bf16.msra.mxu0 %v874
    %891 = vmatpush.bf16.msra.mxu0 %v872
    %892 = vmatpush.bf16.msra.mxu0 %v870
    %893 = vmatmul.bf16.gmra.mxu0 %v883
    %v894 = vpop.f32.mrf.mxu0
    %v895 = vadd.f32 %v848, %v894
    %v896 = vpop.f32.mrf.mxu0
    %v897 = vadd.f32 %v848, %v896
    %898 = vdwg.mxu0
    %899 = vmatpush.bf16.msra.mxu0 0
    %900 = vmatpush.bf16.msra.mxu0 0
    %901 = vmatpush.bf16.msra.mxu0 0
    %902 = vmatpush.bf16.msra.mxu0 0
    %903 = vmatpush.bf16.msra.mxu0 0
    %904 = vmatpush.bf16.msra.mxu0 %v875
    %905 = vmatpush.bf16.msra.mxu0 %v873
    %906 = vmatpush.bf16.msra.mxu0 %v871
    %907 = vmatmul.bf16.gmra.mxu0 %v883
    %v908 = vpop.f32.mrf.mxu0
    %v909 = vadd.f32 %v849, %v908
    %v910 = vpop.f32.mrf.mxu0
    %v911 = vadd.f32 %v849, %v910
    %912 = vdwg.mxu0
    %v913 = vmul.f32 %v895, 0.5
    %v914 = vmul.f32 %v909, 0.5
    %v915 = vmul.f32 %v897, 0.5
    %v916 = vmul.f32 %v911, 0.5
    %v917 = vmul.f32 %v895, 0.70710677
    %v918 = vmul.f32 %v909, 0.70710677
    %v919 = vmul.f32 %v897, 0.70710677
    %v920 = vmul.f32 %v911, 0.70710677
    %v921 = vmul.f32 %v917, %v917
    %v922 = vmin.f32 16.0, %v921
    %v923 = vmul.f32 %v922, 2.1237322e-06
    %v924 = vadd.f32 %v923, 0.00028619796
    %v925 = vmul.f32 %v922, %v924
    %v926 = vadd.f32 %v925, 0.0036580483
    %v927 = vmul.f32 %v922, %v926
    %v928 = vadd.f32 %v927, 0.05243302
    %v929 = vmul.f32 %v922, %v928
    %v930 = vadd.f32 %v929, 0.18741608
    %v931 = vmul.f32 %v922, %v930
    %v932 = vadd.f32 %v931, 1.1283791
    %v933 = vmul.f32 %v917, %v932
    %v934 = vmul.f32 %v922, 3.8918573e-05
    %v935 = vadd.f32 %v934, 0.001143296
    %v936 = vmul.f32 %v922, %v935
    %v937 = vadd.f32 %v936, 0.014752088
    %v938 = vmul.f32 %v922, %v937
    %v939 = vadd.f32 %v938, 0.112945676
    %v940 = vmul.f32 %v922, %v939
    %v941 = vadd.f32 %v940, 0.4994258
    %v942 = vmul.f32 %v922, %v941
    %v943 = vadd.f32 %v942, 1.0
    %v944 = vrcp.pop %v943
    %v945 = vmul.f32 %v943, %v944
    %v946 = vsub.f32 1.0, %v945
    %v947 = vmul.f32 %v944, %v946
    %v948 = vadd.f32 %v944, %v947
    %vm949 = vweird.f32 %v943
    %vm950 = vweird.f32 %v944
    %vm951 = vmor %vm949, %vm950
    %v952 = vsel %vm951, %v944, %v948
    %v953 = vand.u32 2147483647, %v943
    %vm954 = vcmp.eq.f32.partialorder %v953, 8.507059e+37
    %v955 = vand.u32 %v943, 2147483648
    %v956 = vor.u32 1.1754944e-38, %v955
    %v957 = vsel %vm954, %v956, %v952
    %v958 = vmul.f32 %v933, %v957
    %v959 = vmin.f32 %v958, 1.0
    %v960 = vmax.f32 %v959, -1.0
    %v961 = vmul.f32 %v918, %v918
    %v962 = vmin.f32 16.0, %v961
    %v963 = vmul.f32 %v962, 2.1237322e-06
    %v964 = vadd.f32 %v963, 0.00028619796
    %v965 = vmul.f32 %v962, %v964
    %v966 = vadd.f32 %v965, 0.0036580483
    %v967 = vmul.f32 %v962, %v966
    %v968 = vadd.f32 %v967, 0.05243302
    %v969 = vmul.f32 %v962, %v968
    %v970 = vadd.f32 %v969, 0.18741608
    %v971 = vmul.f32 %v962, %v970
    %v972 = vadd.f32 %v971, 1.1283791
    %v973 = vmul.f32 %v918, %v972
    %v974 = vmul.f32 %v962, 3.8918573e-05
    %v975 = vadd.f32 %v974, 0.001143296
    %v976 = vmul.f32 %v962, %v975
    %v977 = vadd.f32 %v976, 0.014752088
    %v978 = vmul.f32 %v962, %v977
    %v979 = vadd.f32 %v978, 0.112945676
    %v980 = vmul.f32 %v962, %v979
    %v981 = vadd.f32 %v980, 0.4994258
    %v982 = vmul.f32 %v962, %v981
    %v983 = vadd.f32 %v982, 1.0
    %v984 = vrcp.pop %v983
    %v985 = vmul.f32 %v983, %v984
    %v986 = vsub.f32 1.0, %v985
    %v987 = vmul.f32 %v984, %v986
    %v988 = vadd.f32 %v984, %v987
    %vm989 = vweird.f32 %v983
    %vm990 = vweird.f32 %v984
    %vm991 = vmor %vm989, %vm990
    %v992 = vsel %vm991, %v984, %v988
    %v993 = vand.u32 2147483647, %v983
    %vm994 = vcmp.eq.f32.partialorder %v993, 8.507059e+37
    %v995 = vand.u32 %v983, 2147483648
    %v996 = vor.u32 1.1754944e-38, %v995
    %v997 = vsel %vm994, %v996, %v992
    %v998 = vmul.f32 %v973, %v997
    %v999 = vmin.f32 %v998, 1.0
    %v1000 = vmax.f32 %v999, -1.0
    %v1001 = vmul.f32 %v919, %v919
    %v1002 = vmin.f32 16.0, %v1001
    %v1003 = vmul.f32 %v1002, 2.1237322e-06
    %v1004 = vadd.f32 %v1003, 0.00028619796
    %v1005 = vmul.f32 %v1002, %v1004
    %v1006 = vadd.f32 %v1005, 0.0036580483
    %v1007 = vmul.f32 %v1002, %v1006
    %v1008 = vadd.f32 %v1007, 0.05243302
    %v1009 = vmul.f32 %v1002, %v1008
    %v1010 = vadd.f32 %v1009, 0.18741608
    %v1011 = vmul.f32 %v1002, %v1010
    %v1012 = vadd.f32 %v1011, 1.1283791
    %v1013 = vmul.f32 %v919, %v1012
    %v1014 = vmul.f32 %v1002, 3.8918573e-05
    %v1015 = vadd.f32 %v1014, 0.001143296
    %v1016 = vmul.f32 %v1002, %v1015
    %v1017 = vadd.f32 %v1016, 0.014752088
    %v1018 = vmul.f32 %v1002, %v1017
    %v1019 = vadd.f32 %v1018, 0.112945676
    %v1020 = vmul.f32 %v1002, %v1019
    %v1021 = vadd.f32 %v1020, 0.4994258
    %v1022 = vmul.f32 %v1002, %v1021
    %v1023 = vadd.f32 %v1022, 1.0
    %v1024 = vrcp.pop %v1023
    %v1025 = vmul.f32 %v1023, %v1024
    %v1026 = vsub.f32 1.0, %v1025
    %v1027 = vmul.f32 %v1024, %v1026
    %v1028 = vadd.f32 %v1024, %v1027
    %vm1029 = vweird.f32 %v1023
    %vm1030 = vweird.f32 %v1024
    %vm1031 = vmor %vm1029, %vm1030
    %v1032 = vsel %vm1031, %v1024, %v1028
    %v1033 = vand.u32 2147483647, %v1023
    %vm1034 = vcmp.eq.f32.partialorder %v1033, 8.507059e+37
    %v1035 = vand.u32 %v1023, 2147483648
    %v1036 = vor.u32 1.1754944e-38, %v1035
    %v1037 = vsel %vm1034, %v1036, %v1032
    %v1038 = vmul.f32 %v1013, %v1037
    %v1039 = vmin.f32 %v1038, 1.0
    %v1040 = vmax.f32 %v1039, -1.0
    %v1041 = vmul.f32 %v920, %v920
    %v1042 = vmin.f32 16.0, %v1041
    %v1043 = vmul.f32 %v1042, 2.1237322e-06
    %v1044 = vadd.f32 %v1043, 0.00028619796
    %v1045 = vmul.f32 %v1042, %v1044
    %v1046 = vadd.f32 %v1045, 0.0036580483
    %v1047 = vmul.f32 %v1042, %v1046
    %v1048 = vadd.f32 %v1047, 0.05243302
    %v1049 = vmul.f32 %v1042, %v1048
    %v1050 = vadd.f32 %v1049, 0.18741608
    %v1051 = vmul.f32 %v1042, %v1050
    %v1052 = vadd.f32 %v1051, 1.1283791
    %v1053 = vmul.f32 %v920, %v1052
    %v1054 = vmul.f32 %v1042, 3.8918573e-05
    %v1055 = vadd.f32 %v1054, 0.001143296
    %v1056 = vmul.f32 %v1042, %v1055
    %v1057 = vadd.f32 %v1056, 0.014752088
    %v1058 = vmul.f32 %v1042, %v1057
    %v1059 = vadd.f32 %v1058, 0.112945676
    %v1060 = vmul.f32 %v1042, %v1059
    %v1061 = vadd.f32 %v1060, 0.4994258
    %v1062 = vmul.f32 %v1042, %v1061
    %v1063 = vadd.f32 %v1062, 1.0
    %v1064 = vrcp.pop %v1063
    %v1065 = vmul.f32 %v1063, %v1064
    %v1066 = vsub.f32 1.0, %v1065
    %v1067 = vmul.f32 %v1064, %v1066
    %v1068 = vadd.f32 %v1064, %v1067
    %vm1069 = vweird.f32 %v1063
    %vm1070 = vweird.f32 %v1064
    %vm1071 = vmor %vm1069, %vm1070
    %v1072 = vsel %vm1071, %v1064, %v1068
    %v1073 = vand.u32 2147483647, %v1063
    %vm1074 = vcmp.eq.f32.partialorder %v1073, 8.507059e+37
    %v1075 = vand.u32 %v1063, 2147483648
    %v1076 = vor.u32 1.1754944e-38, %v1075
    %v1077 = vsel %vm1074, %v1076, %v1072
    %v1078 = vmul.f32 %v1053, %v1077
    %v1079 = vmin.f32 %v1078, 1.0
    %v1080 = vmax.f32 %v1079, -1.0
    %v1081 = vadd.f32 %v960, 1.0
    %v1082 = vadd.f32 %v1000, 1.0
    %v1083 = vadd.f32 %v1040, 1.0
    %v1084 = vadd.f32 %v1080, 1.0
    %v1085 = vmul.f32 %v913, %v1081
    %v1086 = vmul.f32 %v914, %v1082
    %v1087 = vmul.f32 %v915, %v1083
    %v1088 = vmul.f32 %v916, %v1084
    %v1089 = vpack.c.bf16 %v1087, %v1085
    %v1090 = vpack.c.bf16 %v1088, %v1086
    %v1091 = vld [vmem:[%s6] sm:$0xf]
    %v1092 = vld [vmem:[%s6 + $0x4] sm:$0xf]
    %v1093 = vld [vmem:[%s6 + $0x8] sm:$0xf]
    %v1094 = vld [vmem:[%s6 + $0xc] sm:$0xf]
    %v1095 = vld [vmem:[%s6 + $0x10] sm:$0xf]
    %v1096 = vld [vmem:[%s6 + $0x14] sm:$0xf]
    %v1097 = vld [vmem:[%s6 + $0x18] sm:$0xf]
    %v1098 = vld [vmem:[%s6 + $0x1c] sm:$0xf]
    %v1099 = vld [vmem:[%s6 + $0x20] sm:$0xf]
    %v1100 = vld [vmem:[%s6 + $0x24] sm:$0xf]
    %v1101 = vld [vmem:[%s6 + $0x28] sm:$0xf]
    %v1102 = vld [vmem:[%s6 + $0x2c] sm:$0xf]
    %v1103 = vld [vmem:[%s6 + $0x30] sm:$0xf]
    %v1104 = vld [vmem:[%s6 + $0x34] sm:$0xf]
    %v1105 = vld [vmem:[%s6 + $0x38] sm:$0xf]
    %v1106 = vld [vmem:[%s6 + $0x3c] sm:$0xf]
    %v1107 = vld [vmem:[%s6 + $0x40] sm:$0xf]
    %v1108 = vld [vmem:[%s6 + $0x44] sm:$0xf]
    %v1109 = vld [vmem:[%s6 + $0x48] sm:$0xf]
    %v1110 = vld [vmem:[%s6 + $0x4c] sm:$0xf]
    %v1111 = vld [vmem:[%s6 + $0x50] sm:$0xf]
    %v1112 = vld [vmem:[%s6 + $0x54] sm:$0xf]
    %v1113 = vld [vmem:[%s6 + $0x58] sm:$0xf]
    %v1114 = vld [vmem:[%s6 + $0x5c] sm:$0xf]
    %v1139 = vunpack.c.l.b16 %v1091
    %v1140 = vunpack.c.l.b16 %v1092
    %v1141 = vunpack.c.l.b16 %v1093
    %v1142 = vunpack.c.l.b16 %v1094
    %v1143 = vunpack.c.l.b16 %v1095
    %v1144 = vunpack.c.l.b16 %v1096
    %v1145 = vunpack.c.l.b16 %v1097
    %v1146 = vunpack.c.l.b16 %v1098
    %v1147 = vunpack.c.l.b16 %v1099
    %v1148 = vunpack.c.l.b16 %v1100
    %v1149 = vunpack.c.l.b16 %v1101
    %v1150 = vunpack.c.l.b16 %v1102
    %v1151 = vunpack.c.l.b16 %v1103
    %v1152 = vunpack.c.l.b16 %v1104
    %v1153 = vunpack.c.l.b16 %v1105
    %v1154 = vunpack.c.l.b16 %v1106
    %v1155 = vunpack.c.l.b16 %v1107
    %v1156 = vunpack.c.l.b16 %v1108
    %v1157 = vunpack.c.l.b16 %v1109
    %v1158 = vunpack.c.l.b16 %v1110
    %v1159 = vunpack.c.l.b16 %v1111
    %v1160 = vunpack.c.l.b16 %v1112
    %v1161 = vunpack.c.l.b16 %v1113
    %v1162 = vunpack.c.l.b16 %v1114
    %v1163 = vpack.c.b16 %v1140, %v1139
    %v1164 = vpack.c.b16 %v1142, %v1141
    %v1165 = vpack.c.b16 %v1144, %v1143
    %v1166 = vpack.c.b16 %v1146, %v1145
    %v1167 = vpack.c.b16 %v1148, %v1147
    %v1168 = vpack.c.b16 %v1150, %v1149
    %v1169 = vpack.c.b16 %v1152, %v1151
    %v1170 = vpack.c.b16 %v1154, %v1153
    %v1171 = vpack.c.b16 %v1156, %v1155
    %v1172 = vpack.c.b16 %v1158, %v1157
    %v1173 = vpack.c.b16 %v1160, %v1159
    %v1174 = vpack.c.b16 %v1162, %v1161
    %vm1187 = vcmask 523264
    %v1189 = vsel %vm1187, %v1090, 0
    %1191 = vmatpush.bf16.msra.mxu0 %v1170
    %1192 = vmatpush.bf16.msra.mxu0 %v1169
    %1193 = vmatpush.bf16.msra.mxu0 %v1168
    %1194 = vmatpush.bf16.msra.mxu0 %v1167
    %1195 = vmatpush.bf16.msra.mxu0 %v1166
    %1196 = vmatpush.bf16.msra.mxu0 %v1165
    %1197 = vmatpush.bf16.msra.mxu0 %v1164
    %1198 = vmatpush.bf16.msra.mxu0 %v1163
    %1199 = vmatmul.bf16.gmra.mxu0 %v1089
    %v1200 = vpop.f32.mrf.mxu0
    %v1201 = vadd.f32 %v214, %v1200
    %v1202 = vpop.f32.mrf.mxu0
    %v1203 = vadd.f32 %v214, %v1202
    %1204 = vdwg.mxu0
    %1205 = vmatpush.bf16.msra.mxu0 0
    %1206 = vmatpush.bf16.msra.mxu0 0
    %1207 = vmatpush.bf16.msra.mxu0 0
    %1208 = vmatpush.bf16.msra.mxu0 0
    %1209 = vmatpush.bf16.msra.mxu0 %v1174
    %1210 = vmatpush.bf16.msra.mxu0 %v1173
    %1211 = vmatpush.bf16.msra.mxu0 %v1172
    %1212 = vmatpush.bf16.msra.mxu0 %v1171
    %1213 = vmatmul.bf16.gmra.mxu0 %v1189
    %v1214 = vpop.f32.mrf.mxu0
    %v1215 = vadd.f32 %v1201, %v1214
    %v1216 = vpop.f32.mrf.mxu0
    %v1217 = vadd.f32 %v1203, %v1216
    %1218 = vdwg.mxu0
    %v1219 = vadd.f32 %v1215, %v838
    %v1220 = vadd.f32 %v1217, %v839
    %v1221 = vsel %vm152, %v1219, 0.0
    %1222 = vadd.xlane.f32.xlu0 %v1221
    %v1223 = vpop.xlane.xlu0 %1222
    %v1224 = vsel %vm152, %v1220, 0.0
    %1225 = vadd.xlane.f32.xlu0 %v1224
    %v1226 = vpop.xlane.xlu0 %1225
    %v1227 = vmul.f32 %v1223, %v165
    %v1228 = vmul.f32 %v1226, %v165
    %v1229 = vsub.f32 %v1219, %v1227
    %v1230 = vsub.f32 %v1220, %v1228
    %v1231 = vmul.f32 %v1229, %v1229
    %v1232 = vmul.f32 %v1230, %v1230
    %v1233 = vsel %vm152, %v1231, 0.0
    %1234 = vadd.xlane.f32.xlu0 %v1233
    %v1235 = vpop.xlane.xlu0 %1234
    %v1236 = vsel %vm152, %v1232, 0.0
    %1237 = vadd.xlane.f32.xlu0 %v1236
    %v1238 = vpop.xlane.xlu0 %1237
    %v1239 = vmul.f32 %v1235, %v165
    %v1240 = vmul.f32 %v1238, %v165
    %v1241 = vadd.f32 %v1239, 1e-12
    %v1242 = vadd.f32 %v1240, 1e-12
    %v1243 = vrsqrt.pop %v1241
    %v1244 = vmul.f32 %v1243, %v1241
    %v1245 = vmul.f32 %v1244, %v1243
    %v1246 = vmul.f32 0.5, %v1245
    %v1247 = vsub.f32 1.5, %v1246
    %v1248 = vmul.f32 %v1243, %v1247
    %vm1249 = vweird.f32 %v1241
    %vm1250 = vweird.f32 %v1243
    %vm1251 = vmor %vm1249, %vm1250
    %v1252 = vsel %vm1251, %v1243, %v1248
    %v1253 = vrsqrt.pop %v1242
    %v1254 = vmul.f32 %v1253, %v1242
    %v1255 = vmul.f32 %v1254, %v1253
    %v1256 = vmul.f32 0.5, %v1255
    %v1257 = vsub.f32 1.5, %v1256
    %v1258 = vmul.f32 %v1253, %v1257
    %vm1259 = vweird.f32 %v1242
    %vm1260 = vweird.f32 %v1253
    %vm1261 = vmor %vm1259, %vm1260
    %v1262 = vsel %vm1261, %v1253, %v1258
    %v1263 = vmul.f32 %v1229, %v1252
    %v1264 = vmul.f32 %v1230, %v1262
    %v1265 = vmul.f32 %v1263, %v217
    %v1266 = vmul.f32 %v1264, %v217
    %v1267 = vadd.f32 %v1265, %v218
    %v1268 = vadd.f32 %v1266, %v218
    %s1269 = scalar_lea.vmem %s7, 16
    %v1270 = vld [vmem:[%s1269] ss:$8 sm:$0x3]
    %v1271 = vld [vmem:[%s7 + $0x11] ss:$0 sm:$0xff]
    %s1272 = scalar_lea.vmem %s7, 18
    %v1273 = vld [vmem:[%s1272] ss:$8 sm:$0x3]
    %v1274 = vld [vmem:[%s7 + $0x13] ss:$0 sm:$0xff]
    %v1275 = vld [vmem:[%s7 + $0x14] ss:$0 sm:$0xff]
    %v1276 = vld [vmem:[%s7 + $0x15] ss:$0 sm:$0xff]
    %v1277 = vld [vmem:[%s7 + $0x16] ss:$0 sm:$0xff]
    %v1278 = vld [vmem:[%s7 + $0x17] ss:$0 sm:$0xff]
    %v1279 = vpack.c.bf16 %v1268, %v1267
    %s1280 = scalar_lea.vmem %s3, 48
    %v1281 = vld [vmem:[%s1280] sm:$0xff]
    %v1282 = vld [vmem:[%s1280 + $0x8] sm:$0xff]
    %v1283 = vld [vmem:[%s1280 + $0x10] sm:$0xff]
    %v1284 = vld [vmem:[%s1280 + $0x18] sm:$0xff]
    %v1285 = vld [vmem:[%s1280 + $0x20] sm:$0xff]
    %v1286 = vld [vmem:[%s1280 + $0x28] sm:$0xff]
    %v1288 = vperm.slane %v1270, 0
    %v1289 = vperm.slane %v1270, 1
    %v1298 = vunpack.c.l.b16 %v1281
    %v1299 = vunpack.c.h.b16 %v1281
    %v1300 = vunpack.c.l.b16 %v1282
    %v1301 = vunpack.c.h.b16 %v1282
    %v1302 = vunpack.c.l.b16 %v1283
    %v1303 = vunpack.c.h.b16 %v1283
    %v1304 = vunpack.c.l.b16 %v1284
    %v1305 = vunpack.c.h.b16 %v1284
    %v1306 = vunpack.c.l.b16 %v1285
    %v1307 = vunpack.c.h.b16 %v1285
    %v1308 = vunpack.c.l.b16 %v1286
    %v1309 = vunpack.c.h.b16 %v1286
    %v1310 = vpack.c.b16 %v1300, %v1298
    %v1311 = vpack.c.b16 %v1301, %v1299
    %v1312 = vpack.c.b16 %v1304, %v1302
    %v1313 = vpack.c.b16 %v1305, %v1303
    %v1314 = vpack.c.b16 %v1308, %v1306
    %v1315 = vpack.c.b16 %v1309, %v1307
    %v1323 = vsel %vm152, %v1279, 0
    %1325 = vmatpush.bf16.msra.mxu0 0
    %1326 = vmatpush.bf16.msra.mxu0 0
    %1327 = vmatpush.bf16.msra.mxu0 0
    %1328 = vmatpush.bf16.msra.mxu0 0
    %1329 = vmatpush.bf16.msra.mxu0 0
    %1330 = vmatpush.bf16.msra.mxu0 %v1314
    %1331 = vmatpush.bf16.msra.mxu0 %v1312
    %1332 = vmatpush.bf16.msra.mxu0 %v1310
    %1333 = vmatmul.bf16.gmra.mxu0 %v1323
    %v1334 = vpop.f32.mrf.mxu0
    %v1335 = vadd.f32 %v1288, %v1334
    %v1336 = vpop.f32.mrf.mxu0
    %v1337 = vadd.f32 %v1288, %v1336
    %1338 = vdwg.mxu0
    %1339 = vmatpush.bf16.msra.mxu0 0
    %1340 = vmatpush.bf16.msra.mxu0 0
    %1341 = vmatpush.bf16.msra.mxu0 0
    %1342 = vmatpush.bf16.msra.mxu0 0
    %1343 = vmatpush.bf16.msra.mxu0 0
    %1344 = vmatpush.bf16.msra.mxu0 %v1315
    %1345 = vmatpush.bf16.msra.mxu0 %v1313
    %1346 = vmatpush.bf16.msra.mxu0 %v1311
    %1347 = vmatmul.bf16.gmra.mxu0 %v1323
    %v1348 = vpop.f32.mrf.mxu0
    %v1349 = vadd.f32 %v1289, %v1348
    %v1350 = vpop.f32.mrf.mxu0
    %v1351 = vadd.f32 %v1289, %v1350
    %1352 = vdwg.mxu0
    %v1353 = vpack.c.bf16 %v1337, %v1335
    %1355 = vrot.lane.b32.xlu0 %v1353, 80
    %v1356 = vpop.permute.xlu0 %1355
    %v1358 = vsel %vm296, %v1353, 0
    %v1361 = vsel %vm296, %v1356, 0
    %1363 = vmatpush.bf16.xpose.msra.mxu0 0
    %1364 = vmatpush.bf16.xpose.msra.mxu0 0
    %1365 = vmatpush.bf16.xpose.msra.mxu0 0
    %1366 = vmatpush.bf16.xpose.msra.mxu0 0
    %1367 = vmatpush.bf16.xpose.msra.mxu0 0
    %1368 = vmatpush.bf16.xpose.msra.mxu0 0
    %1369 = vmatpush.bf16.xpose.msra.mxu0 0
    %1370 = vmatpush.bf16.xpose.msra.mxu0 %v1361
    %1371 = vmatmul.bf16.gmra.mxu0 %v1358
    %v1372 = vpop.f32.mrf.mxu0
    %v1373 = vadd.f32 %v208, %v1372
    %v1374 = vpop.f32.mrf.mxu0
    %v1375 = vadd.f32 %v209, %v1374
    %1376 = vdwg.mxu0
    %v1377 = vsel %vm317, %v1373, -inf
    %1378 = vmax.xlane.f32.xlu0 %v1377
    %v1379 = vpop.xlane.xlu0 %1378
    %v1380 = vsel %vm317, %v1375, -inf
    %1381 = vmax.xlane.f32.xlu0 %v1380
    %v1382 = vpop.xlane.xlu0 %1381
    %v1383 = vsub.f32 %v1373, %v1379
    %v1384 = vsub.f32 %v1375, %v1382
    %v1385 = vmul.f32 %v1383, 1.442695
    %v1386 = vpow.pop %v1385
    %v1387 = vmul.f32 %v1384, 1.442695
    %v1388 = vpow.pop %v1387
    %v1389 = vsel %vm317, %v1386, 0.0
    %1390 = vadd.xlane.f32.xlu0 %v1389
    %v1391 = vpop.xlane.xlu0 %1390
    %v1392 = vsel %vm317, %v1388, 0.0
    %1393 = vadd.xlane.f32.xlu0 %v1392
    %v1394 = vpop.xlane.xlu0 %1393
    %v1395 = vrcp.pop %v1391
    %v1396 = vrcp.pop %v1394
    %v1397 = vmul.f32 %v1386, %v1395
    %v1398 = vmul.f32 %v1388, %v1396
    %v1399 = vpack.c.bf16 %v1398, %v1397
    %1400 = vrot.lane.b32.xlu0 %v1353, 32
    %v1401 = vpop.permute.xlu0 %1400
    %v1404 = vsel %vm317, %v1399, 0
    %1406 = vmatpush.bf16.msra.mxu0 0
    %1407 = vmatpush.bf16.msra.mxu0 0
    %1408 = vmatpush.bf16.msra.mxu0 0
    %1409 = vmatpush.bf16.msra.mxu0 0
    %1410 = vmatpush.bf16.msra.mxu0 0
    %1411 = vmatpush.bf16.msra.mxu0 0
    %1412 = vmatpush.bf16.msra.mxu0 0
    %1413 = vmatpush.bf16.msra.mxu0 %v1401
    %1414 = vmatmul.bf16.gmra.mxu0 %v1404
    %v1415 = vpop.f32.mrf.mxu0
    %v1416 = vadd.f32 0.0, %v1415
    %v1417 = vpop.f32.mrf.mxu0
    %v1418 = vadd.f32 0.0, %v1417
    %1419 = vdwg.mxu0
    %1420 = vrot.lane.b32.xlu0 %v1353, 120
    %v1421 = vpop.permute.xlu0 %1420
    %1422 = vrot.lane.b32.xlu0 %v1353, 72
    %v1423 = vpop.permute.xlu0 %1422
    %v1425 = vsel %vm296, %v1421, 0
    %v1428 = vsel %vm296, %v1423, 0
    %1430 = vmatpush.bf16.xpose.msra.mxu0 0
    %1431 = vmatpush.bf16.xpose.msra.mxu0 0
    %1432 = vmatpush.bf16.xpose.msra.mxu0 0
    %1433 = vmatpush.bf16.xpose.msra.mxu0 0
    %1434 = vmatpush.bf16.xpose.msra.mxu0 0
    %1435 = vmatpush.bf16.xpose.msra.mxu0 0
    %1436 = vmatpush.bf16.xpose.msra.mxu0 0
    %1437 = vmatpush.bf16.xpose.msra.mxu0 %v1428
    %1438 = vmatmul.bf16.gmra.mxu0 %v1425
    %v1439 = vpop.f32.mrf.mxu0
    %v1440 = vadd.f32 %v208, %v1439
    %v1441 = vpop.f32.mrf.mxu0
    %v1442 = vadd.f32 %v209, %v1441
    %1443 = vdwg.mxu0
    %v1444 = vsel %vm317, %v1440, -inf
    %1445 = vmax.xlane.f32.xlu0 %v1444
    %v1446 = vpop.xlane.xlu0 %1445
    %v1447 = vsel %vm317, %v1442, -inf
    %1448 = vmax.xlane.f32.xlu0 %v1447
    %v1449 = vpop.xlane.xlu0 %1448
    %v1450 = vsub.f32 %v1440, %v1446
    %v1451 = vsub.f32 %v1442, %v1449
    %v1452 = vmul.f32 %v1450, 1.442695
    %v1453 = vpow.pop %v1452
    %v1454 = vmul.f32 %v1451, 1.442695
    %v1455 = vpow.pop %v1454
    %v1456 = vsel %vm317, %v1453, 0.0
    %1457 = vadd.xlane.f32.xlu0 %v1456
    %v1458 = vpop.xlane.xlu0 %1457
    %v1459 = vsel %vm317, %v1455, 0.0
    %1460 = vadd.xlane.f32.xlu0 %v1459
    %v1461 = vpop.xlane.xlu0 %1460
    %v1462 = vrcp.pop %v1458
    %v1463 = vrcp.pop %v1461
    %v1464 = vmul.f32 %v1453, %v1462
    %v1465 = vmul.f32 %v1455, %v1463
    %v1466 = vpack.c.bf16 %v1465, %v1464
    %1467 = vrot.lane.b32.xlu0 %v1353, 24
    %v1468 = vpop.permute.xlu0 %1467
    %v1471 = vsel %vm317, %v1466, 0
    %1473 = vmatpush.bf16.msra.mxu0 0
    %1474 = vmatpush.bf16.msra.mxu0 0
    %1475 = vmatpush.bf16.msra.mxu0 0
    %1476 = vmatpush.bf16.msra.mxu0 0
    %1477 = vmatpush.bf16.msra.mxu0 0
    %1478 = vmatpush.bf16.msra.mxu0 0
    %1479 = vmatpush.bf16.msra.mxu0 0
    %1480 = vmatpush.bf16.msra.mxu0 %v1468
    %1481 = vmatmul.bf16.gmra.mxu0 %v1471
    %v1482 = vpop.f32.mrf.mxu0
    %v1483 = vadd.f32 0.0, %v1482
    %v1484 = vpop.f32.mrf.mxu0
    %v1485 = vadd.f32 0.0, %v1484
    %1486 = vdwg.mxu0
    %1487 = vrot.lane.b32.xlu0 %v1353, 112
    %v1488 = vpop.permute.xlu0 %1487
    %1489 = vrot.lane.b32.xlu0 %v1353, 64
    %v1490 = vpop.permute.xlu0 %1489
    %v1492 = vsel %vm296, %v1488, 0
    %v1495 = vsel %vm296, %v1490, 0
    %1497 = vmatpush.bf16.xpose.msra.mxu0 0
    %1498 = vmatpush.bf16.xpose.msra.mxu0 0
    %1499 = vmatpush.bf16.xpose.msra.mxu0 0
    %1500 = vmatpush.bf16.xpose.msra.mxu0 0
    %1501 = vmatpush.bf16.xpose.msra.mxu0 0
    %1502 = vmatpush.bf16.xpose.msra.mxu0 0
    %1503 = vmatpush.bf16.xpose.msra.mxu0 0
    %1504 = vmatpush.bf16.xpose.msra.mxu0 %v1495
    %1505 = vmatmul.bf16.gmra.mxu0 %v1492
    %v1506 = vpop.f32.mrf.mxu0
    %v1507 = vadd.f32 %v208, %v1506
    %v1508 = vpop.f32.mrf.mxu0
    %v1509 = vadd.f32 %v209, %v1508
    %1510 = vdwg.mxu0
    %v1511 = vsel %vm317, %v1507, -inf
    %1512 = vmax.xlane.f32.xlu0 %v1511
    %v1513 = vpop.xlane.xlu0 %1512
    %v1514 = vsel %vm317, %v1509, -inf
    %1515 = vmax.xlane.f32.xlu0 %v1514
    %v1516 = vpop.xlane.xlu0 %1515
    %v1517 = vsub.f32 %v1507, %v1513
    %v1518 = vsub.f32 %v1509, %v1516
    %v1519 = vmul.f32 %v1517, 1.442695
    %v1520 = vpow.pop %v1519
    %v1521 = vmul.f32 %v1518, 1.442695
    %v1522 = vpow.pop %v1521
    %v1523 = vsel %vm317, %v1520, 0.0
    %1524 = vadd.xlane.f32.xlu0 %v1523
    %v1525 = vpop.xlane.xlu0 %1524
    %v1526 = vsel %vm317, %v1522, 0.0
    %1527 = vadd.xlane.f32.xlu0 %v1526
    %v1528 = vpop.xlane.xlu0 %1527
    %v1529 = vrcp.pop %v1525
    %v1530 = vrcp.pop %v1528
    %v1531 = vmul.f32 %v1520, %v1529
    %v1532 = vmul.f32 %v1522, %v1530
    %v1533 = vpack.c.bf16 %v1532, %v1531
    %1534 = vrot.lane.b32.xlu0 %v1353, 16
    %v1535 = vpop.permute.xlu0 %1534
    %v1538 = vsel %vm317, %v1533, 0
    %1540 = vmatpush.bf16.msra.mxu0 0
    %1541 = vmatpush.bf16.msra.mxu0 0
    %1542 = vmatpush.bf16.msra.mxu0 0
    %1543 = vmatpush.bf16.msra.mxu0 0
    %1544 = vmatpush.bf16.msra.mxu0 0
    %1545 = vmatpush.bf16.msra.mxu0 0
    %1546 = vmatpush.bf16.msra.mxu0 0
    %1547 = vmatpush.bf16.msra.mxu0 %v1535
    %1548 = vmatmul.bf16.gmra.mxu0 %v1538
    %v1549 = vpop.f32.mrf.mxu0
    %v1550 = vadd.f32 0.0, %v1549
    %v1551 = vpop.f32.mrf.mxu0
    %v1552 = vadd.f32 0.0, %v1551
    %1553 = vdwg.mxu0
    %1554 = vrot.lane.b32.xlu0 %v1353, 104
    %v1555 = vpop.permute.xlu0 %1554
    %1556 = vrot.lane.b32.xlu0 %v1353, 56
    %v1557 = vpop.permute.xlu0 %1556
    %v1559 = vsel %vm296, %v1555, 0
    %v1562 = vsel %vm296, %v1557, 0
    %1564 = vmatpush.bf16.xpose.msra.mxu0 0
    %1565 = vmatpush.bf16.xpose.msra.mxu0 0
    %1566 = vmatpush.bf16.xpose.msra.mxu0 0
    %1567 = vmatpush.bf16.xpose.msra.mxu0 0
    %1568 = vmatpush.bf16.xpose.msra.mxu0 0
    %1569 = vmatpush.bf16.xpose.msra.mxu0 0
    %1570 = vmatpush.bf16.xpose.msra.mxu0 0
    %1571 = vmatpush.bf16.xpose.msra.mxu0 %v1562
    %1572 = vmatmul.bf16.gmra.mxu0 %v1559
    %v1573 = vpop.f32.mrf.mxu0
    %v1574 = vadd.f32 %v208, %v1573
    %v1575 = vpop.f32.mrf.mxu0
    %v1576 = vadd.f32 %v209, %v1575
    %1577 = vdwg.mxu0
    %v1578 = vsel %vm317, %v1574, -inf
    %1579 = vmax.xlane.f32.xlu0 %v1578
    %v1580 = vpop.xlane.xlu0 %1579
    %v1581 = vsel %vm317, %v1576, -inf
    %1582 = vmax.xlane.f32.xlu0 %v1581
    %v1583 = vpop.xlane.xlu0 %1582
    %v1584 = vsub.f32 %v1574, %v1580
    %v1585 = vsub.f32 %v1576, %v1583
    %v1586 = vmul.f32 %v1584, 1.442695
    %v1587 = vpow.pop %v1586
    %v1588 = vmul.f32 %v1585, 1.442695
    %v1589 = vpow.pop %v1588
    %v1590 = vsel %vm317, %v1587, 0.0
    %1591 = vadd.xlane.f32.xlu0 %v1590
    %v1592 = vpop.xlane.xlu0 %1591
    %v1593 = vsel %vm317, %v1589, 0.0
    %1594 = vadd.xlane.f32.xlu0 %v1593
    %v1595 = vpop.xlane.xlu0 %1594
    %v1596 = vrcp.pop %v1592
    %v1597 = vrcp.pop %v1595
    %v1598 = vmul.f32 %v1587, %v1596
    %v1599 = vmul.f32 %v1589, %v1597
    %v1600 = vpack.c.bf16 %v1599, %v1598
    %1601 = vrot.lane.b32.xlu0 %v1353, 8
    %v1602 = vpop.permute.xlu0 %1601
    %v1605 = vsel %vm317, %v1600, 0
    %1607 = vmatpush.bf16.msra.mxu0 0
    %1608 = vmatpush.bf16.msra.mxu0 0
    %1609 = vmatpush.bf16.msra.mxu0 0
    %1610 = vmatpush.bf16.msra.mxu0 0
    %1611 = vmatpush.bf16.msra.mxu0 0
    %1612 = vmatpush.bf16.msra.mxu0 0
    %1613 = vmatpush.bf16.msra.mxu0 0
    %1614 = vmatpush.bf16.msra.mxu0 %v1602
    %1615 = vmatmul.bf16.gmra.mxu0 %v1605
    %v1616 = vpop.f32.mrf.mxu0
    %v1617 = vadd.f32 0.0, %v1616
    %v1618 = vpop.f32.mrf.mxu0
    %v1619 = vadd.f32 0.0, %v1618
    %1620 = vdwg.mxu0
    %v1621 = vpack.c.bf16 %v1351, %v1349
    %1622 = vrot.lane.b32.xlu0 %v1353, 96
    %v1623 = vpop.permute.xlu0 %1622
    %1624 = vrot.lane.b32.xlu0 %v1353, 48
    %v1625 = vpop.permute.xlu0 %1624
    %v1627 = vsel %vm296, %v1623, 0
    %v1630 = vsel %vm296, %v1625, 0
    %1632 = vmatpush.bf16.xpose.msra.mxu0 0
    %1633 = vmatpush.bf16.xpose.msra.mxu0 0
    %1634 = vmatpush.bf16.xpose.msra.mxu0 0
    %1635 = vmatpush.bf16.xpose.msra.mxu0 0
    %1636 = vmatpush.bf16.xpose.msra.mxu0 0
    %1637 = vmatpush.bf16.xpose.msra.mxu0 0
    %1638 = vmatpush.bf16.xpose.msra.mxu0 0
    %1639 = vmatpush.bf16.xpose.msra.mxu0 %v1630
    %1640 = vmatmul.bf16.gmra.mxu0 %v1627
    %v1641 = vpop.f32.mrf.mxu0
    %v1642 = vadd.f32 %v208, %v1641
    %v1643 = vpop.f32.mrf.mxu0
    %v1644 = vadd.f32 %v209, %v1643
    %1645 = vdwg.mxu0
    %v1646 = vsel %vm317, %v1642, -inf
    %1647 = vmax.xlane.f32.xlu0 %v1646
    %v1648 = vpop.xlane.xlu0 %1647
    %v1649 = vsel %vm317, %v1644, -inf
    %1650 = vmax.xlane.f32.xlu0 %v1649
    %v1651 = vpop.xlane.xlu0 %1650
    %v1652 = vsub.f32 %v1642, %v1648
    %v1653 = vsub.f32 %v1644, %v1651
    %v1654 = vmul.f32 %v1652, 1.442695
    %v1655 = vpow.pop %v1654
    %v1656 = vmul.f32 %v1653, 1.442695
    %v1657 = vpow.pop %v1656
    %v1658 = vsel %vm317, %v1655, 0.0
    %1659 = vadd.xlane.f32.xlu0 %v1658
    %v1660 = vpop.xlane.xlu0 %1659
    %v1661 = vsel %vm317, %v1657, 0.0
    %1662 = vadd.xlane.f32.xlu0 %v1661
    %v1663 = vpop.xlane.xlu0 %1662
    %v1664 = vrcp.pop %v1660
    %v1665 = vrcp.pop %v1663
    %v1666 = vmul.f32 %v1655, %v1664
    %v1667 = vmul.f32 %v1657, %v1665
    %v1668 = vpack.c.bf16 %v1667, %v1666
    %v1670 = vsel %vm317, %v1668, 0
    %1672 = vmatpush.bf16.msra.mxu0 0
    %1673 = vmatpush.bf16.msra.mxu0 0
    %1674 = vmatpush.bf16.msra.mxu0 0
    %1675 = vmatpush.bf16.msra.mxu0 0
    %1676 = vmatpush.bf16.msra.mxu0 0
    %1677 = vmatpush.bf16.msra.mxu0 0
    %1678 = vmatpush.bf16.msra.mxu0 0
    %1679 = vmatpush.bf16.msra.mxu0 %v1621
    %1680 = vmatmul.bf16.gmra.mxu0 %v1670
    %v1681 = vpop.f32.mrf.mxu0
    %v1682 = vadd.f32 0.0, %v1681
    %v1683 = vpop.f32.mrf.mxu0
    %v1684 = vadd.f32 0.0, %v1683
    %1685 = vdwg.mxu0
    %1686 = vrot.lane.b32.xlu0 %v1353, 88
    %v1687 = vpop.permute.xlu0 %1686
    %1688 = vrot.lane.b32.xlu0 %v1353, 40
    %v1689 = vpop.permute.xlu0 %1688
    %v1691 = vsel %vm296, %v1687, 0
    %v1694 = vsel %vm296, %v1689, 0
    %1696 = vmatpush.bf16.xpose.msra.mxu0 0
    %1697 = vmatpush.bf16.xpose.msra.mxu0 0
    %1698 = vmatpush.bf16.xpose.msra.mxu0 0
    %1699 = vmatpush.bf16.xpose.msra.mxu0 0
    %1700 = vmatpush.bf16.xpose.msra.mxu0 0
    %1701 = vmatpush.bf16.xpose.msra.mxu0 0
    %1702 = vmatpush.bf16.xpose.msra.mxu0 0
    %1703 = vmatpush.bf16.xpose.msra.mxu0 %v1694
    %1704 = vmatmul.bf16.gmra.mxu0 %v1691
    %v1705 = vpop.f32.mrf.mxu0
    %v1706 = vadd.f32 %v208, %v1705
    %v1707 = vpop.f32.mrf.mxu0
    %v1708 = vadd.f32 %v209, %v1707
    %1709 = vdwg.mxu0
    %v1710 = vsel %vm317, %v1706, -inf
    %1711 = vmax.xlane.f32.xlu0 %v1710
    %v1712 = vpop.xlane.xlu0 %1711
    %v1713 = vsel %vm317, %v1708, -inf
    %1714 = vmax.xlane.f32.xlu0 %v1713
    %v1715 = vpop.xlane.xlu0 %1714
    %v1716 = vsub.f32 %v1706, %v1712
    %v1717 = vsub.f32 %v1708, %v1715
    %v1718 = vmul.f32 %v1716, 1.442695
    %v1719 = vpow.pop %v1718
    %v1720 = vmul.f32 %v1717, 1.442695
    %v1721 = vpow.pop %v1720
    %v1722 = vsel %vm317, %v1719, 0.0
    %1723 = vadd.xlane.f32.xlu0 %v1722
    %v1724 = vpop.xlane.xlu0 %1723
    %v1725 = vsel %vm317, %v1721, 0.0
    %1726 = vadd.xlane.f32.xlu0 %v1725
    %v1727 = vpop.xlane.xlu0 %1726
    %v1728 = vrcp.pop %v1724
    %v1729 = vrcp.pop %v1727
    %v1730 = vmul.f32 %v1719, %v1728
    %v1731 = vmul.f32 %v1721, %v1729
    %v1732 = vpack.c.bf16 %v1731, %v1730
    %1734 = vrot.lane.b32.xlu0 %v1621, 120
    %v1735 = vpop.permute.xlu0 %1734
    %v1738 = vsel %vm317, %v1732, 0
    %1740 = vmatpush.bf16.msra.mxu0 0
    %1741 = vmatpush.bf16.msra.mxu0 0
    %1742 = vmatpush.bf16.msra.mxu0 0
    %1743 = vmatpush.bf16.msra.mxu0 0
    %1744 = vmatpush.bf16.msra.mxu0 0
    %1745 = vmatpush.bf16.msra.mxu0 0
    %1746 = vmatpush.bf16.msra.mxu0 0
    %1747 = vmatpush.bf16.msra.mxu0 %v1735
    %1748 = vmatmul.bf16.gmra.mxu0 %v1738
    %v1749 = vpop.f32.mrf.mxu0
    %v1750 = vadd.f32 0.0, %v1749
    %v1751 = vpop.f32.mrf.mxu0
    %v1752 = vadd.f32 0.0, %v1751
    %1753 = vdwg.mxu0
    %1756 = vrot.lane.b32.xlu0 %v1483, 8
    %v1757 = vpop.permute.xlu0 %1756
    %1758 = vrot.lane.b32.xlu0 %v1485, 8
    %v1759 = vpop.permute.xlu0 %1758
    %1764 = vrot.lane.b32.xlu0 %v1550, 16
    %v1765 = vpop.permute.xlu0 %1764
    %1766 = vrot.lane.b32.xlu0 %v1552, 16
    %v1767 = vpop.permute.xlu0 %1766
    %1772 = vrot.lane.b32.xlu0 %v1617, 24
    %v1773 = vpop.permute.xlu0 %1772
    %1774 = vrot.lane.b32.xlu0 %v1619, 24
    %v1775 = vpop.permute.xlu0 %1774
    %1780 = vrot.lane.b32.xlu0 %v1682, 32
    %v1781 = vpop.permute.xlu0 %1780
    %1782 = vrot.lane.b32.xlu0 %v1684, 32
    %v1783 = vpop.permute.xlu0 %1782
    %1788 = vrot.lane.b32.xlu0 %v1750, 40
    %v1789 = vpop.permute.xlu0 %1788
    %1790 = vrot.lane.b32.xlu0 %v1752, 40
    %v1791 = vpop.permute.xlu0 %1790
    %v1794 = vsel %vm296, %v1416, %v1757
    %v1795 = vsel %vm296, %v1418, %v1759
    %v1796 = vsel %vm317, %v1794, %v1765
    %v1797 = vsel %vm317, %v1795, %v1767
    %v1798 = vsel %vm739, %v1796, %v1773
    %v1799 = vsel %vm739, %v1797, %v1775
    %v1800 = vsel %vm742, %v1798, %v1781
    %v1801 = vsel %vm742, %v1799, %v1783
    %v1802 = vsel %vm745, %v1800, %v1789
    %v1803 = vsel %vm745, %v1801, %v1791
    %v1804 = vpack.c.bf16 %v1803, %v1802
    %s1805 = scalar_lea.vmem %s4, 24
    %v1806 = vld [vmem:[%s1805] sm:$0xf]
    %v1807 = vld [vmem:[%s1805 + $0x4] sm:$0xf]
    %v1808 = vld [vmem:[%s1805 + $0x8] sm:$0xf]
    %v1809 = vld [vmem:[%s1805 + $0xc] sm:$0xf]
    %v1810 = vld [vmem:[%s1805 + $0x10] sm:$0xf]
    %v1811 = vld [vmem:[%s1805 + $0x14] sm:$0xf]
    %v1818 = vunpack.c.l.b16 %v1806
    %v1819 = vunpack.c.l.b16 %v1807
    %v1820 = vunpack.c.l.b16 %v1808
    %v1821 = vunpack.c.l.b16 %v1809
    %v1822 = vunpack.c.l.b16 %v1810
    %v1823 = vunpack.c.l.b16 %v1811
    %v1824 = vpack.c.b16 %v1819, %v1818
    %v1825 = vpack.c.b16 %v1821, %v1820
    %v1826 = vpack.c.b16 %v1823, %v1822
    %v1831 = vsel %vm152, %v1804, 0
    %1833 = vmatpush.bf16.msra.mxu0 0
    %1834 = vmatpush.bf16.msra.mxu0 0
    %1835 = vmatpush.bf16.msra.mxu0 0
    %1836 = vmatpush.bf16.msra.mxu0 0
    %1837 = vmatpush.bf16.msra.mxu0 0
    %1838 = vmatpush.bf16.msra.mxu0 %v1826
    %1839 = vmatpush.bf16.msra.mxu0 %v1825
    %1840 = vmatpush.bf16.msra.mxu0 %v1824
    %1841 = vmatmul.bf16.gmra.mxu0 %v1831
    %v1842 = vpop.f32.mrf.mxu0
    %v1843 = vadd.f32 %v1271, %v1842
    %v1844 = vpop.f32.mrf.mxu0
    %v1845 = vadd.f32 %v1271, %v1844
    %1846 = vdwg.mxu0
    %v1847 = vadd.f32 %v1843, %v1267
    %v1848 = vadd.f32 %v1845, %v1268
    %v1849 = vsel %vm152, %v1847, 0.0
    %1850 = vadd.xlane.f32.xlu0 %v1849
    %v1851 = vpop.xlane.xlu0 %1850
    %v1852 = vsel %vm152, %v1848, 0.0
    %1853 = vadd.xlane.f32.xlu0 %v1852
    %v1854 = vpop.xlane.xlu0 %1853
    %v1855 = vmul.f32 %v1851, %v165
    %v1856 = vmul.f32 %v1854, %v165
    %v1857 = vsub.f32 %v1847, %v1855
    %v1858 = vsub.f32 %v1848, %v1856
    %v1859 = vmul.f32 %v1857, %v1857
    %v1860 = vmul.f32 %v1858, %v1858
    %v1861 = vsel %vm152, %v1859, 0.0
    %1862 = vadd.xlane.f32.xlu0 %v1861
    %v1863 = vpop.xlane.xlu0 %1862
    %v1864 = vsel %vm152, %v1860, 0.0
    %1865 = vadd.xlane.f32.xlu0 %v1864
    %v1866 = vpop.xlane.xlu0 %1865
    %v1867 = vmul.f32 %v1863, %v165
    %v1868 = vmul.f32 %v1866, %v165
    %v1869 = vadd.f32 %v1867, 1e-12
    %v1870 = vadd.f32 %v1868, 1e-12
    %v1871 = vrsqrt.pop %v1869
    %v1872 = vmul.f32 %v1871, %v1869
    %v1873 = vmul.f32 %v1872, %v1871
    %v1874 = vmul.f32 0.5, %v1873
    %v1875 = vsub.f32 1.5, %v1874
    %v1876 = vmul.f32 %v1871, %v1875
    %vm1877 = vweird.f32 %v1869
    %vm1878 = vweird.f32 %v1871
    %vm1879 = vmor %vm1877, %vm1878
    %v1880 = vsel %vm1879, %v1871, %v1876
    %v1881 = vrsqrt.pop %v1870
    %v1882 = vmul.f32 %v1881, %v1870
    %v1883 = vmul.f32 %v1882, %v1881
    %v1884 = vmul.f32 0.5, %v1883
    %v1885 = vsub.f32 1.5, %v1884
    %v1886 = vmul.f32 %v1881, %v1885
    %vm1887 = vweird.f32 %v1870
    %vm1888 = vweird.f32 %v1881
    %vm1889 = vmor %vm1887, %vm1888
    %v1890 = vsel %vm1889, %v1881, %v1886
    %v1891 = vmul.f32 %v1857, %v1880
    %v1892 = vmul.f32 %v1858, %v1890
    %v1893 = vmul.f32 %v1891, %v1275
    %v1894 = vmul.f32 %v1892, %v1275
    %v1895 = vadd.f32 %v1893, %v1276
    %v1896 = vadd.f32 %v1894, %v1276
    %v1897 = vpack.c.bf16 %v1896, %v1895
    %s1898 = scalar_lea.vmem %s5, 48
    %v1899 = vld [vmem:[%s1898] sm:$0xff]
    %v1900 = vld [vmem:[%s1898 + $0x8] sm:$0xff]
    %v1901 = vld [vmem:[%s1898 + $0x10] sm:$0xff]
    %v1902 = vld [vmem:[%s1898 + $0x18] sm:$0xff]
    %v1903 = vld [vmem:[%s1898 + $0x20] sm:$0xff]
    %v1904 = vld [vmem:[%s1898 + $0x28] sm:$0xff]
    %v1906 = vperm.slane %v1273, 0
    %v1907 = vperm.slane %v1273, 1
    %v1916 = vunpack.c.l.b16 %v1899
    %v1917 = vunpack.c.h.b16 %v1899
    %v1918 = vunpack.c.l.b16 %v1900
    %v1919 = vunpack.c.h.b16 %v1900
    %v1920 = vunpack.c.l.b16 %v1901
    %v1921 = vunpack.c.h.b16 %v1901
    %v1922 = vunpack.c.l.b16 %v1902
    %v1923 = vunpack.c.h.b16 %v1902
    %v1924 = vunpack.c.l.b16 %v1903
    %v1925 = vunpack.c.h.b16 %v1903
    %v1926 = vunpack.c.l.b16 %v1904
    %v1927 = vunpack.c.h.b16 %v1904
    %v1928 = vpack.c.b16 %v1918, %v1916
    %v1929 = vpack.c.b16 %v1919, %v1917
    %v1930 = vpack.c.b16 %v1922, %v1920
    %v1931 = vpack.c.b16 %v1923, %v1921
    %v1932 = vpack.c.b16 %v1926, %v1924
    %v1933 = vpack.c.b16 %v1927, %v1925
    %v1941 = vsel %vm152, %v1897, 0
    %1943 = vmatpush.bf16.msra.mxu0 0
    %1944 = vmatpush.bf16.msra.mxu0 0
    %1945 = vmatpush.bf16.msra.mxu0 0
    %1946 = vmatpush.bf16.msra.mxu0 0
    %1947 = vmatpush.bf16.msra.mxu0 0
    %1948 = vmatpush.bf16.msra.mxu0 %v1932
    %1949 = vmatpush.bf16.msra.mxu0 %v1930
    %1950 = vmatpush.bf16.msra.mxu0 %v1928
    %1951 = vmatmul.bf16.gmra.mxu0 %v1941
    %v1952 = vpop.f32.mrf.mxu0
    %v1953 = vadd.f32 %v1906, %v1952
    %v1954 = vpop.f32.mrf.mxu0
    %v1955 = vadd.f32 %v1906, %v1954
    %1956 = vdwg.mxu0
    %1957 = vmatpush.bf16.msra.mxu0 0
    %1958 = vmatpush.bf16.msra.mxu0 0
    %1959 = vmatpush.bf16.msra.mxu0 0
    %1960 = vmatpush.bf16.msra.mxu0 0
    %1961 = vmatpush.bf16.msra.mxu0 0
    %1962 = vmatpush.bf16.msra.mxu0 %v1933
    %1963 = vmatpush.bf16.msra.mxu0 %v1931
    %1964 = vmatpush.bf16.msra.mxu0 %v1929
    %1965 = vmatmul.bf16.gmra.mxu0 %v1941
    %v1966 = vpop.f32.mrf.mxu0
    %v1967 = vadd.f32 %v1907, %v1966
    %v1968 = vpop.f32.mrf.mxu0
    %v1969 = vadd.f32 %v1907, %v1968
    %1970 = vdwg.mxu0
    %v1971 = vmul.f32 %v1953, 0.5
    %v1972 = vmul.f32 %v1967, 0.5
    %v1973 = vmul.f32 %v1955, 0.5
    %v1974 = vmul.f32 %v1969, 0.5
    %v1975 = vmul.f32 %v1953, 0.70710677
    %v1976 = vmul.f32 %v1967, 0.70710677
    %v1977 = vmul.f32 %v1955, 0.70710677
    %v1978 = vmul.f32 %v1969, 0.70710677
    %v1979 = vmul.f32 %v1975, %v1975
    %v1980 = vmin.f32 16.0, %v1979
    %v1981 = vmul.f32 %v1980, 2.1237322e-06
    %v1982 = vadd.f32 %v1981, 0.00028619796
    %v1983 = vmul.f32 %v1980, %v1982
    %v1984 = vadd.f32 %v1983, 0.0036580483
    %v1985 = vmul.f32 %v1980, %v1984
    %v1986 = vadd.f32 %v1985, 0.05243302
    %v1987 = vmul.f32 %v1980, %v1986
    %v1988 = vadd.f32 %v1987, 0.18741608
    %v1989 = vmul.f32 %v1980, %v1988
    %v1990 = vadd.f32 %v1989, 1.1283791
    %v1991 = vmul.f32 %v1975, %v1990
    %v1992 = vmul.f32 %v1980, 3.8918573e-05
    %v1993 = vadd.f32 %v1992, 0.001143296
    %v1994 = vmul.f32 %v1980, %v1993
    %v1995 = vadd.f32 %v1994, 0.014752088
    %v1996 = vmul.f32 %v1980, %v1995
    %v1997 = vadd.f32 %v1996, 0.112945676
    %v1998 = vmul.f32 %v1980, %v1997
    %v1999 = vadd.f32 %v1998, 0.4994258
    %v2000 = vmul.f32 %v1980, %v1999
    %v2001 = vadd.f32 %v2000, 1.0
    %v2002 = vrcp.pop %v2001
    %v2003 = vmul.f32 %v2001, %v2002
    %v2004 = vsub.f32 1.0, %v2003
    %v2005 = vmul.f32 %v2002, %v2004
    %v2006 = vadd.f32 %v2002, %v2005
    %vm2007 = vweird.f32 %v2001
    %vm2008 = vweird.f32 %v2002
    %vm2009 = vmor %vm2007, %vm2008
    %v2010 = vsel %vm2009, %v2002, %v2006
    %v2011 = vand.u32 2147483647, %v2001
    %vm2012 = vcmp.eq.f32.partialorder %v2011, 8.507059e+37
    %v2013 = vand.u32 %v2001, 2147483648
    %v2014 = vor.u32 1.1754944e-38, %v2013
    %v2015 = vsel %vm2012, %v2014, %v2010
    %v2016 = vmul.f32 %v1991, %v2015
    %v2017 = vmin.f32 %v2016, 1.0
    %v2018 = vmax.f32 %v2017, -1.0
    %v2019 = vmul.f32 %v1976, %v1976
    %v2020 = vmin.f32 16.0, %v2019
    %v2021 = vmul.f32 %v2020, 2.1237322e-06
    %v2022 = vadd.f32 %v2021, 0.00028619796
    %v2023 = vmul.f32 %v2020, %v2022
    %v2024 = vadd.f32 %v2023, 0.0036580483
    %v2025 = vmul.f32 %v2020, %v2024
    %v2026 = vadd.f32 %v2025, 0.05243302
    %v2027 = vmul.f32 %v2020, %v2026
    %v2028 = vadd.f32 %v2027, 0.18741608
    %v2029 = vmul.f32 %v2020, %v2028
    %v2030 = vadd.f32 %v2029, 1.1283791
    %v2031 = vmul.f32 %v1976, %v2030
    %v2032 = vmul.f32 %v2020, 3.8918573e-05
    %v2033 = vadd.f32 %v2032, 0.001143296
    %v2034 = vmul.f32 %v2020, %v2033
    %v2035 = vadd.f32 %v2034, 0.014752088
    %v2036 = vmul.f32 %v2020, %v2035
    %v2037 = vadd.f32 %v2036, 0.112945676
    %v2038 = vmul.f32 %v2020, %v2037
    %v2039 = vadd.f32 %v2038, 0.4994258
    %v2040 = vmul.f32 %v2020, %v2039
    %v2041 = vadd.f32 %v2040, 1.0
    %v2042 = vrcp.pop %v2041
    %v2043 = vmul.f32 %v2041, %v2042
    %v2044 = vsub.f32 1.0, %v2043
    %v2045 = vmul.f32 %v2042, %v2044
    %v2046 = vadd.f32 %v2042, %v2045
    %vm2047 = vweird.f32 %v2041
    %vm2048 = vweird.f32 %v2042
    %vm2049 = vmor %vm2047, %vm2048
    %v2050 = vsel %vm2049, %v2042, %v2046
    %v2051 = vand.u32 2147483647, %v2041
    %vm2052 = vcmp.eq.f32.partialorder %v2051, 8.507059e+37
    %v2053 = vand.u32 %v2041, 2147483648
    %v2054 = vor.u32 1.1754944e-38, %v2053
    %v2055 = vsel %vm2052, %v2054, %v2050
    %v2056 = vmul.f32 %v2031, %v2055
    %v2057 = vmin.f32 %v2056, 1.0
    %v2058 = vmax.f32 %v2057, -1.0
    %v2059 = vmul.f32 %v1977, %v1977
    %v2060 = vmin.f32 16.0, %v2059
    %v2061 = vmul.f32 %v2060, 2.1237322e-06
    %v2062 = vadd.f32 %v2061, 0.00028619796
    %v2063 = vmul.f32 %v2060, %v2062
    %v2064 = vadd.f32 %v2063, 0.0036580483
    %v2065 = vmul.f32 %v2060, %v2064
    %v2066 = vadd.f32 %v2065, 0.05243302
    %v2067 = vmul.f32 %v2060, %v2066
    %v2068 = vadd.f32 %v2067, 0.18741608
    %v2069 = vmul.f32 %v2060, %v2068
    %v2070 = vadd.f32 %v2069, 1.1283791
    %v2071 = vmul.f32 %v1977, %v2070
    %v2072 = vmul.f32 %v2060, 3.8918573e-05
    %v2073 = vadd.f32 %v2072, 0.001143296
    %v2074 = vmul.f32 %v2060, %v2073
    %v2075 = vadd.f32 %v2074, 0.014752088
    %v2076 = vmul.f32 %v2060, %v2075
    %v2077 = vadd.f32 %v2076, 0.112945676
    %v2078 = vmul.f32 %v2060, %v2077
    %v2079 = vadd.f32 %v2078, 0.4994258
    %v2080 = vmul.f32 %v2060, %v2079
    %v2081 = vadd.f32 %v2080, 1.0
    %v2082 = vrcp.pop %v2081
    %v2083 = vmul.f32 %v2081, %v2082
    %v2084 = vsub.f32 1.0, %v2083
    %v2085 = vmul.f32 %v2082, %v2084
    %v2086 = vadd.f32 %v2082, %v2085
    %vm2087 = vweird.f32 %v2081
    %vm2088 = vweird.f32 %v2082
    %vm2089 = vmor %vm2087, %vm2088
    %v2090 = vsel %vm2089, %v2082, %v2086
    %v2091 = vand.u32 2147483647, %v2081
    %vm2092 = vcmp.eq.f32.partialorder %v2091, 8.507059e+37
    %v2093 = vand.u32 %v2081, 2147483648
    %v2094 = vor.u32 1.1754944e-38, %v2093
    %v2095 = vsel %vm2092, %v2094, %v2090
    %v2096 = vmul.f32 %v2071, %v2095
    %v2097 = vmin.f32 %v2096, 1.0
    %v2098 = vmax.f32 %v2097, -1.0
    %v2099 = vmul.f32 %v1978, %v1978
    %v2100 = vmin.f32 16.0, %v2099
    %v2101 = vmul.f32 %v2100, 2.1237322e-06
    %v2102 = vadd.f32 %v2101, 0.00028619796
    %v2103 = vmul.f32 %v2100, %v2102
    %v2104 = vadd.f32 %v2103, 0.0036580483
    %v2105 = vmul.f32 %v2100, %v2104
    %v2106 = vadd.f32 %v2105, 0.05243302
    %v2107 = vmul.f32 %v2100, %v2106
    %v2108 = vadd.f32 %v2107, 0.18741608
    %v2109 = vmul.f32 %v2100, %v2108
    %v2110 = vadd.f32 %v2109, 1.1283791
    %v2111 = vmul.f32 %v1978, %v2110
    %v2112 = vmul.f32 %v2100, 3.8918573e-05
    %v2113 = vadd.f32 %v2112, 0.001143296
    %v2114 = vmul.f32 %v2100, %v2113
    %v2115 = vadd.f32 %v2114, 0.014752088
    %v2116 = vmul.f32 %v2100, %v2115
    %v2117 = vadd.f32 %v2116, 0.112945676
    %v2118 = vmul.f32 %v2100, %v2117
    %v2119 = vadd.f32 %v2118, 0.4994258
    %v2120 = vmul.f32 %v2100, %v2119
    %v2121 = vadd.f32 %v2120, 1.0
    %v2122 = vrcp.pop %v2121
    %v2123 = vmul.f32 %v2121, %v2122
    %v2124 = vsub.f32 1.0, %v2123
    %v2125 = vmul.f32 %v2122, %v2124
    %v2126 = vadd.f32 %v2122, %v2125
    %vm2127 = vweird.f32 %v2121
    %vm2128 = vweird.f32 %v2122
    %vm2129 = vmor %vm2127, %vm2128
    %v2130 = vsel %vm2129, %v2122, %v2126
    %v2131 = vand.u32 2147483647, %v2121
    %vm2132 = vcmp.eq.f32.partialorder %v2131, 8.507059e+37
    %v2133 = vand.u32 %v2121, 2147483648
    %v2134 = vor.u32 1.1754944e-38, %v2133
    %v2135 = vsel %vm2132, %v2134, %v2130
    %v2136 = vmul.f32 %v2111, %v2135
    %v2137 = vmin.f32 %v2136, 1.0
    %v2138 = vmax.f32 %v2137, -1.0
    %v2139 = vadd.f32 %v2018, 1.0
    %v2140 = vadd.f32 %v2058, 1.0
    %v2141 = vadd.f32 %v2098, 1.0
    %v2142 = vadd.f32 %v2138, 1.0
    %v2143 = vmul.f32 %v1971, %v2139
    %v2144 = vmul.f32 %v1972, %v2140
    %v2145 = vmul.f32 %v1973, %v2141
    %v2146 = vmul.f32 %v1974, %v2142
    %v2147 = vpack.c.bf16 %v2145, %v2143
    %v2148 = vpack.c.bf16 %v2146, %v2144
    %s2149 = scalar_lea.vmem %s6, 96
    %v2150 = vld [vmem:[%s2149] sm:$0xf]
    %v2151 = vld [vmem:[%s2149 + $0x4] sm:$0xf]
    %v2152 = vld [vmem:[%s2149 + $0x8] sm:$0xf]
    %v2153 = vld [vmem:[%s2149 + $0xc] sm:$0xf]
    %v2154 = vld [vmem:[%s2149 + $0x10] sm:$0xf]
    %v2155 = vld [vmem:[%s2149 + $0x14] sm:$0xf]
    %v2156 = vld [vmem:[%s2149 + $0x18] sm:$0xf]
    %v2157 = vld [vmem:[%s2149 + $0x1c] sm:$0xf]
    %v2158 = vld [vmem:[%s2149 + $0x20] sm:$0xf]
    %v2159 = vld [vmem:[%s2149 + $0x24] sm:$0xf]
    %v2160 = vld [vmem:[%s2149 + $0x28] sm:$0xf]
    %v2161 = vld [vmem:[%s2149 + $0x2c] sm:$0xf]
    %v2162 = vld [vmem:[%s2149 + $0x30] sm:$0xf]
    %v2163 = vld [vmem:[%s2149 + $0x34] sm:$0xf]
    %v2164 = vld [vmem:[%s2149 + $0x38] sm:$0xf]
    %v2165 = vld [vmem:[%s2149 + $0x3c] sm:$0xf]
    %v2166 = vld [vmem:[%s2149 + $0x40] sm:$0xf]
    %v2167 = vld [vmem:[%s2149 + $0x44] sm:$0xf]
    %v2168 = vld [vmem:[%s2149 + $0x48] sm:$0xf]
    %v2169 = vld [vmem:[%s2149 + $0x4c] sm:$0xf]
    %v2170 = vld [vmem:[%s2149 + $0x50] sm:$0xf]
    %v2171 = vld [vmem:[%s2149 + $0x54] sm:$0xf]
    %v2172 = vld [vmem:[%s2149 + $0x58] sm:$0xf]
    %v2173 = vld [vmem:[%s2149 + $0x5c] sm:$0xf]
    %v2198 = vunpack.c.l.b16 %v2150
    %v2199 = vunpack.c.l.b16 %v2151
    %v2200 = vunpack.c.l.b16 %v2152
    %v2201 = vunpack.c.l.b16 %v2153
    %v2202 = vunpack.c.l.b16 %v2154
    %v2203 = vunpack.c.l.b16 %v2155
    %v2204 = vunpack.c.l.b16 %v2156
    %v2205 = vunpack.c.l.b16 %v2157
    %v2206 = vunpack.c.l.b16 %v2158
    %v2207 = vunpack.c.l.b16 %v2159
    %v2208 = vunpack.c.l.b16 %v2160
    %v2209 = vunpack.c.l.b16 %v2161
    %v2210 = vunpack.c.l.b16 %v2162
    %v2211 = vunpack.c.l.b16 %v2163
    %v2212 = vunpack.c.l.b16 %v2164
    %v2213 = vunpack.c.l.b16 %v2165
    %v2214 = vunpack.c.l.b16 %v2166
    %v2215 = vunpack.c.l.b16 %v2167
    %v2216 = vunpack.c.l.b16 %v2168
    %v2217 = vunpack.c.l.b16 %v2169
    %v2218 = vunpack.c.l.b16 %v2170
    %v2219 = vunpack.c.l.b16 %v2171
    %v2220 = vunpack.c.l.b16 %v2172
    %v2221 = vunpack.c.l.b16 %v2173
    %v2222 = vpack.c.b16 %v2199, %v2198
    %v2223 = vpack.c.b16 %v2201, %v2200
    %v2224 = vpack.c.b16 %v2203, %v2202
    %v2225 = vpack.c.b16 %v2205, %v2204
    %v2226 = vpack.c.b16 %v2207, %v2206
    %v2227 = vpack.c.b16 %v2209, %v2208
    %v2228 = vpack.c.b16 %v2211, %v2210
    %v2229 = vpack.c.b16 %v2213, %v2212
    %v2230 = vpack.c.b16 %v2215, %v2214
    %v2231 = vpack.c.b16 %v2217, %v2216
    %v2232 = vpack.c.b16 %v2219, %v2218
    %v2233 = vpack.c.b16 %v2221, %v2220
    %v2247 = vsel %vm1187, %v2148, 0
    %2249 = vmatpush.bf16.msra.mxu0 %v2229
    %2250 = vmatpush.bf16.msra.mxu0 %v2228
    %2251 = vmatpush.bf16.msra.mxu0 %v2227
    %2252 = vmatpush.bf16.msra.mxu0 %v2226
    %2253 = vmatpush.bf16.msra.mxu0 %v2225
    %2254 = vmatpush.bf16.msra.mxu0 %v2224
    %2255 = vmatpush.bf16.msra.mxu0 %v2223
    %2256 = vmatpush.bf16.msra.mxu0 %v2222
    %2257 = vmatmul.bf16.gmra.mxu0 %v2147
    %v2258 = vpop.f32.mrf.mxu0
    %v2259 = vadd.f32 %v1274, %v2258
    %v2260 = vpop.f32.mrf.mxu0
    %v2261 = vadd.f32 %v1274, %v2260
    %2262 = vdwg.mxu0
    %2263 = vmatpush.bf16.msra.mxu0 0
    %2264 = vmatpush.bf16.msra.mxu0 0
    %2265 = vmatpush.bf16.msra.mxu0 0
    %2266 = vmatpush.bf16.msra.mxu0 0
    %2267 = vmatpush.bf16.msra.mxu0 %v2233
    %2268 = vmatpush.bf16.msra.mxu0 %v2232
    %2269 = vmatpush.bf16.msra.mxu0 %v2231
    %2270 = vmatpush.bf16.msra.mxu0 %v2230
    %2271 = vmatmul.bf16.gmra.mxu0 %v2247
    %v2272 = vpop.f32.mrf.mxu0
    %v2273 = vadd.f32 %v2259, %v2272
    %v2274 = vpop.f32.mrf.mxu0
    %v2275 = vadd.f32 %v2261, %v2274
    %2276 = vdwg.mxu0
    %v2277 = vadd.f32 %v2273, %v1895
    %v2278 = vadd.f32 %v2275, %v1896
    %v2279 = vsel %vm152, %v2277, 0.0
    %2280 = vadd.xlane.f32.xlu0 %v2279
    %v2281 = vpop.xlane.xlu0 %2280
    %v2282 = vsel %vm152, %v2278, 0.0
    %2283 = vadd.xlane.f32.xlu0 %v2282
    %v2284 = vpop.xlane.xlu0 %2283
    %v2285 = vmul.f32 %v2281, %v165
    %v2286 = vmul.f32 %v2284, %v165
    %v2287 = vsub.f32 %v2277, %v2285
    %v2288 = vsub.f32 %v2278, %v2286
    %v2289 = vmul.f32 %v2287, %v2287
    %v2290 = vmul.f32 %v2288, %v2288
    %v2291 = vsel %vm152, %v2289, 0.0
    %2292 = vadd.xlane.f32.xlu0 %v2291
    %v2293 = vpop.xlane.xlu0 %2292
    %v2294 = vsel %vm152, %v2290, 0.0
    %2295 = vadd.xlane.f32.xlu0 %v2294
    %v2296 = vpop.xlane.xlu0 %2295
    %v2297 = vmul.f32 %v2293, %v165
    %v2298 = vmul.f32 %v2296, %v165
    %v2299 = vadd.f32 %v2297, 1e-12
    %v2300 = vadd.f32 %v2298, 1e-12
    %v2301 = vrsqrt.pop %v2299
    %v2302 = vmul.f32 %v2301, %v2299
    %v2303 = vmul.f32 %v2302, %v2301
    %v2304 = vmul.f32 0.5, %v2303
    %v2305 = vsub.f32 1.5, %v2304
    %v2306 = vmul.f32 %v2301, %v2305
    %vm2307 = vweird.f32 %v2299
    %vm2308 = vweird.f32 %v2301
    %vm2309 = vmor %vm2307, %vm2308
    %v2310 = vsel %vm2309, %v2301, %v2306
    %v2311 = vrsqrt.pop %v2300
    %v2312 = vmul.f32 %v2311, %v2300
    %v2313 = vmul.f32 %v2312, %v2311
    %v2314 = vmul.f32 0.5, %v2313
    %v2315 = vsub.f32 1.5, %v2314
    %v2316 = vmul.f32 %v2311, %v2315
    %vm2317 = vweird.f32 %v2300
    %vm2318 = vweird.f32 %v2311
    %vm2319 = vmor %vm2317, %vm2318
    %v2320 = vsel %vm2319, %v2311, %v2316
    %v2321 = vmul.f32 %v2287, %v2310
    %v2322 = vmul.f32 %v2288, %v2320
    %v2323 = vmul.f32 %v2321, %v1277
    %v2324 = vmul.f32 %v2322, %v1277
    %v2325 = vadd.f32 %v2323, %v1278
    %v2326 = vadd.f32 %v2324, %v1278
    %v2327 = vsel %vm152, %v2325, 0.0
    %v2328 = vrot.slane %v2327, 4
    %v2329 = vadd.f32 %v2327, %v2328
    %v2330 = vrot.slane %v2329, 2
    %v2331 = vadd.f32 %v2329, %v2330
    %v2332 = vrot.slane %v2331, 1
    %v2333 = vadd.f32 %v2331, %v2332
    %v2334 = vrcp.pop 8.0
    %v2335 = vmul.f32 8.0, %v2334
    %v2336 = vsub.f32 1.0, %v2335
    %v2337 = vmul.f32 %v2334, %v2336
    %v2338 = vadd.f32 %v2334, %v2337
    %vm2339 = vweird.f32 %v2334
    %v2340 = vsel %vm2339, %v2334, %v2338
    %v2341 = vmul.f32 %v2333, %v2340
    %v2342 = vsel %vm152, %v2326, 0.0
    %v2343 = vrot.slane %v2342, 4
    %v2344 = vadd.f32 %v2342, %v2343
    %v2345 = vrot.slane %v2344, 2
    %v2346 = vadd.f32 %v2344, %v2345
    %v2347 = vrot.slane %v2346, 1
    %v2348 = vadd.f32 %v2346, %v2347
    %v2349 = vmul.f32 %v2348, %v2340
    %vm2350 = vcmask 1040384
    %v2351 = vsel %vm2350, %v2341, %v2349
    %vm2352 = vcmask 386048
    %2353 = vst.msk [vmem:[#allocation2] sm:$0x3] %vm2352, %v2351
    // Predicated region
    $region34: #{cornbert_forward.1} parent=1 // pred_check
      _
    $region35: #{cornbert_forward.1} parent=1 // pred_check_branch
      %2355 = sbr.rel (0) target = $region37
    $region36: #{cornbert_forward.1} parent=1 // pred_region
      %2357 = vsyncadd [#allocation3], 0
      %s2359 = sshll.u32 [#allocation2], 4
      %s2360 = int_to_ptr.vmem [resolvable:$true] %s2359
      %s2361 = sshll.u32 %s8, 4
      %s2362 = int_to_ptr.hbm [resolvable:$true] %s2361
      %2364 = dma.vmem_to_hbm [thread:$0]  %s2360, 32, %s2362, [#allocation3]
    $region37: #{cornbert_forward.1} parent=1 // pred_fallthru
      _
    // Predicated region
    $region38: #{cornbert_forward.1} parent=1 // pred_check
      _
    $region39: #{cornbert_forward.1} parent=1 // pred_check_branch
      %2366 = sbr.rel (0) target = $region41
    $region40: #{cornbert_forward.1} parent=1 // pred_region
      %2368 = dma.done [#allocation3], 32
    $region41: #{cornbert_forward.1} parent=1 // pred_fallthru
      _
    %2369 = vsyncpa [#allocation3], 1

</llo_original>
